<compile_context>
chip_gen: v7x
topology: tpu7x:2x2x1
jax: 0.10.0
libtpu: 0.0.40
codegen_flags: <defaults>
</compile_context>

<pallas_src>
import jax
import jax.numpy as jnp
from jax import lax
from jax.experimental import pallas as pl
from jax.experimental.pallas import tpu as pltpu


def _round_up(d, m):
    return ((d + m - 1) // m) * m


def _vmem_limit_bytes():
    """Per-generation scoped-VMEM budget (leave headroom for compiler scratch)."""
    try:
        cap = pltpu.get_tpu_info().vmem_capacity_bytes
    except Exception:
        return 64 * 1024 * 1024
    if cap >= 128 * 1024 * 1024:          # v5e / v6e: 128 MiB physical
        return 100 * 1024 * 1024
    return 48 * 1024 * 1024               # v7x: 64 MiB physical per TC


# ---------------------------------------------------------------------------
# Fused kernel: grid axis = layer index k (sequential / "arbitrary")
# ---------------------------------------------------------------------------
def _cmpgnn_kernel(q0_ref, w123_ref, mt_ref, ow_ref, ob_ref, out_ref, q_ref):
    k = pl.program_id(0)
    k_last = pl.num_programs(0) - 1
    hp = q_ref.shape[1]

    # --- first grid step only: seed persistent node state Q with Q0 ---------
    @pl.when(k == 0)
    def _():
        # TODO(synk): F.dropout skipped (p=0 / eval mode -> identity).
        q_ref[...] = q0_ref[...]

    q_bf = q_ref[...].astype(jnp.bfloat16)

    # --- StepConv (step=0): single fused projection [W1^T | W2^T | Wf^T] ----
    h = jnp.dot(q_bf, w123_ref[...], preferred_element_type=jnp.float32)
    h3 = h[:, :hp]                       # lane-aligned static slices (Hp % 128 == 0)
    h4 = h[:, hp:2 * hp]
    hf = jnp.maximum(h[:, 2 * hp:], 0.0)         # relu(floop(Q))

    h3_bf = h3.astype(jnp.bfloat16)
    h4_bf = h4.astype(jnp.bfloat16)

    # S^T[i, j] = sigmoid(-(h4[i] . h3[j]))  — built directly, no transpose.
    st = jax.nn.sigmoid(
        -lax.dot_general(h4_bf, h3_bf, (((1,), (1,)), ((), ())),
                         preferred_element_type=jnp.float32))

    m_bf = mt_ref[...]                              # M^T (bf16 edge counts)
    w_bf = m_bf * st.astype(jnp.bfloat16)           # M^T ⊙ S^T

    #   C = hf + (M^T ⊙ S^T) @ (h3 + h4) - M^T @ h4
    agg = (jnp.dot(w_bf, (h3 + h4).astype(jnp.bfloat16),
                   preferred_element_type=jnp.float32)
           - jnp.dot(m_bf, h4_bf, preferred_element_type=jnp.float32))
    c = hf + agg

    # F.normalize(p=2, dim=1) via rsqrt (EUP): c / max(||c||, 1e-12)
    sumsq = jnp.sum(c * c, axis=1, keepdims=True)
    q_new = c * lax.rsqrt(jnp.maximum(sumsq, 1e-24))
    q_ref[...] = q_new                              # layerNorm == 1 -> Q = Q3

    # --- last grid step only: output projection + stable log-softmax --------
    @pl.when(k == k_last)
    def _():
        logits = (jnp.dot(q_new.astype(jnp.bfloat16), ow_ref[...],
                          preferred_element_type=jnp.float32) + ob_ref[...])
        z = logits - jnp.max(logits, axis=1, keepdims=True)
        out_ref[...] = z - jnp.log(jnp.sum(jnp.exp(z), axis=1, keepdims=True))


# ---------------------------------------------------------------------------
# Wrapper
# ---------------------------------------------------------------------------
def cmpgnn_forward(x, edge_index, params, k_layers, single_buffer_invariants=True):
    """Full CMPGNN forward (dropout=0, Norm=1, step=0, act='relu')."""
    n, _ = x.shape
    h = params["lin1_w_t"].shape[1]
    c = params["out_w_t"].shape[1]

    npad = _round_up(n, 128)       # pad rows too: full MXU tiles, packed sublanes
    hp = _round_up(h, 128)
    cp = _round_up(c, 128)

    row, col = edge_index[0], edge_index[1]         # row = source, col = target
    # M^T[dst, src] = #edges src -> dst  (source_to_target, aggr='add')
    m_t = (jnp.zeros((npad, npad), jnp.float32).at[col, row].add(1.0)
           ).astype(jnp.bfloat16)

    def pad2(a, s0, s1):
        return jnp.pad(a, ((0, s0 - a.shape[0]), (0, s1 - a.shape[1])))

    # lin1 hoisted out of the fused kernel (used exactly once).
    q0 = x @ params["lin1_w_t"] + params["lin1_b"]
    q0_p = pad2(q0, npad, hp).astype(jnp.float32)   # padded rows are zero -> inert

    ow = pad2(params["out_w_t"], hp, cp).astype(jnp.bfloat16)
    # padded class columns get a huge negative bias so softmax ignores them
    ob = jnp.full((1, cp), -1e9, jnp.float32).at[:, :c].set(
        params["out_b"].astype(jnp.float32))

    # fused per-layer weights: [K, Hp, 3*Hp] = [W1^T | W2^T | Wf^T]
    w123 = jnp.stack([
        jnp.concatenate(
            [pad2(w1, hp, hp), pad2(w2, hp, hp), pad2(wf, hp, hp)], axis=1)
        for (w1, w2, wf) in params["layers"]
    ]).astype(jnp.bfloat16)

    def invariant(shape):
        idx = lambda k: (0,) * len(shape)
        if single_buffer_invariants:
            # Grid-invariant: never re-fetched, so 1 buffer is enough.
            return pl.BlockSpec(shape, idx, pipeline_mode=pl.Buffered(1))
        return pl.BlockSpec(shape, idx)

    per_layer = pl.BlockSpec((None, hp, 3 * hp), lambda k: (k, 0, 0))

    out_p = pl.pallas_call(
        _cmpgnn_kernel,
        out_shape=jax.ShapeDtypeStruct((npad, cp), jnp.float32),
        grid_spec=pltpu.PrefetchScalarGridSpec(
            num_scalar_prefetch=0,
            grid=(k_layers,),
            in_specs=[
                invariant((npad, hp)),    # Q0 (used at k==0 only)
                per_layer,                # stacked [W1^T|W2^T|Wf^T]  [K,Hp,3Hp]
                invariant((npad, npad)),  # M^T (bf16)
                invariant((hp, cp)),      # out W^T
                invariant((1, cp)),       # out b (padded classes -> -1e9)
            ],
            out_specs=pl.BlockSpec((npad, cp), lambda k: (0, 0)),
            scratch_shapes=[pltpu.VMEM((npad, hp), jnp.float32)],  # persistent Q
        ),
        compiler_params=pltpu.CompilerParams(
            dimension_semantics=("arbitrary",),
            vmem_limit_bytes=_vmem_limit_bytes(),
        ),
    )(q0_p, w123, m_t, ow, ob)

    return out_p[:n, :c]


# ---------------------------------------------------------------------------
# Pure-JAX edge-list reference (mirrors PyTorch MessagePassing semantics)
# ---------------------------------------------------------------------------
def cmpgnn_reference(x, edge_index, params, k_layers):
    src, dst = edge_index[0], edge_index[1]          # flow = source_to_target
    q = x @ params["lin1_w_t"] + params["lin1_b"]
    for (w1, w2, wf) in params["layers"][:k_layers]:
        h3 = q @ w1
        h4 = q @ w2
        hf = jnp.maximum(q @ wf, 0.0)
        s = jax.nn.sigmoid(-jnp.sum(h3[src] * h4[dst], axis=1))   # per-edge gate
        aggr3 = jnp.zeros_like(h3).at[dst].add(s[:, None] * h3[src])
        aggr4 = jnp.zeros_like(h4).at[dst].add((1.0 - s)[:, None] * h4[src])
        c = (hf + aggr3) - aggr4
        norm = jnp.sqrt(jnp.sum(c * c, axis=1, keepdims=True))
        q = c / jnp.maximum(norm, 1e-12)
    logits = q @ params["out_w_t"] + params["out_b"]
    return jax.nn.log_softmax(logits, axis=1)


# ---------------------------------------------------------------------------
# Main
# ---------------------------------------------------------------------------
if __name__ == "__main__":
    key = jax.random.PRNGKey(0)
    N, NFEAT, HIDDEN, NCLASS, K = 16, 16, 32, 8, 2

    def uniform(key, shape, fan_in):
        bound = 1.0 / jnp.sqrt(fan_in)
        return jax.random.uniform(key, shape, jnp.float32, -bound, bound)

    keys = jax.random.split(key, 5 + 3 * K)

    x = jax.random.normal(keys[0], (N, NFEAT), jnp.float32)

    # deterministic bidirectional ring graph
    src = jnp.arange(N, dtype=jnp.int32)
    dst = (src + 1) % N
    edge_index = jnp.stack(
        [jnp.concatenate([src, dst]), jnp.concatenate([dst, src])], axis=0)

    params = {
        "lin1_w_t": uniform(keys[1], (NFEAT, HIDDEN), NFEAT),   # W^T, [in, out]
        "lin1_b": uniform(keys[2], (1, HIDDEN), NFEAT),
        "out_w_t": uniform(keys[3], (HIDDEN, NCLASS), HIDDEN),
        "out_b": uniform(keys[4], (1, NCLASS), HIDDEN),
        "layers": [
            (
                uniform(keys[5 + 3 * i + 0], (HIDDEN, HIDDEN), HIDDEN),  # lin1
                uniform(keys[5 + 3 * i + 1], (HIDDEN, HIDDEN), HIDDEN),  # lin2
                uniform(keys[5 + 3 * i + 2], (HIDDEN, HIDDEN), HIDDEN),  # floop
            )
            for i in range(K)
        ],
    }

    fwd = jax.jit(cmpgnn_forward, static_argnums=(3, 4))
    try:
        out = fwd(x, edge_index, params, K, True)
        jax.block_until_ready(out)
    except Exception:
        # Installed Pallas rejected single-buffered invariant inputs; fall back
        # to default double-buffering (only a VMEM-footprint difference).
        out = fwd(x, edge_index, params, K, False)
        jax.block_until_ready(out)

    ref = cmpgnn_reference(x, edge_index, params, K)

    assert out.shape == (N, NCLASS)
    assert bool(jnp.all(jnp.isfinite(out)))
    max_err = float(jnp.max(jnp.abs(out - ref)))
    assert max_err < 5e-2, f"max |kernel - reference| = {max_err}"
    print("KERNEL_OK")
</pallas_src>

<mosaic_0001>
module attributes {stable_mosaic.version = 11 : i64} {
  func.func private @main(%arg0: i32) attributes {dimension_semantics = [#tpu.dimension_semantics<core_parallel>], iteration_bounds = array<i64: 2>, tpu.core_type = #tpu.core_type<sc_scalar_subcore>, window_params = []} {
    return
  }
}

module attributes {stable_mosaic.version = 11 : i64} {
  func.func private @main(%arg0: i32) attributes {dimension_semantics = [#tpu.dimension_semantics<core_parallel>], iteration_bounds = array<i64: 2>, tpu.core_type = #tpu.core_type<sc_scalar_subcore>, window_params = []} {
    return
  }
}

module attributes {stable_mosaic.version = 11 : i64} {
  func.func @_cmpgnn_kernel(%arg0: i32, %arg1: memref<128x128xf32, #tpu.memory_space<vmem>>, %arg2: memref<1x128x384xbf16, #tpu.memory_space<vmem>>, %arg3: memref<128x128xbf16, #tpu.memory_space<vmem>>, %arg4: memref<128x128xbf16, #tpu.memory_space<vmem>>, %arg5: memref<1x128xf32, #tpu.memory_space<vmem>>, %arg6: memref<128x128xf32, #tpu.memory_space<vmem>>, %arg7: memref<128x128xf32, #tpu.memory_space<vmem>>) attributes {dimension_semantics = [#tpu.dimension_semantics<arbitrary>], iteration_bounds = array<i64: 2>, scalar_prefetch = 0 : i64, scratch_operands = 1 : i64, tpu.core_type = #tpu.core_type<tc>, window_params = [{pipeline_mode = #tpu.pipeline_mode<synchronous>, transform_indices = @transform_0, window_bounds = array<i64: 128, 128>}, {transform_indices = @transform_1, window_bounds = array<i64: 1, 128, 384>}, {pipeline_mode = #tpu.pipeline_mode<synchronous>, transform_indices = @transform_2, window_bounds = array<i64: 128, 128>}, {pipeline_mode = #tpu.pipeline_mode<synchronous>, transform_indices = @transform_3, window_bounds = array<i64: 128, 128>}, {pipeline_mode = #tpu.pipeline_mode<synchronous>, transform_indices = @transform_4, window_bounds = array<i64: 1, 128>}, {pipeline_mode = #tpu.pipeline_mode<synchronous>, transform_indices = @transform_5, window_bounds = array<i64: 128, 128>}]} {
    %c0_i32 = arith.constant 0 : i32
    %0 = arith.cmpi eq, %arg0, %c0_i32 : i32
    %1 = arith.extui %0 : i1 to i32
    %c0_i32_0 = arith.constant 0 : i32
    %2 = arith.cmpi ne, %1, %c0_i32_0 : i32
    scf.if %2 {
      %c0_18 = arith.constant 0 : index
      %c0_19 = arith.constant 0 : index
      %44 = vector.load %arg1[%c0_18, %c0_19] : memref<128x128xf32, #tpu.memory_space<vmem>>, vector<128x128xf32>
      %c0_20 = arith.constant 0 : index
      %c0_21 = arith.constant 0 : index
      %45 = vector.load %arg7[%c0_20, %c0_21] : memref<128x128xf32, #tpu.memory_space<vmem>>, vector<128x128xf32>
      tpu.vector_store %arg7[%c0_20, %c0_21], %44 {strides = array<i32>} : memref<128x128xf32, #tpu.memory_space<vmem>>, vector<128x128xf32>,
    } else {
    }
    %c0 = arith.constant 0 : index
    %c0_1 = arith.constant 0 : index
    %3 = vector.load %arg7[%c0, %c0_1] : memref<128x128xf32, #tpu.memory_space<vmem>>, vector<128x128xf32>
    %4 = arith.truncf %3 : vector<128x128xf32> to vector<128x128xbf16>
    %c0_2 = arith.constant 0 : index
    %c0_3 = arith.constant 0 : index
    %c0_4 = arith.constant 0 : index
    %5 = vector.load %arg2[%c0_2, %c0_3, %c0_4] : memref<1x128x384xbf16, #tpu.memory_space<vmem>>, vector<1x128x384xbf16>
    %6 = vector.shape_cast %5 : vector<1x128x384xbf16> to vector<128x384xbf16>
    %cst = arith.constant dense<0.000000e+00> : vector<128x384xf32>
    %7 = tpu.matmul %4, %6, %cst {dimension_numbers = #tpu.dot_dimension_numbers<[1], [0], [0], [1], [0, 0, 1, 1], [], []>} : vector<128x128xbf16>, vector<128x384xbf16>, vector<128x384xf32> -> vector<128x384xf32>
    %8 = vector.extract_strided_slice %7 {offsets = [0, 0], sizes = [128, 128], strides = [1, 1]} : vector<128x384xf32> to vector<128x128xf32>
    %9 = vector.extract_strided_slice %7 {offsets = [0, 128], sizes = [128, 128], strides = [1, 1]} : vector<128x384xf32> to vector<128x128xf32>
    %10 = vector.extract_strided_slice %7 {offsets = [0, 256], sizes = [128, 128], strides = [1, 1]} : vector<128x384xf32> to vector<128x128xf32>
    %cst_5 = arith.constant 0.000000e+00 : f32
    %11 = vector.broadcast %cst_5 : f32 to vector<128x128xf32>
    %12 = arith.maximumf %10, %11 : vector<128x128xf32>
    %13 = arith.truncf %8 : vector<128x128xf32> to vector<128x128xbf16>
    %14 = arith.truncf %9 : vector<128x128xf32> to vector<128x128xbf16>
    %cst_6 = arith.constant dense<0.000000e+00> : vector<128x128xf32>
    %15 = tpu.matmul %14, %13, %cst_6 {dimension_numbers = #tpu.dot_dimension_numbers<[1], [1], [0], [0], [0, 0, 1, 0], [], []>} : vector<128x128xbf16>, vector<128x128xbf16>, vector<128x128xf32> -> vector<128x128xf32>
    %cst_7 = arith.constant 0.000000e+00 : f32
    %16 = vector.broadcast %cst_7 : f32 to vector<128x128xf32>
    %17 = arith.subf %16, %15 : vector<128x128xf32>
    %18 = arith.negf %17 : vector<128x128xf32>
    %19 = math.exp %18 : vector<128x128xf32>
    %cst_8 = arith.constant 1.000000e+00 : f32
    %20 = vector.broadcast %cst_8 : f32 to vector<128x128xf32>
    %21 = arith.addf %20, %19 : vector<128x128xf32>
    %22 = arith.divf %20, %21 : vector<128x128xf32>
    %c0_9 = arith.constant 0 : index
    %c0_10 = arith.constant 0 : index
    %23 = vector.load %arg3[%c0_9, %c0_10] : memref<128x128xbf16, #tpu.memory_space<vmem>>, vector<128x128xbf16>
    %24 = arith.truncf %22 : vector<128x128xf32> to vector<128x128xbf16>
    %25 = arith.mulf %23, %24 : vector<128x128xbf16>
    %26 = arith.addf %8, %9 : vector<128x128xf32>
    %27 = arith.truncf %26 : vector<128x128xf32> to vector<128x128xbf16>
    %cst_11 = arith.constant dense<0.000000e+00> : vector<128x128xf32>
    %28 = tpu.matmul %25, %27, %cst_11 {dimension_numbers = #tpu.dot_dimension_numbers<[1], [0], [0], [1], [0, 0, 1, 1], [], []>} : vector<128x128xbf16>, vector<128x128xbf16>, vector<128x128xf32> -> vector<128x128xf32>
    %cst_12 = arith.constant dense<0.000000e+00> : vector<128x128xf32>
    %29 = tpu.matmul %23, %14, %cst_12 {dimension_numbers = #tpu.dot_dimension_numbers<[1], [0], [0], [1], [0, 0, 1, 1], [], []>} : vector<128x128xbf16>, vector<128x128xbf16>, vector<128x128xf32> -> vector<128x128xf32>
    %30 = arith.subf %28, %29 : vector<128x128xf32>
    %31 = arith.addf %12, %30 : vector<128x128xf32>
    %32 = arith.mulf %31, %31 : vector<128x128xf32>
    %cst_13 = arith.constant dense<0.000000e+00> : vector<128xf32>
    %33 = vector.multi_reduction <add>, %32, %cst_13 [1] : vector<128x128xf32> to vector<128xf32>
    %34 = vector.shape_cast %33 : vector<128xf32> to vector<128x1xf32>
    %cst_14 = arith.constant 1.000000e-24 : f32
    %35 = vector.broadcast %cst_14 : f32 to vector<128x1xf32>
    %36 = arith.maximumf %34, %35 : vector<128x1xf32>
    %37 = math.rsqrt %36 : vector<128x1xf32>
    %38 = vector.broadcast %37 : vector<128x1xf32> to vector<128x128xf32>
    %39 = arith.mulf %31, %38 : vector<128x128xf32>
    %c0_15 = arith.constant 0 : index
    %c0_16 = arith.constant 0 : index
    %40 = vector.load %arg7[%c0_15, %c0_16] : memref<128x128xf32, #tpu.memory_space<vmem>>, vector<128x128xf32>
    tpu.vector_store %arg7[%c0_15, %c0_16], %39 {strides = array<i32>} : memref<128x128xf32, #tpu.memory_space<vmem>>, vector<128x128xf32>,
    %c1_i32 = arith.constant 1 : i32
    %41 = arith.cmpi eq, %arg0, %c1_i32 : i32
    %42 = arith.extui %41 : i1 to i32
    %c0_i32_17 = arith.constant 0 : i32
    %43 = arith.cmpi ne, %42, %c0_i32_17 : i32
    scf.if %43 {
      %44 = arith.truncf %39 : vector<128x128xf32> to vector<128x128xbf16>
      %c0_18 = arith.constant 0 : index
      %c0_19 = arith.constant 0 : index
      %45 = vector.load %arg4[%c0_18, %c0_19] : memref<128x128xbf16, #tpu.memory_space<vmem>>, vector<128x128xbf16>
      %cst_20 = arith.constant dense<0.000000e+00> : vector<128x128xf32>
      %46 = tpu.matmul %44, %45, %cst_20 {dimension_numbers = #tpu.dot_dimension_numbers<[1], [0], [0], [1], [0, 0, 1, 1], [], []>} : vector<128x128xbf16>, vector<128x128xbf16>, vector<128x128xf32> -> vector<128x128xf32>
      %c0_21 = arith.constant 0 : index
      %c0_22 = arith.constant 0 : index
      %47 = vector.load %arg5[%c0_21, %c0_22] : memref<1x128xf32, #tpu.memory_space<vmem>>, vector<1x128xf32>
      %48 = vector.broadcast %47 : vector<1x128xf32> to vector<128x128xf32>
      %49 = arith.addf %46, %48 : vector<128x128xf32>
      %cst_23 = arith.constant dense<0xFF800000> : vector<128xf32>
      %50 = vector.multi_reduction <maximumf>, %49, %cst_23 [1] : vector<128x128xf32> to vector<128xf32>
      %51 = vector.shape_cast %50 : vector<128xf32> to vector<128x1xf32>
      %52 = vector.broadcast %51 : vector<128x1xf32> to vector<128x128xf32>
      %53 = arith.subf %49, %52 : vector<128x128xf32>
      %54 = math.exp %53 : vector<128x128xf32>
      %cst_24 = arith.constant dense<0.000000e+00> : vector<128xf32>
      %55 = vector.multi_reduction <add>, %54, %cst_24 [1] : vector<128x128xf32> to vector<128xf32>
      %56 = vector.shape_cast %55 : vector<128xf32> to vector<128x1xf32>
      %57 = math.log %56 : vector<128x1xf32>
      %58 = vector.broadcast %57 : vector<128x1xf32> to vector<128x128xf32>
      %59 = arith.subf %53, %58 : vector<128x128xf32>
      %c0_25 = arith.constant 0 : index
      %c0_26 = arith.constant 0 : index
      %60 = vector.load %arg6[%c0_25, %c0_26] : memref<128x128xf32, #tpu.memory_space<vmem>>, vector<128x128xf32>
      tpu.vector_store %arg6[%c0_25, %c0_26], %59 {strides = array<i32>} : memref<128x128xf32, #tpu.memory_space<vmem>>, vector<128x128xf32>,
    } else {
    }
    return
  }
  func.func @transform_0(%arg0: i32) -> (i32, i32) {
    %c0_i32 = arith.constant 0 : i32
    %c0_i32_0 = arith.constant 0 : i32
    %c0_i32_1 = arith.constant 0 : i32
    return %c0_i32, %c0_i32_0 : i32, i32
  }
  func.func @transform_1(%arg0: i32) -> (i32, i32, i32) {
    %c0_i32 = arith.constant 0 : i32
    %c0_i32_0 = arith.constant 0 : i32
    %c0_i32_1 = arith.constant 0 : i32
    return %arg0, %c0_i32, %c0_i32_0 : i32, i32, i32
  }
  func.func @transform_2(%arg0: i32) -> (i32, i32) {
    %c0_i32 = arith.constant 0 : i32
    %c0_i32_0 = arith.constant 0 : i32
    %c0_i32_1 = arith.constant 0 : i32
    return %c0_i32, %c0_i32_0 : i32, i32
  }
  func.func @transform_3(%arg0: i32) -> (i32, i32) {
    %c0_i32 = arith.constant 0 : i32
    %c0_i32_0 = arith.constant 0 : i32
    %c0_i32_1 = arith.constant 0 : i32
    return %c0_i32, %c0_i32_0 : i32, i32
  }
  func.func @transform_4(%arg0: i32) -> (i32, i32) {
    %c0_i32 = arith.constant 0 : i32
    %c0_i32_0 = arith.constant 0 : i32
    %c0_i32_1 = arith.constant 0 : i32
    return %c0_i32, %c0_i32_0 : i32, i32
  }
  func.func @transform_5(%arg0: i32) -> (i32, i32) {
    %c0_i32 = arith.constant 0 : i32
    %c0_i32_0 = arith.constant 0 : i32
    %c0_i32_1 = arith.constant 0 : i32
    return %c0_i32, %c0_i32_0 : i32, i32
  }
}

module attributes {stable_mosaic.version = 11 : i64} {
  func.func private @main(%arg0: i32) attributes {dimension_semantics = [#tpu.dimension_semantics<core_parallel>], iteration_bounds = array<i64: 2>, tpu.core_type = #tpu.core_type<sc_scalar_subcore>, window_params = []} {
    return
  }
}

module attributes {stable_mosaic.version = 11 : i64} {
  func.func private @main(%arg0: i32) attributes {dimension_semantics = [#tpu.dimension_semantics<core_parallel>], iteration_bounds = array<i64: 2>, tpu.core_type = #tpu.core_type<sc_scalar_subcore>, window_params = []} {
    return
  }
}

module attributes {stable_mosaic.version = 11 : i64} {
  func.func @_cmpgnn_kernel(%arg0: i32, %arg1: memref<128x128xf32, #tpu.memory_space<vmem>>, %arg2: memref<1x128x384xbf16, #tpu.memory_space<vmem>>, %arg3: memref<128x128xbf16, #tpu.memory_space<vmem>>, %arg4: memref<128x128xbf16, #tpu.memory_space<vmem>>, %arg5: memref<1x128xf32, #tpu.memory_space<vmem>>, %arg6: memref<128x128xf32, #tpu.memory_space<vmem>>, %arg7: memref<128x128xf32, #tpu.memory_space<vmem>>) attributes {dimension_semantics = [#tpu.dimension_semantics<arbitrary>], iteration_bounds = array<i64: 2>, scalar_prefetch = 0 : i64, scratch_operands = 1 : i64, tpu.core_type = #tpu.core_type<tc>, window_params = [{pipeline_mode = #tpu.pipeline_mode<synchronous>, transform_indices = @transform_0, window_bounds = array<i64: 128, 128>}, {transform_indices = @transform_1, window_bounds = array<i64: 1, 128, 384>}, {pipeline_mode = #tpu.pipeline_mode<synchronous>, transform_indices = @transform_2, window_bounds = array<i64: 128, 128>}, {pipeline_mode = #tpu.pipeline_mode<synchronous>, transform_indices = @transform_3, window_bounds = array<i64: 128, 128>}, {pipeline_mode = #tpu.pipeline_mode<synchronous>, transform_indices = @transform_4, window_bounds = array<i64: 1, 128>}, {pipeline_mode = #tpu.pipeline_mode<synchronous>, transform_indices = @transform_5, window_bounds = array<i64: 128, 128>}]} {
    %c0_i32 = arith.constant 0 : i32
    %0 = arith.cmpi eq, %arg0, %c0_i32 : i32
    %1 = arith.extui %0 : i1 to i32
    %c0_i32_0 = arith.constant 0 : i32
    %2 = arith.cmpi ne, %1, %c0_i32_0 : i32
    scf.if %2 {
      %c0_18 = arith.constant 0 : index
      %c0_19 = arith.constant 0 : index
      %44 = vector.load %arg1[%c0_18, %c0_19] : memref<128x128xf32, #tpu.memory_space<vmem>>, vector<128x128xf32>
      %c0_20 = arith.constant 0 : index
      %c0_21 = arith.constant 0 : index
      %45 = vector.load %arg7[%c0_20, %c0_21] : memref<128x128xf32, #tpu.memory_space<vmem>>, vector<128x128xf32>
      tpu.vector_store %arg7[%c0_20, %c0_21], %44 {strides = array<i32>} : memref<128x128xf32, #tpu.memory_space<vmem>>, vector<128x128xf32>,
    } else {
    }
    %c0 = arith.constant 0 : index
    %c0_1 = arith.constant 0 : index
    %3 = vector.load %arg7[%c0, %c0_1] : memref<128x128xf32, #tpu.memory_space<vmem>>, vector<128x128xf32>
    %4 = arith.truncf %3 : vector<128x128xf32> to vector<128x128xbf16>
    %c0_2 = arith.constant 0 : index
    %c0_3 = arith.constant 0 : index
    %c0_4 = arith.constant 0 : index
    %5 = vector.load %arg2[%c0_2, %c0_3, %c0_4] : memref<1x128x384xbf16, #tpu.memory_space<vmem>>, vector<1x128x384xbf16>
    %6 = vector.shape_cast %5 : vector<1x128x384xbf16> to vector<128x384xbf16>
    %cst = arith.constant dense<0.000000e+00> : vector<128x384xf32>
    %7 = tpu.matmul %4, %6, %cst {dimension_numbers = #tpu.dot_dimension_numbers<[1], [0], [0], [1], [0, 0, 1, 1], [], []>} : vector<128x128xbf16>, vector<128x384xbf16>, vector<128x384xf32> -> vector<128x384xf32>
    %8 = vector.extract_strided_slice %7 {offsets = [0, 0], sizes = [128, 128], strides = [1, 1]} : vector<128x384xf32> to vector<128x128xf32>
    %9 = vector.extract_strided_slice %7 {offsets = [0, 128], sizes = [128, 128], strides = [1, 1]} : vector<128x384xf32> to vector<128x128xf32>
    %10 = vector.extract_strided_slice %7 {offsets = [0, 256], sizes = [128, 128], strides = [1, 1]} : vector<128x384xf32> to vector<128x128xf32>
    %cst_5 = arith.constant 0.000000e+00 : f32
    %11 = vector.broadcast %cst_5 : f32 to vector<128x128xf32>
    %12 = arith.maximumf %10, %11 : vector<128x128xf32>
    %13 = arith.truncf %8 : vector<128x128xf32> to vector<128x128xbf16>
    %14 = arith.truncf %9 : vector<128x128xf32> to vector<128x128xbf16>
    %cst_6 = arith.constant dense<0.000000e+00> : vector<128x128xf32>
    %15 = tpu.matmul %14, %13, %cst_6 {dimension_numbers = #tpu.dot_dimension_numbers<[1], [1], [0], [0], [0, 0, 1, 0], [], []>} : vector<128x128xbf16>, vector<128x128xbf16>, vector<128x128xf32> -> vector<128x128xf32>
    %cst_7 = arith.constant 0.000000e+00 : f32
    %16 = vector.broadcast %cst_7 : f32 to vector<128x128xf32>
    %17 = arith.subf %16, %15 : vector<128x128xf32>
    %18 = arith.negf %17 : vector<128x128xf32>
    %19 = math.exp %18 : vector<128x128xf32>
    %cst_8 = arith.constant 1.000000e+00 : f32
    %20 = vector.broadcast %cst_8 : f32 to vector<128x128xf32>
    %21 = arith.addf %20, %19 : vector<128x128xf32>
    %22 = arith.divf %20, %21 : vector<128x128xf32>
    %c0_9 = arith.constant 0 : index
    %c0_10 = arith.constant 0 : index
    %23 = vector.load %arg3[%c0_9, %c0_10] : memref<128x128xbf16, #tpu.memory_space<vmem>>, vector<128x128xbf16>
    %24 = arith.truncf %22 : vector<128x128xf32> to vector<128x128xbf16>
    %25 = arith.mulf %23, %24 : vector<128x128xbf16>
    %26 = arith.addf %8, %9 : vector<128x128xf32>
    %27 = arith.truncf %26 : vector<128x128xf32> to vector<128x128xbf16>
    %cst_11 = arith.constant dense<0.000000e+00> : vector<128x128xf32>
    %28 = tpu.matmul %25, %27, %cst_11 {dimension_numbers = #tpu.dot_dimension_numbers<[1], [0], [0], [1], [0, 0, 1, 1], [], []>} : vector<128x128xbf16>, vector<128x128xbf16>, vector<128x128xf32> -> vector<128x128xf32>
    %cst_12 = arith.constant dense<0.000000e+00> : vector<128x128xf32>
    %29 = tpu.matmul %23, %14, %cst_12 {dimension_numbers = #tpu.dot_dimension_numbers<[1], [0], [0], [1], [0, 0, 1, 1], [], []>} : vector<128x128xbf16>, vector<128x128xbf16>, vector<128x128xf32> -> vector<128x128xf32>
    %30 = arith.subf %28, %29 : vector<128x128xf32>
    %31 = arith.addf %12, %30 : vector<128x128xf32>
    %32 = arith.mulf %31, %31 : vector<128x128xf32>
    %cst_13 = arith.constant dense<0.000000e+00> : vector<128xf32>
    %33 = vector.multi_reduction <add>, %32, %cst_13 [1] : vector<128x128xf32> to vector<128xf32>
    %34 = vector.shape_cast %33 : vector<128xf32> to vector<128x1xf32>
    %cst_14 = arith.constant 1.000000e-24 : f32
    %35 = vector.broadcast %cst_14 : f32 to vector<128x1xf32>
    %36 = arith.maximumf %34, %35 : vector<128x1xf32>
    %37 = math.rsqrt %36 : vector<128x1xf32>
    %38 = vector.broadcast %37 : vector<128x1xf32> to vector<128x128xf32>
    %39 = arith.mulf %31, %38 : vector<128x128xf32>
    %c0_15 = arith.constant 0 : index
    %c0_16 = arith.constant 0 : index
    %40 = vector.load %arg7[%c0_15, %c0_16] : memref<128x128xf32, #tpu.memory_space<vmem>>, vector<128x128xf32>
    tpu.vector_store %arg7[%c0_15, %c0_16], %39 {strides = array<i32>} : memref<128x128xf32, #tpu.memory_space<vmem>>, vector<128x128xf32>,
    %c1_i32 = arith.constant 1 : i32
    %41 = arith.cmpi eq, %arg0, %c1_i32 : i32
    %42 = arith.extui %41 : i1 to i32
    %c0_i32_17 = arith.constant 0 : i32
    %43 = arith.cmpi ne, %42, %c0_i32_17 : i32
    scf.if %43 {
      %44 = arith.truncf %39 : vector<128x128xf32> to vector<128x128xbf16>
      %c0_18 = arith.constant 0 : index
      %c0_19 = arith.constant 0 : index
      %45 = vector.load %arg4[%c0_18, %c0_19] : memref<128x128xbf16, #tpu.memory_space<vmem>>, vector<128x128xbf16>
      %cst_20 = arith.constant dense<0.000000e+00> : vector<128x128xf32>
      %46 = tpu.matmul %44, %45, %cst_20 {dimension_numbers = #tpu.dot_dimension_numbers<[1], [0], [0], [1], [0, 0, 1, 1], [], []>} : vector<128x128xbf16>, vector<128x128xbf16>, vector<128x128xf32> -> vector<128x128xf32>
      %c0_21 = arith.constant 0 : index
      %c0_22 = arith.constant 0 : index
      %47 = vector.load %arg5[%c0_21, %c0_22] : memref<1x128xf32, #tpu.memory_space<vmem>>, vector<1x128xf32>
      %48 = vector.broadcast %47 : vector<1x128xf32> to vector<128x128xf32>
      %49 = arith.addf %46, %48 : vector<128x128xf32>
      %cst_23 = arith.constant dense<0xFF800000> : vector<128xf32>
      %50 = vector.multi_reduction <maximumf>, %49, %cst_23 [1] : vector<128x128xf32> to vector<128xf32>
      %51 = vector.shape_cast %50 : vector<128xf32> to vector<128x1xf32>
      %52 = vector.broadcast %51 : vector<128x1xf32> to vector<128x128xf32>
      %53 = arith.subf %49, %52 : vector<128x128xf32>
      %54 = math.exp %53 : vector<128x128xf32>
      %cst_24 = arith.constant dense<0.000000e+00> : vector<128xf32>
      %55 = vector.multi_reduction <add>, %54, %cst_24 [1] : vector<128x128xf32> to vector<128xf32>
      %56 = vector.shape_cast %55 : vector<128xf32> to vector<128x1xf32>
      %57 = math.log %56 : vector<128x1xf32>
      %58 = vector.broadcast %57 : vector<128x1xf32> to vector<128x128xf32>
      %59 = arith.subf %53, %58 : vector<128x128xf32>
      %c0_25 = arith.constant 0 : index
      %c0_26 = arith.constant 0 : index
      %60 = vector.load %arg6[%c0_25, %c0_26] : memref<128x128xf32, #tpu.memory_space<vmem>>, vector<128x128xf32>
      tpu.vector_store %arg6[%c0_25, %c0_26], %59 {strides = array<i32>} : memref<128x128xf32, #tpu.memory_space<vmem>>, vector<128x128xf32>,
    } else {
    }
    return
  }
  func.func @transform_0(%arg0: i32) -> (i32, i32) {
    %c0_i32 = arith.constant 0 : i32
    %c0_i32_0 = arith.constant 0 : i32
    %c0_i32_1 = arith.constant 0 : i32
    return %c0_i32, %c0_i32_0 : i32, i32
  }
  func.func @transform_1(%arg0: i32) -> (i32, i32, i32) {
    %c0_i32 = arith.constant 0 : i32
    %c0_i32_0 = arith.constant 0 : i32
    %c0_i32_1 = arith.constant 0 : i32
    return %arg0, %c0_i32, %c0_i32_0 : i32, i32, i32
  }
  func.func @transform_2(%arg0: i32) -> (i32, i32) {
    %c0_i32 = arith.constant 0 : i32
    %c0_i32_0 = arith.constant 0 : i32
    %c0_i32_1 = arith.constant 0 : i32
    return %c0_i32, %c0_i32_0 : i32, i32
  }
  func.func @transform_3(%arg0: i32) -> (i32, i32) {
    %c0_i32 = arith.constant 0 : i32
    %c0_i32_0 = arith.constant 0 : i32
    %c0_i32_1 = arith.constant 0 : i32
    return %c0_i32, %c0_i32_0 : i32, i32
  }
  func.func @transform_4(%arg0: i32) -> (i32, i32) {
    %c0_i32 = arith.constant 0 : i32
    %c0_i32_0 = arith.constant 0 : i32
    %c0_i32_1 = arith.constant 0 : i32
    return %c0_i32, %c0_i32_0 : i32, i32
  }
  func.func @transform_5(%arg0: i32) -> (i32, i32) {
    %c0_i32 = arith.constant 0 : i32
    %c0_i32_0 = arith.constant 0 : i32
    %c0_i32_1 = arith.constant 0 : i32
    return %c0_i32, %c0_i32_0 : i32, i32
  }
}

</mosaic_0001>

<llo_original>
// kernel: cmpgnn_forward.1
$region0: #{cmpgnn_forward.1}
  #allocation0 [shape = 'u32[]', space=smem, size = 0x4, offset = 0x4, fixed_abs, tag = 'smem constant byte address 0x4 - core index']
  #allocation1 [shape = 'u32[144,128]{1,0:T(1,128)}', space=vmem, size = 0x12000, scoped, tag = 'internal scratch']
  #allocation2 [shape = 'f32[128,128]{1,0:T(8,128)}', space=vmem, size = 0x10000, scoped, tag = 'scratch operand']
  %s0 = inlined_call_operand.hbm [shape: f32[128,128], index: 0, kind: input, shape index: {}]
  %s1 = inlined_call_operand.hbm [shape: bf16[2,128,384], index: 1, kind: input, shape index: {}]
  %s2 = inlined_call_operand.hbm [shape: bf16[128,128], index: 2, kind: input, shape index: {}]
  %s3 = inlined_call_operand.hbm [shape: bf16[128,128], index: 3, kind: input, shape index: {}]
  %s4 = inlined_call_operand.hbm [shape: f32[1,128], index: 4, kind: input, shape index: {}]
  %s5 = inlined_call_operand.hbm [shape: f32[128,128], index: 5, kind: output, shape index: {}]
  %s6 = sld [smem:[#allocation0]]
  $region81: #{cmpgnn_forward.1} parent=0
    _
  %s8 = ssub.s32 1, %s6
  %s9 = scalar_select 0, %s8, %s6
  $region1: #{cmpgnn_forward.1} parent=0
    #allocation3 [shape = 'u8[65536]{0}', space=vmem, size = 0x10000, scoped, tag = 'input window, operand 0, single buffered']
    #allocation4 [shape = 's32[2]{0}', space=sflag, size = 0x8, scoped, tag = 'scoped memory for cmpgnn_forward.1']
    #allocation5 [shape = 's32[2]{0}', space=sflag, size = 0x8, scoped, tag = 'scoped memory for cmpgnn_forward.1']
    #allocation6 [shape = 'u8[196608]{0}', space=vmem, size = 0x30000, scoped, tag = 'input window, operand 1']
    #allocation7 [shape = 's32[2]{0}', space=sflag, size = 0x8, scoped, tag = 'scoped memory for cmpgnn_forward.1']
    #allocation8 [shape = 'u8[32768]{0}', space=vmem, size = 0x8000, scoped, tag = 'input window, operand 2, single buffered']
    #allocation9 [shape = 'u8[32768]{0}', space=vmem, size = 0x8000, scoped, tag = 'input window, operand 3, single buffered']
    #allocation10 [shape = 's32[1]{0}', space=sflag, size = 0x4, scoped, tag = 'scoped memory for cmpgnn_forward.1']
    #allocation11 [shape = 'u8[512]{0}', space=vmem, size = 0x400, scoped, tag = 'input window, operand 4, single buffered']
    #allocation12 [shape = 'u8[65536]{0}', space=vmem, size = 0x10000, scoped, tag = 'output window, operand 0, single buffered']
    %10 = vsyncpa [#allocation4], 0
    %11 = vsyncpa [#allocation7], 0
    %s12 = scalar_lea.sflag [#allocation7], 1
    %13 = vsyncpa %s12, 0
    %14 = vsyncpa [#allocation10], 0
    %15 = vsyncpa [#allocation5], 0
    loop: start=0, step=1, limit=4
    $region2: #{cmpgnn_forward.1} parent=1 // loop_pre_header
      _
    $region3: #{cmpgnn_forward.1} parent=1 // loop_header
      %s17 = sphi 0, %s21
      %p18 = scmp.ge.s32.totalorder %s17, 4
      %s25 = sphi 0, %s25
      %s27 = sphi 0, %s25
      %s28 = sphi 0, %s27
      %s42 = sphi 0, %s28
      %s48 = sphi 0, %s50
      %s51 = sphi 0, %s48
      %s52 = sphi 0, %s51
      %s68 = sphi 0, %s52
      %s72 = sphi 0, %s72
      %s74 = sphi 0, %s72
      %s75 = sphi 0, %s74
      %s89 = sphi 0, %s75
      %s93 = sphi 0, %s93
      %s95 = sphi 0, %s93
      %s96 = sphi 0, %s95
      %s110 = sphi 0, %s96
      %s114 = sphi 0, %s114
      %s116 = sphi 0, %s114
      %s117 = sphi 0, %s116
      %s131 = sphi 0, %s117
      %s135 = sphi 0, %s135
      %s137 = sphi 0, %s135
      %s138 = sphi 0, %s137
      %s152 = sphi 0, %s138
    $region4: #{cmpgnn_forward.1} parent=1 // loop_header_branch
      %20 = sbr.rel (%p18) target = $region8
    $region5: #{cmpgnn_forward.1} parent=1 // loop_body
      %s22 = ssub.s32 %s17, 1
      %s23 = ssub.s32 %s17, 2
      %s24 = sadd.s32 %s17, 1
      %s26 = sadd.s32 %s25, 1
      %p29 = scmp.eq.s32.totalorder %s17, 1
      %p30 = scmp.ne.s32.totalorder %s25, %s27
      %p31 = scmp.eq.s32.totalorder %s17, 0
      %p32 = por %p30, %p31
      %p33 = scmp.ne.s32.totalorder %s25, %s27
      %p34 = scmp.eq.s32.totalorder %s22, 1
      %p35 = por %p33, %p34
      %p36 = scmp.ne.s32.totalorder %s27, %s28
      %p37 = scmp.eq.s32.totalorder %s22, 0
      %p38 = por %p36, %p37
      %p39 = scmp.ne.s32.totalorder %s27, %s28
      %p40 = scmp.eq.s32.totalorder %s23, 1
      %p41 = por %p39, %p40
      %p43 = scmp.ne.s32.totalorder %s28, %s42
      %p44 = scmp.eq.s32.totalorder %s23, 0
      %p45 = por %p43, %p44
      %s46 = ssub.s32 %s17, %s24
      %p47 = scmp.eq.s32.totalorder %s46, 0
      %s49 = sadd.s32 %s48, 1
      %s50 = scalar_select %p47, %s48, %s49
      %p53 = pneg %p47
      %p54 = scmp.eq.s32.totalorder %s17, 1
      %p55 = por %p53, %p54
      %p56 = scmp.ne.s32.totalorder %s48, %s51
      %p57 = scmp.eq.s32.totalorder %s17, 0
      %p58 = por %p56, %p57
      %p59 = scmp.ne.s32.totalorder %s48, %s51
      %p60 = scmp.eq.s32.totalorder %s22, 1
      %p61 = por %p59, %p60
      %p62 = scmp.ne.s32.totalorder %s51, %s52
      %p63 = scmp.eq.s32.totalorder %s22, 0
      %p64 = por %p62, %p63
      %p65 = scmp.ne.s32.totalorder %s51, %s52
      %p66 = scmp.eq.s32.totalorder %s23, 1
      %p67 = por %p65, %p66
      %p69 = scmp.ne.s32.totalorder %s52, %s68
      %p70 = scmp.eq.s32.totalorder %s23, 0
      %p71 = por %p69, %p70
      %s73 = sadd.s32 %s72, 1
      %p76 = scmp.eq.s32.totalorder %s17, 1
      %p77 = scmp.ne.s32.totalorder %s72, %s74
      %p78 = scmp.eq.s32.totalorder %s17, 0
      %p79 = por %p77, %p78
      %p80 = scmp.ne.s32.totalorder %s72, %s74
      %p81 = scmp.eq.s32.totalorder %s22, 1
      %p82 = por %p80, %p81
      %p83 = scmp.ne.s32.totalorder %s74, %s75
      %p84 = scmp.eq.s32.totalorder %s22, 0
      %p85 = por %p83, %p84
      %p86 = scmp.ne.s32.totalorder %s74, %s75
      %p87 = scmp.eq.s32.totalorder %s23, 1
      %p88 = por %p86, %p87
      %p90 = scmp.ne.s32.totalorder %s75, %s89
      %p91 = scmp.eq.s32.totalorder %s23, 0
      %p92 = por %p90, %p91
      %s94 = sadd.s32 %s93, 1
      %p97 = scmp.eq.s32.totalorder %s17, 1
      %p98 = scmp.ne.s32.totalorder %s93, %s95
      %p99 = scmp.eq.s32.totalorder %s17, 0
      %p100 = por %p98, %p99
      %p101 = scmp.ne.s32.totalorder %s93, %s95
      %p102 = scmp.eq.s32.totalorder %s22, 1
      %p103 = por %p101, %p102
      %p104 = scmp.ne.s32.totalorder %s95, %s96
      %p105 = scmp.eq.s32.totalorder %s22, 0
      %p106 = por %p104, %p105
      %p107 = scmp.ne.s32.totalorder %s95, %s96
      %p108 = scmp.eq.s32.totalorder %s23, 1
      %p109 = por %p107, %p108
      %p111 = scmp.ne.s32.totalorder %s96, %s110
      %p112 = scmp.eq.s32.totalorder %s23, 0
      %p113 = por %p111, %p112
      %s115 = sadd.s32 %s114, 1
      %p118 = scmp.eq.s32.totalorder %s17, 1
      %p119 = scmp.ne.s32.totalorder %s114, %s116
      %p120 = scmp.eq.s32.totalorder %s17, 0
      %p121 = por %p119, %p120
      %p122 = scmp.ne.s32.totalorder %s114, %s116
      %p123 = scmp.eq.s32.totalorder %s22, 1
      %p124 = por %p122, %p123
      %p125 = scmp.ne.s32.totalorder %s116, %s117
      %p126 = scmp.eq.s32.totalorder %s22, 0
      %p127 = por %p125, %p126
      %p128 = scmp.ne.s32.totalorder %s116, %s117
      %p129 = scmp.eq.s32.totalorder %s23, 1
      %p130 = por %p128, %p129
      %p132 = scmp.ne.s32.totalorder %s117, %s131
      %p133 = scmp.eq.s32.totalorder %s23, 0
      %p134 = por %p132, %p133
      %s136 = sadd.s32 %s135, 1
      %p139 = scmp.eq.s32.totalorder %s17, 1
      %p140 = scmp.ne.s32.totalorder %s135, %s137
      %p141 = scmp.eq.s32.totalorder %s17, 0
      %p142 = por %p140, %p141
      %p143 = scmp.ne.s32.totalorder %s135, %s137
      %p144 = scmp.eq.s32.totalorder %s22, 1
      %p145 = por %p143, %p144
      %p146 = scmp.ne.s32.totalorder %s137, %s138
      %p147 = scmp.eq.s32.totalorder %s22, 0
      %p148 = por %p146, %p147
      %p149 = scmp.ne.s32.totalorder %s137, %s138
      %p150 = scmp.eq.s32.totalorder %s23, 1
      %p151 = por %p149, %p150
      %p153 = scmp.ne.s32.totalorder %s138, %s152
      %p154 = scmp.eq.s32.totalorder %s23, 0
      %p155 = por %p153, %p154
      %p156 = scmp.le.s32.totalorder 1, %s17
      %p157 = scmp.lt.s32.totalorder %s17, 3
      %p158 = pnand %p156, %p157
      %p159 = pneg %p158
      // Predicated region
      $region9: #{cmpgnn_forward.1} parent=5 // pred_check
        _
      $region10: #{cmpgnn_forward.1} parent=5 // pred_check_branch
        %161 = sbr.rel (%p158) target = $region12
      $region11: #{cmpgnn_forward.1} parent=5 // pred_region
        %s162 = ssub.s32 %s17, 1
        // Predicated region
        $region13: #{cmpgnn_forward.1} parent=11 // pred_check
          %p163 = pneg %p38
        $region14: #{cmpgnn_forward.1} parent=11 // pred_check_branch
          %165 = sbr.rel (%p163) target = $region16
        $region15: #{cmpgnn_forward.1} parent=11 // pred_region
          %s167 = ssub.s32 2048, 2048
          %168 = vsyncadd [#allocation4], %s167
          %s169 = sshll.u32 [#allocation3], 4
          %s170 = int_to_ptr.vmem [resolvable:$true] %s169
          %175 = dma.hbm_to_vmem [thread:$0]  %s0, 2048, %s170, [#allocation4], 128, 128, 8
        $region16: #{cmpgnn_forward.1} parent=11 // pred_fallthru
          _
        // Predicated region
        $region17: #{cmpgnn_forward.1} parent=11 // pred_check
          %p176 = pneg %p85
        $region18: #{cmpgnn_forward.1} parent=11 // pred_check_branch
          %178 = sbr.rel (%p176) target = $region20
        $region19: #{cmpgnn_forward.1} parent=11 // pred_region
          %s180 = ssub.s32 1024, 1024
          %181 = vsyncadd [#allocation7], %s180
          %s182 = sshll.u32 [#allocation8], 4
          %s183 = int_to_ptr.vmem [resolvable:$true] %s182
          %188 = dma.hbm_to_vmem [thread:$0]  %s2, 1024, %s183, [#allocation7], 64, 64, 4
        $region20: #{cmpgnn_forward.1} parent=11 // pred_fallthru
          _
        // Predicated region
        $region21: #{cmpgnn_forward.1} parent=11 // pred_check
          %p189 = pneg %p106
        $region22: #{cmpgnn_forward.1} parent=11 // pred_check_branch
          %191 = sbr.rel (%p189) target = $region24
        $region23: #{cmpgnn_forward.1} parent=11 // pred_region
          %s193 = ssub.s32 1024, 1024
          %194 = vsyncadd [#allocation10], %s193
          %s195 = sshll.u32 [#allocation9], 4
          %s196 = int_to_ptr.vmem [resolvable:$true] %s195
          %201 = dma.hbm_to_vmem [thread:$0]  %s3, 1024, %s196, [#allocation10], 64, 64, 4
        $region24: #{cmpgnn_forward.1} parent=11 // pred_fallthru
          _
        // Predicated region
        $region25: #{cmpgnn_forward.1} parent=11 // pred_check
          %p202 = pneg %p127
        $region26: #{cmpgnn_forward.1} parent=11 // pred_check_branch
          %204 = sbr.rel (%p202) target = $region28
        $region27: #{cmpgnn_forward.1} parent=11 // pred_region
          %s206 = ssub.s32 16, 16
          %207 = vsyncadd [#allocation10], %s206
          %s209 = sshll.u32 [#allocation11], 4
          %s210 = int_to_ptr.vmem [resolvable:$true] %s209
          %212 = dma.hbm_to_vmem [thread:$0]  %s4, 16, %s210, [#allocation10]
        $region28: #{cmpgnn_forward.1} parent=11 // pred_fallthru
          _
      $region12: #{cmpgnn_forward.1} parent=5 // pred_fallthru
        _
      %p213 = scmp.lt.s32.totalorder %s17, 2
      // Predicated region
      $region29: #{cmpgnn_forward.1} parent=5 // pred_check
        %p214 = pneg %p213
      $region30: #{cmpgnn_forward.1} parent=5 // pred_check_branch
        %216 = sbr.rel (%p214) target = $region32
      $region31: #{cmpgnn_forward.1} parent=5 // pred_region
        // Predicated region
        $region33: #{cmpgnn_forward.1} parent=31 // pred_check
          %p217 = pneg %p58
        $region34: #{cmpgnn_forward.1} parent=31 // pred_check_branch
          %219 = sbr.rel (%p217) target = $region36
        $region35: #{cmpgnn_forward.1} parent=31 // pred_region
          %s220 = sand.u32 %s17, 1
          %s221 = scalar_lea.sflag [#allocation7], %s220
          %s222 = sand.u32 %s48, 1
          %s223 = smul.addr %s222, 192
          %s224 = scalar_lea.vmem [#allocation6], %s223
          %s226 = ssub.s32 3072, 3072
          %227 = vsyncadd %s221, %s226
          %s228 = smul.addr %s17, 48
          %s229 = smul.addr %s228, 64
          %s230 = scalar_lea.hbm %s1, %s229
          %s231 = sshll.u32 %s224, 4
          %s232 = int_to_ptr.vmem [resolvable:$true] %s231
          %237 = dma.hbm_to_vmem [thread:$0]  %s230, 3072, %s232, %s221, 192, 192, 12
        $region36: #{cmpgnn_forward.1} parent=31 // pred_fallthru
          _
      $region32: #{cmpgnn_forward.1} parent=5 // pred_fallthru
        _
      %p238 = scmp.le.s32.totalorder 1, %s17
      %p239 = scmp.lt.s32.totalorder %s17, 3
      %p240 = pnand %p238, %p239
      %p241 = pneg %p240
      // Predicated region
      $region37: #{cmpgnn_forward.1} parent=5 // pred_check
        _
      $region38: #{cmpgnn_forward.1} parent=5 // pred_check_branch
        %243 = sbr.rel (%p240) target = $region40
      $region39: #{cmpgnn_forward.1} parent=5 // pred_region
        %s244 = ssub.s32 %s17, 1
        // Predicated region
        $region41: #{cmpgnn_forward.1} parent=39 // pred_check
          %p245 = pneg %p38
        $region42: #{cmpgnn_forward.1} parent=39 // pred_check_branch
          %247 = sbr.rel (%p245) target = $region44
        $region43: #{cmpgnn_forward.1} parent=39 // pred_region
          %248 = dma.done [#allocation4], 2048
        $region44: #{cmpgnn_forward.1} parent=39 // pred_fallthru
          _
        %s249 = sand.u32 %s22, 1
        %s250 = scalar_lea.sflag [#allocation7], %s249
        %s251 = sand.u32 %s51, 1
        %s252 = smul.addr %s251, 192
        %s253 = scalar_lea.vmem [#allocation6], %s252
        // Predicated region
        $region45: #{cmpgnn_forward.1} parent=39 // pred_check
          %p254 = pneg %p64
        $region46: #{cmpgnn_forward.1} parent=39 // pred_check_branch
          %256 = sbr.rel (%p254) target = $region48
        $region47: #{cmpgnn_forward.1} parent=39 // pred_region
          %257 = dma.done %s250, 3072
        $region48: #{cmpgnn_forward.1} parent=39 // pred_fallthru
          _
        // Predicated region
        $region49: #{cmpgnn_forward.1} parent=39 // pred_check
          %p258 = pneg %p85
        $region50: #{cmpgnn_forward.1} parent=39 // pred_check_branch
          %260 = sbr.rel (%p258) target = $region52
        $region51: #{cmpgnn_forward.1} parent=39 // pred_region
          %261 = dma.done [#allocation7], 1024
        $region52: #{cmpgnn_forward.1} parent=39 // pred_fallthru
          _
        // Predicated region
        $region53: #{cmpgnn_forward.1} parent=39 // pred_check
          %p262 = pneg %p106
        $region54: #{cmpgnn_forward.1} parent=39 // pred_check_branch
          %264 = sbr.rel (%p262) target = $region56
        $region55: #{cmpgnn_forward.1} parent=39 // pred_region
          %265 = dma.done [#allocation10], 1024
        $region56: #{cmpgnn_forward.1} parent=39 // pred_fallthru
          _
        // Predicated region
        $region57: #{cmpgnn_forward.1} parent=39 // pred_check
          %p266 = pneg %p127
        $region58: #{cmpgnn_forward.1} parent=39 // pred_check_branch
          %268 = sbr.rel (%p266) target = $region60
        $region59: #{cmpgnn_forward.1} parent=39 // pred_region
          %269 = dma.done [#allocation10], 16
        $region60: #{cmpgnn_forward.1} parent=39 // pred_fallthru
          _
        %p270 = pneg %p38
        %p271 = pneg %p35
        %s272 = sand.u32 %s22, 1
        %s273 = scalar_lea.sflag [#allocation7], %s272
        %s274 = sand.u32 %s51, 1
        %s275 = smul.addr %s274, 192
        %s276 = scalar_lea.vmem [#allocation6], %s275
        %p277 = pneg %p64
        %p278 = pneg %p61
        %p279 = pneg %p85
        %p280 = pneg %p82
        %p281 = pneg %p106
        %p282 = pneg %p103
        %p283 = pneg %p127
        %p284 = pneg %p124
        %p285 = pneg %p148
        %p286 = pneg %p145
        %p288 = scmp.eq.s32.totalorder %s22, 0
        // Predicated region
        $region61: #{cmpgnn_forward.1} parent=39 // pred_check
          %p289 = pneg %p288
        $region62: #{cmpgnn_forward.1} parent=39 // pred_check_branch
          %291 = sbr.rel (%p289) target = $region64
        $region63: #{cmpgnn_forward.1} parent=39 // pred_region
          %v292 = vld [vmem:[#allocation3] sm:$0xff]
          %v293 = vld [vmem:[#allocation3 + $0x8] sm:$0xff]
          %v294 = vld [vmem:[#allocation3 + $0x10] sm:$0xff]
          %v295 = vld [vmem:[#allocation3 + $0x18] sm:$0xff]
          %v296 = vld [vmem:[#allocation3 + $0x20] sm:$0xff]
          %v297 = vld [vmem:[#allocation3 + $0x28] sm:$0xff]
          %v298 = vld [vmem:[#allocation3 + $0x30] sm:$0xff]
          %v299 = vld [vmem:[#allocation3 + $0x38] sm:$0xff]
          %v300 = vld [vmem:[#allocation3 + $0x40] sm:$0xff]
          %v301 = vld [vmem:[#allocation3 + $0x48] sm:$0xff]
          %v302 = vld [vmem:[#allocation3 + $0x50] sm:$0xff]
          %v303 = vld [vmem:[#allocation3 + $0x58] sm:$0xff]
          %v304 = vld [vmem:[#allocation3 + $0x60] sm:$0xff]
          %v305 = vld [vmem:[#allocation3 + $0x68] sm:$0xff]
          %v306 = vld [vmem:[#allocation3 + $0x70] sm:$0xff]
          %v307 = vld [vmem:[#allocation3 + $0x78] sm:$0xff]
          %308 = vst [vmem:[#allocation2] sm:$0xff] %v292
          %309 = vst [vmem:[#allocation2 + $0x8] sm:$0xff] %v293
          %310 = vst [vmem:[#allocation2 + $0x10] sm:$0xff] %v294
          %311 = vst [vmem:[#allocation2 + $0x18] sm:$0xff] %v295
          %312 = vst [vmem:[#allocation2 + $0x20] sm:$0xff] %v296
          %313 = vst [vmem:[#allocation2 + $0x28] sm:$0xff] %v297
          %314 = vst [vmem:[#allocation2 + $0x30] sm:$0xff] %v298
          %315 = vst [vmem:[#allocation2 + $0x38] sm:$0xff] %v299
          %316 = vst [vmem:[#allocation2 + $0x40] sm:$0xff] %v300
          %317 = vst [vmem:[#allocation2 + $0x48] sm:$0xff] %v301
          %318 = vst [vmem:[#allocation2 + $0x50] sm:$0xff] %v302
          %319 = vst [vmem:[#allocation2 + $0x58] sm:$0xff] %v303
          %320 = vst [vmem:[#allocation2 + $0x60] sm:$0xff] %v304
          %321 = vst [vmem:[#allocation2 + $0x68] sm:$0xff] %v305
          %322 = vst [vmem:[#allocation2 + $0x70] sm:$0xff] %v306
          %323 = vst [vmem:[#allocation2 + $0x78] sm:$0xff] %v307
        $region64: #{cmpgnn_forward.1} parent=39 // pred_fallthru
          _
        %v324 = vld [vmem:[#allocation2] sm:$0xff]
        %v325 = vld [vmem:[#allocation2 + $0x8] sm:$0xff]
        %v326 = vld [vmem:[#allocation2 + $0x10] sm:$0xff]
        %v327 = vld [vmem:[#allocation2 + $0x18] sm:$0xff]
        %v328 = vld [vmem:[#allocation2 + $0x20] sm:$0xff]
        %v329 = vld [vmem:[#allocation2 + $0x28] sm:$0xff]
        %v330 = vld [vmem:[#allocation2 + $0x30] sm:$0xff]
        %v331 = vld [vmem:[#allocation2 + $0x38] sm:$0xff]
        %v332 = vld [vmem:[#allocation2 + $0x40] sm:$0xff]
        %v333 = vld [vmem:[#allocation2 + $0x48] sm:$0xff]
        %v334 = vld [vmem:[#allocation2 + $0x50] sm:$0xff]
        %v335 = vld [vmem:[#allocation2 + $0x58] sm:$0xff]
        %v336 = vld [vmem:[#allocation2 + $0x60] sm:$0xff]
        %v337 = vld [vmem:[#allocation2 + $0x68] sm:$0xff]
        %v338 = vld [vmem:[#allocation2 + $0x70] sm:$0xff]
        %v339 = vld [vmem:[#allocation2 + $0x78] sm:$0xff]
        %v340 = vpack.c.bf16 %v325, %v324
        %v341 = vpack.c.bf16 %v327, %v326
        %v342 = vpack.c.bf16 %v329, %v328
        %v343 = vpack.c.bf16 %v331, %v330
        %v344 = vpack.c.bf16 %v333, %v332
        %v345 = vpack.c.bf16 %v335, %v334
        %v346 = vpack.c.bf16 %v337, %v336
        %v347 = vpack.c.bf16 %v339, %v338
        %v348 = vld [vmem:[%s253] sm:$0xff]
        %v349 = vld [vmem:[%s253 + $0x8] sm:$0xf]
        %v350 = vld [vmem:[%s253 + $0xc] sm:$0xff]
        %v351 = vld [vmem:[%s253 + $0x14] sm:$0xf]
        %v352 = vld [vmem:[%s253 + $0x18] sm:$0xff]
        %v353 = vld [vmem:[%s253 + $0x20] sm:$0xf]
        %v354 = vld [vmem:[%s253 + $0x24] sm:$0xff]
        %v355 = vld [vmem:[%s253 + $0x2c] sm:$0xf]
        %v356 = vld [vmem:[%s253 + $0x30] sm:$0xff]
        %v357 = vld [vmem:[%s253 + $0x38] sm:$0xf]
        %v358 = vld [vmem:[%s253 + $0x3c] sm:$0xff]
        %v359 = vld [vmem:[%s253 + $0x44] sm:$0xf]
        %v360 = vld [vmem:[%s253 + $0x48] sm:$0xff]
        %v361 = vld [vmem:[%s253 + $0x50] sm:$0xf]
        %v362 = vld [vmem:[%s253 + $0x54] sm:$0xff]
        %v363 = vld [vmem:[%s253 + $0x5c] sm:$0xf]
        %v364 = vld [vmem:[%s253 + $0x60] sm:$0xff]
        %v365 = vld [vmem:[%s253 + $0x68] sm:$0xf]
        %v366 = vld [vmem:[%s253 + $0x6c] sm:$0xff]
        %v367 = vld [vmem:[%s253 + $0x74] sm:$0xf]
        %v368 = vld [vmem:[%s253 + $0x78] sm:$0xff]
        %v369 = vld [vmem:[%s253 + $0x80] sm:$0xf]
        %v370 = vld [vmem:[%s253 + $0x84] sm:$0xff]
        %v371 = vld [vmem:[%s253 + $0x8c] sm:$0xf]
        %v372 = vld [vmem:[%s253 + $0x90] sm:$0xff]
        %v373 = vld [vmem:[%s253 + $0x98] sm:$0xf]
        %v374 = vld [vmem:[%s253 + $0x9c] sm:$0xff]
        %v375 = vld [vmem:[%s253 + $0xa4] sm:$0xf]
        %v376 = vld [vmem:[%s253 + $0xa8] sm:$0xff]
        %v377 = vld [vmem:[%s253 + $0xb0] sm:$0xf]
        %v378 = vld [vmem:[%s253 + $0xb4] sm:$0xff]
        %v379 = vld [vmem:[%s253 + $0xbc] sm:$0xf]
        %v412 = vunpack.c.l.b16 %v348
        %v413 = vunpack.c.h.b16 %v348
        %v414 = vunpack.c.l.b16 %v349
        %v415 = vunpack.c.l.b16 %v350
        %v416 = vunpack.c.h.b16 %v350
        %v417 = vunpack.c.l.b16 %v351
        %v418 = vunpack.c.l.b16 %v352
        %v419 = vunpack.c.h.b16 %v352
        %v420 = vunpack.c.l.b16 %v353
        %v421 = vunpack.c.l.b16 %v354
        %v422 = vunpack.c.h.b16 %v354
        %v423 = vunpack.c.l.b16 %v355
        %v424 = vunpack.c.l.b16 %v356
        %v425 = vunpack.c.h.b16 %v356
        %v426 = vunpack.c.l.b16 %v357
        %v427 = vunpack.c.l.b16 %v358
        %v428 = vunpack.c.h.b16 %v358
        %v429 = vunpack.c.l.b16 %v359
        %v430 = vunpack.c.l.b16 %v360
        %v431 = vunpack.c.h.b16 %v360
        %v432 = vunpack.c.l.b16 %v361
        %v433 = vunpack.c.l.b16 %v362
        %v434 = vunpack.c.h.b16 %v362
        %v435 = vunpack.c.l.b16 %v363
        %v436 = vunpack.c.l.b16 %v364
        %v437 = vunpack.c.h.b16 %v364
        %v438 = vunpack.c.l.b16 %v365
        %v439 = vunpack.c.l.b16 %v366
        %v440 = vunpack.c.h.b16 %v366
        %v441 = vunpack.c.l.b16 %v367
        %v442 = vunpack.c.l.b16 %v368
        %v443 = vunpack.c.h.b16 %v368
        %v444 = vunpack.c.l.b16 %v369
        %v445 = vunpack.c.l.b16 %v370
        %v446 = vunpack.c.h.b16 %v370
        %v447 = vunpack.c.l.b16 %v371
        %v448 = vunpack.c.l.b16 %v372
        %v449 = vunpack.c.h.b16 %v372
        %v450 = vunpack.c.l.b16 %v373
        %v451 = vunpack.c.l.b16 %v374
        %v452 = vunpack.c.h.b16 %v374
        %v453 = vunpack.c.l.b16 %v375
        %v454 = vunpack.c.l.b16 %v376
        %v455 = vunpack.c.h.b16 %v376
        %v456 = vunpack.c.l.b16 %v377
        %v457 = vunpack.c.l.b16 %v378
        %v458 = vunpack.c.h.b16 %v378
        %v459 = vunpack.c.l.b16 %v379
        %v460 = vpack.c.b16 %v415, %v412
        %v461 = vpack.c.b16 %v416, %v413
        %v462 = vpack.c.b16 %v417, %v414
        %v463 = vpack.c.b16 %v421, %v418
        %v464 = vpack.c.b16 %v422, %v419
        %v465 = vpack.c.b16 %v423, %v420
        %v466 = vpack.c.b16 %v427, %v424
        %v467 = vpack.c.b16 %v428, %v425
        %v468 = vpack.c.b16 %v429, %v426
        %v469 = vpack.c.b16 %v433, %v430
        %v470 = vpack.c.b16 %v434, %v431
        %v471 = vpack.c.b16 %v435, %v432
        %v472 = vpack.c.b16 %v439, %v436
        %v473 = vpack.c.b16 %v440, %v437
        %v474 = vpack.c.b16 %v441, %v438
        %v475 = vpack.c.b16 %v445, %v442
        %v476 = vpack.c.b16 %v446, %v443
        %v477 = vpack.c.b16 %v447, %v444
        %v478 = vpack.c.b16 %v451, %v448
        %v479 = vpack.c.b16 %v452, %v449
        %v480 = vpack.c.b16 %v453, %v450
        %v481 = vpack.c.b16 %v457, %v454
        %v482 = vpack.c.b16 %v458, %v455
        %v483 = vpack.c.b16 %v459, %v456
        %508 = vmatprep.subr.bf16.mxu0 %v461
        %509 = vmatpush1.bf16.msra.mxu0 %v460
        %510 = vmatprep.subr.bf16.mxu0 %v464
        %511 = vmatpush1.bf16.msra.mxu0 %v463
        %512 = vmatprep.subr.bf16.mxu0 %v467
        %513 = vmatpush1.bf16.msra.mxu0 %v466
        %514 = vmatprep.subr.bf16.mxu0 %v470
        %515 = vmatpush1.bf16.msra.mxu0 %v469
        %516 = vmatprep.subr.bf16.mxu0 %v473
        %517 = vmatpush1.bf16.msra.mxu0 %v472
        %518 = vmatprep.subr.bf16.mxu0 %v476
        %519 = vmatpush1.bf16.msra.mxu0 %v475
        %520 = vmatprep.subr.bf16.mxu0 %v479
        %521 = vmatpush1.bf16.msra.mxu0 %v478
        %522 = vmatprep.subr.bf16.mxu0 %v482
        %523 = vmatpush1.bf16.msra.mxu0 %v481
        %524 = vmatprep.subr.bf16.mxu0 0
        %525 = vmatpush1.bf16.msra.mxu0 0
        %526 = vmatprep.subr.bf16.mxu0 0
        %527 = vmatpush1.bf16.msra.mxu0 0
        %528 = vmatprep.subr.bf16.mxu0 0
        %529 = vmatpush1.bf16.msra.mxu0 0
        %530 = vmatprep.subr.bf16.mxu0 0
        %531 = vmatpush1.bf16.msra.mxu0 0
        %532 = vmatprep.subr.bf16.mxu0 0
        %533 = vmatpush1.bf16.msra.mxu0 0
        %534 = vmatprep.subr.bf16.mxu0 0
        %535 = vmatpush1.bf16.msra.mxu0 0
        %536 = vmatprep.subr.bf16.mxu0 0
        %537 = vmatpush1.bf16.msra.mxu0 0
        %538 = vmatprep.subr.bf16.mxu0 0
        %539 = vmatpush1.bf16.msra.mxu0 0
        %540 = vmatprep.mubr.bf16.mxu0 0
        %541 = vmatmul.mubr.bf16.gmra.mrb[0].mxu0 %v340
        %v542 = vpop.f32.mrb[0].mxu0
        %v543 = vadd.f32 0.0, %v542
        %v544 = vpop.f32.mrb[0].mxu0
        %v545 = vadd.f32 0.0, %v544
        %v546 = vpop.f32.mrb[0].mxu0
        %v547 = vadd.f32 0.0, %v546
        %v548 = vpop.f32.mrb[0].mxu0
        %v549 = vadd.f32 0.0, %v548
        %550 = vmatprep.mubr.bf16.mxu0 0
        %551 = vmatmul.mubr.bf16.gmra.mrb[0].mxu0 %v341
        %v552 = vpop.f32.mrb[0].mxu0
        %v553 = vadd.f32 0.0, %v552
        %v554 = vpop.f32.mrb[0].mxu0
        %v555 = vadd.f32 0.0, %v554
        %v556 = vpop.f32.mrb[0].mxu0
        %v557 = vadd.f32 0.0, %v556
        %v558 = vpop.f32.mrb[0].mxu0
        %v559 = vadd.f32 0.0, %v558
        %560 = vmatprep.mubr.bf16.mxu0 0
        %561 = vmatmul.mubr.bf16.gmra.mrb[0].mxu0 %v342
        %v562 = vpop.f32.mrb[0].mxu0
        %v563 = vadd.f32 0.0, %v562
        %v564 = vpop.f32.mrb[0].mxu0
        %v565 = vadd.f32 0.0, %v564
        %v566 = vpop.f32.mrb[0].mxu0
        %v567 = vadd.f32 0.0, %v566
        %v568 = vpop.f32.mrb[0].mxu0
        %v569 = vadd.f32 0.0, %v568
        %570 = vmatprep.mubr.bf16.mxu0 0
        %571 = vmatmul.mubr.bf16.gmra.mrb[0].mxu0 %v343
        %v572 = vpop.f32.mrb[0].mxu0
        %v573 = vadd.f32 0.0, %v572
        %v574 = vpop.f32.mrb[0].mxu0
        %v575 = vadd.f32 0.0, %v574
        %v576 = vpop.f32.mrb[0].mxu0
        %v577 = vadd.f32 0.0, %v576
        %v578 = vpop.f32.mrb[0].mxu0
        %v579 = vadd.f32 0.0, %v578
        %580 = vmatprep.mubr.bf16.mxu0 0
        %581 = vmatmul.mubr.bf16.gmra.mrb[0].mxu0 %v344
        %v582 = vpop.f32.mrb[0].mxu0
        %v583 = vadd.f32 0.0, %v582
        %v584 = vpop.f32.mrb[0].mxu0
        %v585 = vadd.f32 0.0, %v584
        %v586 = vpop.f32.mrb[0].mxu0
        %v587 = vadd.f32 0.0, %v586
        %v588 = vpop.f32.mrb[0].mxu0
        %v589 = vadd.f32 0.0, %v588
        %590 = vmatprep.mubr.bf16.mxu0 0
        %591 = vmatmul.mubr.bf16.gmra.mrb[0].mxu0 %v345
        %v592 = vpop.f32.mrb[0].mxu0
        %v593 = vadd.f32 0.0, %v592
        %v594 = vpop.f32.mrb[0].mxu0
        %v595 = vadd.f32 0.0, %v594
        %v596 = vpop.f32.mrb[0].mxu0
        %v597 = vadd.f32 0.0, %v596
        %v598 = vpop.f32.mrb[0].mxu0
        %v599 = vadd.f32 0.0, %v598
        %600 = vmatprep.mubr.bf16.mxu0 0
        %601 = vmatmul.mubr.bf16.gmra.mrb[0].mxu0 %v346
        %v602 = vpop.f32.mrb[0].mxu0
        %v603 = vadd.f32 0.0, %v602
        %v604 = vpop.f32.mrb[0].mxu0
        %v605 = vadd.f32 0.0, %v604
        %v606 = vpop.f32.mrb[0].mxu0
        %v607 = vadd.f32 0.0, %v606
        %v608 = vpop.f32.mrb[0].mxu0
        %v609 = vadd.f32 0.0, %v608
        %610 = vmatprep.mubr.bf16.mxu0 0
        %611 = vmatmul.mubr.bf16.gmra.mrb[0].mxu0 %v347
        %v612 = vpop.f32.mrb[0].mxu0
        %v613 = vadd.f32 0.0, %v612
        %v614 = vpop.f32.mrb[0].mxu0
        %v615 = vadd.f32 0.0, %v614
        %v616 = vpop.f32.mrb[0].mxu0
        %v617 = vadd.f32 0.0, %v616
        %v618 = vpop.f32.mrb[0].mxu0
        %v619 = vadd.f32 0.0, %v618
        %620 = vdwg.mxu0
        %621 = vmatprep.subr.bf16.mxu0 0
        %622 = vmatpush1.bf16.msra.mxu0 %v462
        %623 = vmatprep.subr.bf16.mxu0 0
        %624 = vmatpush1.bf16.msra.mxu0 %v465
        %625 = vmatprep.subr.bf16.mxu0 0
        %626 = vmatpush1.bf16.msra.mxu0 %v468
        %627 = vmatprep.subr.bf16.mxu0 0
        %628 = vmatpush1.bf16.msra.mxu0 %v471
        %629 = vmatprep.subr.bf16.mxu0 0
        %630 = vmatpush1.bf16.msra.mxu0 %v474
        %631 = vmatprep.subr.bf16.mxu0 0
        %632 = vmatpush1.bf16.msra.mxu0 %v477
        %633 = vmatprep.subr.bf16.mxu0 0
        %634 = vmatpush1.bf16.msra.mxu0 %v480
        %635 = vmatprep.subr.bf16.mxu0 0
        %636 = vmatpush1.bf16.msra.mxu0 %v483
        %637 = vmatprep.subr.bf16.mxu0 0
        %638 = vmatpush1.bf16.msra.mxu0 0
        %639 = vmatprep.subr.bf16.mxu0 0
        %640 = vmatpush1.bf16.msra.mxu0 0
        %641 = vmatprep.subr.bf16.mxu0 0
        %642 = vmatpush1.bf16.msra.mxu0 0
        %643 = vmatprep.subr.bf16.mxu0 0
        %644 = vmatpush1.bf16.msra.mxu0 0
        %645 = vmatprep.subr.bf16.mxu0 0
        %646 = vmatpush1.bf16.msra.mxu0 0
        %647 = vmatprep.subr.bf16.mxu0 0
        %648 = vmatpush1.bf16.msra.mxu0 0
        %649 = vmatprep.subr.bf16.mxu0 0
        %650 = vmatpush1.bf16.msra.mxu0 0
        %651 = vmatprep.subr.bf16.mxu0 0
        %652 = vmatpush1.bf16.msra.mxu0 0
        %653 = vmatprep.mubr.bf16.mxu0 0
        %654 = vmatmul.mubr.bf16.gmra.mrb[0].mxu0 %v340
        %v655 = vpop.f32.mrb[0].mxu0
        %v656 = vadd.f32 0.0, %v655
        %v657 = vpop.f32.mrb[0].mxu0
        %v658 = vpop.f32.mrb[0].mxu0
        %v659 = vadd.f32 0.0, %v658
        %v660 = vpop.f32.mrb[0].mxu0
        %661 = vmatprep.mubr.bf16.mxu0 0
        %662 = vmatmul.mubr.bf16.gmra.mrb[0].mxu0 %v341
        %v663 = vpop.f32.mrb[0].mxu0
        %v664 = vadd.f32 0.0, %v663
        %v665 = vpop.f32.mrb[0].mxu0
        %v666 = vpop.f32.mrb[0].mxu0
        %v667 = vadd.f32 0.0, %v666
        %v668 = vpop.f32.mrb[0].mxu0
        %669 = vmatprep.mubr.bf16.mxu0 0
        %670 = vmatmul.mubr.bf16.gmra.mrb[0].mxu0 %v342
        %v671 = vpop.f32.mrb[0].mxu0
        %v672 = vadd.f32 0.0, %v671
        %v673 = vpop.f32.mrb[0].mxu0
        %v674 = vpop.f32.mrb[0].mxu0
        %v675 = vadd.f32 0.0, %v674
        %v676 = vpop.f32.mrb[0].mxu0
        %677 = vmatprep.mubr.bf16.mxu0 0
        %678 = vmatmul.mubr.bf16.gmra.mrb[0].mxu0 %v343
        %v679 = vpop.f32.mrb[0].mxu0
        %v680 = vadd.f32 0.0, %v679
        %v681 = vpop.f32.mrb[0].mxu0
        %v682 = vpop.f32.mrb[0].mxu0
        %v683 = vadd.f32 0.0, %v682
        %v684 = vpop.f32.mrb[0].mxu0
        %685 = vmatprep.mubr.bf16.mxu0 0
        %686 = vmatmul.mubr.bf16.gmra.mrb[0].mxu0 %v344
        %v687 = vpop.f32.mrb[0].mxu0
        %v688 = vadd.f32 0.0, %v687
        %v689 = vpop.f32.mrb[0].mxu0
        %v690 = vpop.f32.mrb[0].mxu0
        %v691 = vadd.f32 0.0, %v690
        %v692 = vpop.f32.mrb[0].mxu0
        %693 = vmatprep.mubr.bf16.mxu0 0
        %694 = vmatmul.mubr.bf16.gmra.mrb[0].mxu0 %v345
        %v695 = vpop.f32.mrb[0].mxu0
        %v696 = vadd.f32 0.0, %v695
        %v697 = vpop.f32.mrb[0].mxu0
        %v698 = vpop.f32.mrb[0].mxu0
        %v699 = vadd.f32 0.0, %v698
        %v700 = vpop.f32.mrb[0].mxu0
        %701 = vmatprep.mubr.bf16.mxu0 0
        %702 = vmatmul.mubr.bf16.gmra.mrb[0].mxu0 %v346
        %v703 = vpop.f32.mrb[0].mxu0
        %v704 = vadd.f32 0.0, %v703
        %v705 = vpop.f32.mrb[0].mxu0
        %v706 = vpop.f32.mrb[0].mxu0
        %v707 = vadd.f32 0.0, %v706
        %v708 = vpop.f32.mrb[0].mxu0
        %709 = vmatprep.mubr.bf16.mxu0 0
        %710 = vmatmul.mubr.bf16.gmra.mrb[0].mxu0 %v347
        %v711 = vpop.f32.mrb[0].mxu0
        %v712 = vadd.f32 0.0, %v711
        %v713 = vpop.f32.mrb[0].mxu0
        %v714 = vpop.f32.mrb[0].mxu0
        %v715 = vadd.f32 0.0, %v714
        %v716 = vpop.f32.mrb[0].mxu0
        %717 = vdwg.mxu0
        %v718 = vmax.f32 %v656, 0.0
        %v719 = vmax.f32 %v659, 0.0
        %v720 = vmax.f32 %v664, 0.0
        %v721 = vmax.f32 %v667, 0.0
        %v722 = vmax.f32 %v672, 0.0
        %v723 = vmax.f32 %v675, 0.0
        %v724 = vmax.f32 %v680, 0.0
        %v725 = vmax.f32 %v683, 0.0
        %v726 = vmax.f32 %v688, 0.0
        %v727 = vmax.f32 %v691, 0.0
        %v728 = vmax.f32 %v696, 0.0
        %v729 = vmax.f32 %v699, 0.0
        %v730 = vmax.f32 %v704, 0.0
        %v731 = vmax.f32 %v707, 0.0
        %v732 = vmax.f32 %v712, 0.0
        %v733 = vmax.f32 %v715, 0.0
        %v734 = vpack.c.bf16 %v547, %v543
        %v735 = vpack.c.bf16 %v557, %v553
        %v736 = vpack.c.bf16 %v567, %v563
        %v737 = vpack.c.bf16 %v577, %v573
        %v738 = vpack.c.bf16 %v587, %v583
        %v739 = vpack.c.bf16 %v597, %v593
        %v740 = vpack.c.bf16 %v607, %v603
        %v741 = vpack.c.bf16 %v617, %v613
        %v742 = vpack.c.bf16 %v549, %v545
        %v743 = vpack.c.bf16 %v559, %v555
        %v744 = vpack.c.bf16 %v569, %v565
        %v745 = vpack.c.bf16 %v579, %v575
        %v746 = vpack.c.bf16 %v589, %v585
        %v747 = vpack.c.bf16 %v599, %v595
        %v748 = vpack.c.bf16 %v609, %v605
        %v749 = vpack.c.bf16 %v619, %v615
        %750 = vmatprep.subr.bf16.mxu0 0
        %751 = vmatpush1.bf16.xpose.msra.mxu0 %v734
        %752 = vmatprep.subr.bf16.mxu0 0
        %753 = vmatpush1.bf16.xpose.msra.mxu0 %v735
        %754 = vmatprep.subr.bf16.mxu0 0
        %755 = vmatpush1.bf16.xpose.msra.mxu0 %v736
        %756 = vmatprep.subr.bf16.mxu0 0
        %757 = vmatpush1.bf16.xpose.msra.mxu0 %v737
        %758 = vmatprep.subr.bf16.mxu0 0
        %759 = vmatpush1.bf16.xpose.msra.mxu0 %v738
        %760 = vmatprep.subr.bf16.mxu0 0
        %761 = vmatpush1.bf16.xpose.msra.mxu0 %v739
        %762 = vmatprep.subr.bf16.mxu0 0
        %763 = vmatpush1.bf16.xpose.msra.mxu0 %v740
        %764 = vmatprep.subr.bf16.mxu0 0
        %765 = vmatpush1.bf16.xpose.msra.mxu0 %v741
        %766 = vmatprep.subr.bf16.mxu0 0
        %767 = vmatpush1.bf16.xpose.msra.mxu0 0
        %768 = vmatprep.subr.bf16.mxu0 0
        %769 = vmatpush1.bf16.xpose.msra.mxu0 0
        %770 = vmatprep.subr.bf16.mxu0 0
        %771 = vmatpush1.bf16.xpose.msra.mxu0 0
        %772 = vmatprep.subr.bf16.mxu0 0
        %773 = vmatpush1.bf16.xpose.msra.mxu0 0
        %774 = vmatprep.subr.bf16.mxu0 0
        %775 = vmatpush1.bf16.xpose.msra.mxu0 0
        %776 = vmatprep.subr.bf16.mxu0 0
        %777 = vmatpush1.bf16.xpose.msra.mxu0 0
        %778 = vmatprep.subr.bf16.mxu0 0
        %779 = vmatpush1.bf16.xpose.msra.mxu0 0
        %780 = vmatprep.subr.bf16.mxu0 0
        %781 = vmatpush1.bf16.xpose.msra.mxu0 0
        %782 = vmatprep.mubr.bf16.mxu0 0
        %783 = vmatmul.mubr.bf16.gmra.mrb[0].mxu0 %v742
        %v784 = vpop.f32.mrb[0].mxu0
        %v785 = vadd.f32 0.0, %v784
        %v786 = vpop.f32.mrb[0].mxu0
        %v787 = vpop.f32.mrb[0].mxu0
        %v788 = vadd.f32 0.0, %v787
        %v789 = vpop.f32.mrb[0].mxu0
        %790 = vmatprep.mubr.bf16.mxu0 0
        %791 = vmatmul.mubr.bf16.gmra.mrb[0].mxu0 %v743
        %v792 = vpop.f32.mrb[0].mxu0
        %v793 = vadd.f32 0.0, %v792
        %v794 = vpop.f32.mrb[0].mxu0
        %v795 = vpop.f32.mrb[0].mxu0
        %v796 = vadd.f32 0.0, %v795
        %v797 = vpop.f32.mrb[0].mxu0
        %798 = vmatprep.mubr.bf16.mxu0 0
        %799 = vmatmul.mubr.bf16.gmra.mrb[0].mxu0 %v744
        %v800 = vpop.f32.mrb[0].mxu0
        %v801 = vadd.f32 0.0, %v800
        %v802 = vpop.f32.mrb[0].mxu0
        %v803 = vpop.f32.mrb[0].mxu0
        %v804 = vadd.f32 0.0, %v803
        %v805 = vpop.f32.mrb[0].mxu0
        %806 = vmatprep.mubr.bf16.mxu0 0
        %807 = vmatmul.mubr.bf16.gmra.mrb[0].mxu0 %v745
        %v808 = vpop.f32.mrb[0].mxu0
        %v809 = vadd.f32 0.0, %v808
        %v810 = vpop.f32.mrb[0].mxu0
        %v811 = vpop.f32.mrb[0].mxu0
        %v812 = vadd.f32 0.0, %v811
        %v813 = vpop.f32.mrb[0].mxu0
        %814 = vmatprep.mubr.bf16.mxu0 0
        %815 = vmatmul.mubr.bf16.gmra.mrb[0].mxu0 %v746
        %v816 = vpop.f32.mrb[0].mxu0
        %v817 = vadd.f32 0.0, %v816
        %v818 = vpop.f32.mrb[0].mxu0
        %v819 = vpop.f32.mrb[0].mxu0
        %v820 = vadd.f32 0.0, %v819
        %v821 = vpop.f32.mrb[0].mxu0
        %822 = vmatprep.mubr.bf16.mxu0 0
        %823 = vmatmul.mubr.bf16.gmra.mrb[0].mxu0 %v747
        %v824 = vpop.f32.mrb[0].mxu0
        %v825 = vadd.f32 0.0, %v824
        %v826 = vpop.f32.mrb[0].mxu0
        %v827 = vpop.f32.mrb[0].mxu0
        %v828 = vadd.f32 0.0, %v827
        %v829 = vpop.f32.mrb[0].mxu0
        %830 = vmatprep.mubr.bf16.mxu0 0
        %831 = vmatmul.mubr.bf16.gmra.mrb[0].mxu0 %v748
        %v832 = vpop.f32.mrb[0].mxu0
        %v833 = vadd.f32 0.0, %v832
        %v834 = vpop.f32.mrb[0].mxu0
        %v835 = vpop.f32.mrb[0].mxu0
        %v836 = vadd.f32 0.0, %v835
        %v837 = vpop.f32.mrb[0].mxu0
        %838 = vmatprep.mubr.bf16.mxu0 0
        %839 = vmatmul.mubr.bf16.gmra.mrb[0].mxu0 %v749
        %v840 = vpop.f32.mrb[0].mxu0
        %v841 = vadd.f32 0.0, %v840
        %v842 = vpop.f32.mrb[0].mxu0
        %v843 = vpop.f32.mrb[0].mxu0
        %v844 = vadd.f32 0.0, %v843
        %v845 = vpop.f32.mrb[0].mxu0
        %846 = vdwg.mxu0
        %v847 = vsub.f32 0.0, %v785
        %v848 = vsub.f32 0.0, %v788
        %v849 = vsub.f32 0.0, %v793
        %v850 = vsub.f32 0.0, %v796
        %v851 = vsub.f32 0.0, %v801
        %v852 = vsub.f32 0.0, %v804
        %v853 = vsub.f32 0.0, %v809
        %v854 = vsub.f32 0.0, %v812
        %v855 = vsub.f32 0.0, %v817
        %v856 = vsub.f32 0.0, %v820
        %v857 = vsub.f32 0.0, %v825
        %v858 = vsub.f32 0.0, %v828
        %v859 = vsub.f32 0.0, %v833
        %v860 = vsub.f32 0.0, %v836
        %v861 = vsub.f32 0.0, %v841
        %v862 = vsub.f32 0.0, %v844
        %v863 = vxor.u32 %v847, 2147483648
        %v864 = vxor.u32 %v848, 2147483648
        %v865 = vxor.u32 %v849, 2147483648
        %v866 = vxor.u32 %v850, 2147483648
        %v867 = vxor.u32 %v851, 2147483648
        %v868 = vxor.u32 %v852, 2147483648
        %v869 = vxor.u32 %v853, 2147483648
        %v870 = vxor.u32 %v854, 2147483648
        %v871 = vxor.u32 %v855, 2147483648
        %v872 = vxor.u32 %v856, 2147483648
        %v873 = vxor.u32 %v857, 2147483648
        %v874 = vxor.u32 %v858, 2147483648
        %v875 = vxor.u32 %v859, 2147483648
        %v876 = vxor.u32 %v860, 2147483648
        %v877 = vxor.u32 %v861, 2147483648
        %v878 = vxor.u32 %v862, 2147483648
        %v879 = vmul.f32 %v863, 1.442695
        %v880 = vpow.pop %v879
        %v881 = vmul.f32 %v864, 1.442695
        %v882 = vpow.pop %v881
        %v883 = vmul.f32 %v865, 1.442695
        %v884 = vpow.pop %v883
        %v885 = vmul.f32 %v866, 1.442695
        %v886 = vpow.pop %v885
        %v887 = vmul.f32 %v867, 1.442695
        %v888 = vpow.pop %v887
        %v889 = vmul.f32 %v868, 1.442695
        %v890 = vpow.pop %v889
        %v891 = vmul.f32 %v869, 1.442695
        %v892 = vpow.pop %v891
        %v893 = vmul.f32 %v870, 1.442695
        %v894 = vpow.pop %v893
        %v895 = vmul.f32 %v871, 1.442695
        %v896 = vpow.pop %v895
        %v897 = vmul.f32 %v872, 1.442695
        %v898 = vpow.pop %v897
        %v899 = vmul.f32 %v873, 1.442695
        %v900 = vpow.pop %v899
        %v901 = vmul.f32 %v874, 1.442695
        %v902 = vpow.pop %v901
        %v903 = vmul.f32 %v875, 1.442695
        %v904 = vpow.pop %v903
        %v905 = vmul.f32 %v876, 1.442695
        %v906 = vpow.pop %v905
        %v907 = vmul.f32 %v877, 1.442695
        %v908 = vpow.pop %v907
        %v909 = vmul.f32 %v878, 1.442695
        %v910 = vpow.pop %v909
        %v911 = vadd.f32 %v880, 1.0
        %v912 = vadd.f32 %v882, 1.0
        %v913 = vadd.f32 %v884, 1.0
        %v914 = vadd.f32 %v886, 1.0
        %v915 = vadd.f32 %v888, 1.0
        %v916 = vadd.f32 %v890, 1.0
        %v917 = vadd.f32 %v892, 1.0
        %v918 = vadd.f32 %v894, 1.0
        %v919 = vadd.f32 %v896, 1.0
        %v920 = vadd.f32 %v898, 1.0
        %v921 = vadd.f32 %v900, 1.0
        %v922 = vadd.f32 %v902, 1.0
        %v923 = vadd.f32 %v904, 1.0
        %v924 = vadd.f32 %v906, 1.0
        %v925 = vadd.f32 %v908, 1.0
        %v926 = vadd.f32 %v910, 1.0
        %v927 = vrcp.pop %v911
        %v928 = vmul.f32 1.0, %v927
        %v929 = vrcp.pop %v912
        %v930 = vmul.f32 1.0, %v929
        %v931 = vrcp.pop %v913
        %v932 = vmul.f32 1.0, %v931
        %v933 = vrcp.pop %v914
        %v934 = vmul.f32 1.0, %v933
        %v935 = vrcp.pop %v915
        %v936 = vmul.f32 1.0, %v935
        %v937 = vrcp.pop %v916
        %v938 = vmul.f32 1.0, %v937
        %v939 = vrcp.pop %v917
        %v940 = vmul.f32 1.0, %v939
        %v941 = vrcp.pop %v918
        %v942 = vmul.f32 1.0, %v941
        %v943 = vrcp.pop %v919
        %v944 = vmul.f32 1.0, %v943
        %v945 = vrcp.pop %v920
        %v946 = vmul.f32 1.0, %v945
        %v947 = vrcp.pop %v921
        %v948 = vmul.f32 1.0, %v947
        %v949 = vrcp.pop %v922
        %v950 = vmul.f32 1.0, %v949
        %v951 = vrcp.pop %v923
        %v952 = vmul.f32 1.0, %v951
        %v953 = vrcp.pop %v924
        %v954 = vmul.f32 1.0, %v953
        %v955 = vrcp.pop %v925
        %v956 = vmul.f32 1.0, %v955
        %v957 = vrcp.pop %v926
        %v958 = vmul.f32 1.0, %v957
        %v959 = vld [vmem:[#allocation8] sm:$0xf]
        %v960 = vld [vmem:[#allocation8 + $0x4] sm:$0xf]
        %v961 = vld [vmem:[#allocation8 + $0x8] sm:$0xf]
        %v962 = vld [vmem:[#allocation8 + $0xc] sm:$0xf]
        %v963 = vld [vmem:[#allocation8 + $0x10] sm:$0xf]
        %v964 = vld [vmem:[#allocation8 + $0x14] sm:$0xf]
        %v965 = vld [vmem:[#allocation8 + $0x18] sm:$0xf]
        %v966 = vld [vmem:[#allocation8 + $0x1c] sm:$0xf]
        %v967 = vld [vmem:[#allocation8 + $0x20] sm:$0xf]
        %v968 = vld [vmem:[#allocation8 + $0x24] sm:$0xf]
        %v969 = vld [vmem:[#allocation8 + $0x28] sm:$0xf]
        %v970 = vld [vmem:[#allocation8 + $0x2c] sm:$0xf]
        %v971 = vld [vmem:[#allocation8 + $0x30] sm:$0xf]
        %v972 = vld [vmem:[#allocation8 + $0x34] sm:$0xf]
        %v973 = vld [vmem:[#allocation8 + $0x38] sm:$0xf]
        %v974 = vld [vmem:[#allocation8 + $0x3c] sm:$0xf]
        %v975 = vpack.c.bf16 %v930, %v928
        %v976 = vpack.c.bf16 %v934, %v932
        %v977 = vpack.c.bf16 %v938, %v936
        %v978 = vpack.c.bf16 %v942, %v940
        %v979 = vpack.c.bf16 %v946, %v944
        %v980 = vpack.c.bf16 %v950, %v948
        %v981 = vpack.c.bf16 %v954, %v952
        %v982 = vpack.c.bf16 %v958, %v956
        %v991 = vunpack.c.l.b16 %v975
        %v992 = vunpack.c.h.b16 %v975
        %v993 = vunpack.c.l.b16 %v976
        %v994 = vunpack.c.h.b16 %v976
        %v995 = vunpack.c.l.b16 %v977
        %v996 = vunpack.c.h.b16 %v977
        %v997 = vunpack.c.l.b16 %v978
        %v998 = vunpack.c.h.b16 %v978
        %v999 = vunpack.c.l.b16 %v979
        %v1000 = vunpack.c.h.b16 %v979
        %v1001 = vunpack.c.l.b16 %v980
        %v1002 = vunpack.c.h.b16 %v980
        %v1003 = vunpack.c.l.b16 %v981
        %v1004 = vunpack.c.h.b16 %v981
        %v1005 = vunpack.c.l.b16 %v982
        %v1006 = vunpack.c.h.b16 %v982
        %v1007 = vpack.c.b16 %v991, %v991
        %v1008 = vpack.c.b16 %v992, %v992
        %v1009 = vpack.c.b16 %v993, %v993
        %v1010 = vpack.c.b16 %v994, %v994
        %v1011 = vpack.c.b16 %v995, %v995
        %v1012 = vpack.c.b16 %v996, %v996
        %v1013 = vpack.c.b16 %v997, %v997
        %v1014 = vpack.c.b16 %v998, %v998
        %v1015 = vpack.c.b16 %v999, %v999
        %v1016 = vpack.c.b16 %v1000, %v1000
        %v1017 = vpack.c.b16 %v1001, %v1001
        %v1018 = vpack.c.b16 %v1002, %v1002
        %v1019 = vpack.c.b16 %v1003, %v1003
        %v1020 = vpack.c.b16 %v1004, %v1004
        %v1021 = vpack.c.b16 %v1005, %v1005
        %v1022 = vpack.c.b16 %v1006, %v1006
        %v1039 = vmul.bf16 %v959, %v1007
        %v1040 = vmul.bf16 %v960, %v1008
        %v1041 = vmul.bf16 %v961, %v1009
        %v1042 = vmul.bf16 %v962, %v1010
        %v1043 = vmul.bf16 %v963, %v1011
        %v1044 = vmul.bf16 %v964, %v1012
        %v1045 = vmul.bf16 %v965, %v1013
        %v1046 = vmul.bf16 %v966, %v1014
        %v1047 = vmul.bf16 %v967, %v1015
        %v1048 = vmul.bf16 %v968, %v1016
        %v1049 = vmul.bf16 %v969, %v1017
        %v1050 = vmul.bf16 %v970, %v1018
        %v1051 = vmul.bf16 %v971, %v1019
        %v1052 = vmul.bf16 %v972, %v1020
        %v1053 = vmul.bf16 %v973, %v1021
        %v1054 = vmul.bf16 %v974, %v1022
        %v1055 = vadd.f32 %v543, %v545
        %v1056 = vadd.f32 %v547, %v549
        %v1057 = vadd.f32 %v553, %v555
        %v1058 = vadd.f32 %v557, %v559
        %v1059 = vadd.f32 %v563, %v565
        %v1060 = vadd.f32 %v567, %v569
        %v1061 = vadd.f32 %v573, %v575
        %v1062 = vadd.f32 %v577, %v579
        %v1063 = vadd.f32 %v583, %v585
        %v1064 = vadd.f32 %v587, %v589
        %v1065 = vadd.f32 %v593, %v595
        %v1066 = vadd.f32 %v597, %v599
        %v1067 = vadd.f32 %v603, %v605
        %v1068 = vadd.f32 %v607, %v609
        %v1069 = vadd.f32 %v613, %v615
        %v1070 = vadd.f32 %v617, %v619
        %v1071 = vpack.c.bf16 %v1056, %v1055
        %v1072 = vpack.c.bf16 %v1058, %v1057
        %v1073 = vpack.c.bf16 %v1060, %v1059
        %v1074 = vpack.c.bf16 %v1062, %v1061
        %v1075 = vpack.c.bf16 %v1064, %v1063
        %v1076 = vpack.c.bf16 %v1066, %v1065
        %v1077 = vpack.c.bf16 %v1068, %v1067
        %v1078 = vpack.c.bf16 %v1070, %v1069
        %v1095 = vunpack.c.l.b16 %v1039
        %v1096 = vunpack.c.l.b16 %v1040
        %v1097 = vunpack.c.l.b16 %v1041
        %v1098 = vunpack.c.l.b16 %v1042
        %v1099 = vunpack.c.l.b16 %v1043
        %v1100 = vunpack.c.l.b16 %v1044
        %v1101 = vunpack.c.l.b16 %v1045
        %v1102 = vunpack.c.l.b16 %v1046
        %v1103 = vunpack.c.l.b16 %v1047
        %v1104 = vunpack.c.l.b16 %v1048
        %v1105 = vunpack.c.l.b16 %v1049
        %v1106 = vunpack.c.l.b16 %v1050
        %v1107 = vunpack.c.l.b16 %v1051
        %v1108 = vunpack.c.l.b16 %v1052
        %v1109 = vunpack.c.l.b16 %v1053
        %v1110 = vunpack.c.l.b16 %v1054
        %v1111 = vpack.c.b16 %v1096, %v1095
        %v1112 = vpack.c.b16 %v1098, %v1097
        %v1113 = vpack.c.b16 %v1100, %v1099
        %v1114 = vpack.c.b16 %v1102, %v1101
        %v1115 = vpack.c.b16 %v1104, %v1103
        %v1116 = vpack.c.b16 %v1106, %v1105
        %v1117 = vpack.c.b16 %v1108, %v1107
        %v1118 = vpack.c.b16 %v1110, %v1109
        %1127 = vmatprep.subr.bf16.mxu0 0
        %1128 = vmatpush1.bf16.msra.mxu0 %v1071
        %1129 = vmatprep.subr.bf16.mxu0 0
        %1130 = vmatpush1.bf16.msra.mxu0 %v1072
        %1131 = vmatprep.subr.bf16.mxu0 0
        %1132 = vmatpush1.bf16.msra.mxu0 %v1073
        %1133 = vmatprep.subr.bf16.mxu0 0
        %1134 = vmatpush1.bf16.msra.mxu0 %v1074
        %1135 = vmatprep.subr.bf16.mxu0 0
        %1136 = vmatpush1.bf16.msra.mxu0 %v1075
        %1137 = vmatprep.subr.bf16.mxu0 0
        %1138 = vmatpush1.bf16.msra.mxu0 %v1076
        %1139 = vmatprep.subr.bf16.mxu0 0
        %1140 = vmatpush1.bf16.msra.mxu0 %v1077
        %1141 = vmatprep.subr.bf16.mxu0 0
        %1142 = vmatpush1.bf16.msra.mxu0 %v1078
        %1143 = vmatprep.subr.bf16.mxu0 0
        %1144 = vmatpush1.bf16.msra.mxu0 0
        %1145 = vmatprep.subr.bf16.mxu0 0
        %1146 = vmatpush1.bf16.msra.mxu0 0
        %1147 = vmatprep.subr.bf16.mxu0 0
        %1148 = vmatpush1.bf16.msra.mxu0 0
        %1149 = vmatprep.subr.bf16.mxu0 0
        %1150 = vmatpush1.bf16.msra.mxu0 0
        %1151 = vmatprep.subr.bf16.mxu0 0
        %1152 = vmatpush1.bf16.msra.mxu0 0
        %1153 = vmatprep.subr.bf16.mxu0 0
        %1154 = vmatpush1.bf16.msra.mxu0 0
        %1155 = vmatprep.subr.bf16.mxu0 0
        %1156 = vmatpush1.bf16.msra.mxu0 0
        %1157 = vmatprep.subr.bf16.mxu0 0
        %1158 = vmatpush1.bf16.msra.mxu0 0
        %1159 = vmatprep.mubr.bf16.mxu0 0
        %1160 = vmatmul.mubr.bf16.gmra.mrb[0].mxu0 %v1111
        %v1161 = vpop.f32.mrb[0].mxu0
        %v1162 = vadd.f32 0.0, %v1161
        %v1163 = vpop.f32.mrb[0].mxu0
        %v1164 = vpop.f32.mrb[0].mxu0
        %v1165 = vadd.f32 0.0, %v1164
        %v1166 = vpop.f32.mrb[0].mxu0
        %1167 = vmatprep.mubr.bf16.mxu0 0
        %1168 = vmatmul.mubr.bf16.gmra.mrb[0].mxu0 %v1112
        %v1169 = vpop.f32.mrb[0].mxu0
        %v1170 = vadd.f32 0.0, %v1169
        %v1171 = vpop.f32.mrb[0].mxu0
        %v1172 = vpop.f32.mrb[0].mxu0
        %v1173 = vadd.f32 0.0, %v1172
        %v1174 = vpop.f32.mrb[0].mxu0
        %1175 = vmatprep.mubr.bf16.mxu0 0
        %1176 = vmatmul.mubr.bf16.gmra.mrb[0].mxu0 %v1113
        %v1177 = vpop.f32.mrb[0].mxu0
        %v1178 = vadd.f32 0.0, %v1177
        %v1179 = vpop.f32.mrb[0].mxu0
        %v1180 = vpop.f32.mrb[0].mxu0
        %v1181 = vadd.f32 0.0, %v1180
        %v1182 = vpop.f32.mrb[0].mxu0
        %1183 = vmatprep.mubr.bf16.mxu0 0
        %1184 = vmatmul.mubr.bf16.gmra.mrb[0].mxu0 %v1114
        %v1185 = vpop.f32.mrb[0].mxu0
        %v1186 = vadd.f32 0.0, %v1185
        %v1187 = vpop.f32.mrb[0].mxu0
        %v1188 = vpop.f32.mrb[0].mxu0
        %v1189 = vadd.f32 0.0, %v1188
        %v1190 = vpop.f32.mrb[0].mxu0
        %1191 = vmatprep.mubr.bf16.mxu0 0
        %1192 = vmatmul.mubr.bf16.gmra.mrb[0].mxu0 %v1115
        %v1193 = vpop.f32.mrb[0].mxu0
        %v1194 = vadd.f32 0.0, %v1193
        %v1195 = vpop.f32.mrb[0].mxu0
        %v1196 = vpop.f32.mrb[0].mxu0
        %v1197 = vadd.f32 0.0, %v1196
        %v1198 = vpop.f32.mrb[0].mxu0
        %1199 = vmatprep.mubr.bf16.mxu0 0
        %1200 = vmatmul.mubr.bf16.gmra.mrb[0].mxu0 %v1116
        %v1201 = vpop.f32.mrb[0].mxu0
        %v1202 = vadd.f32 0.0, %v1201
        %v1203 = vpop.f32.mrb[0].mxu0
        %v1204 = vpop.f32.mrb[0].mxu0
        %v1205 = vadd.f32 0.0, %v1204
        %v1206 = vpop.f32.mrb[0].mxu0
        %1207 = vmatprep.mubr.bf16.mxu0 0
        %1208 = vmatmul.mubr.bf16.gmra.mrb[0].mxu0 %v1117
        %v1209 = vpop.f32.mrb[0].mxu0
        %v1210 = vadd.f32 0.0, %v1209
        %v1211 = vpop.f32.mrb[0].mxu0
        %v1212 = vpop.f32.mrb[0].mxu0
        %v1213 = vadd.f32 0.0, %v1212
        %v1214 = vpop.f32.mrb[0].mxu0
        %1215 = vmatprep.mubr.bf16.mxu0 0
        %1216 = vmatmul.mubr.bf16.gmra.mrb[0].mxu0 %v1118
        %v1217 = vpop.f32.mrb[0].mxu0
        %v1218 = vadd.f32 0.0, %v1217
        %v1219 = vpop.f32.mrb[0].mxu0
        %v1220 = vpop.f32.mrb[0].mxu0
        %v1221 = vadd.f32 0.0, %v1220
        %v1222 = vpop.f32.mrb[0].mxu0
        %1223 = vdwg.mxu0
        %v1240 = vunpack.c.l.b16 %v959
        %v1241 = vunpack.c.l.b16 %v960
        %v1242 = vunpack.c.l.b16 %v961
        %v1243 = vunpack.c.l.b16 %v962
        %v1244 = vunpack.c.l.b16 %v963
        %v1245 = vunpack.c.l.b16 %v964
        %v1246 = vunpack.c.l.b16 %v965
        %v1247 = vunpack.c.l.b16 %v966
        %v1248 = vunpack.c.l.b16 %v967
        %v1249 = vunpack.c.l.b16 %v968
        %v1250 = vunpack.c.l.b16 %v969
        %v1251 = vunpack.c.l.b16 %v970
        %v1252 = vunpack.c.l.b16 %v971
        %v1253 = vunpack.c.l.b16 %v972
        %v1254 = vunpack.c.l.b16 %v973
        %v1255 = vunpack.c.l.b16 %v974
        %v1256 = vpack.c.b16 %v1241, %v1240
        %v1257 = vpack.c.b16 %v1243, %v1242
        %v1258 = vpack.c.b16 %v1245, %v1244
        %v1259 = vpack.c.b16 %v1247, %v1246
        %v1260 = vpack.c.b16 %v1249, %v1248
        %v1261 = vpack.c.b16 %v1251, %v1250
        %v1262 = vpack.c.b16 %v1253, %v1252
        %v1263 = vpack.c.b16 %v1255, %v1254
        %1272 = vmatprep.subr.bf16.mxu0 0
        %1273 = vmatpush1.bf16.msra.mxu0 %v742
        %1274 = vmatprep.subr.bf16.mxu0 0
        %1275 = vmatpush1.bf16.msra.mxu0 %v743
        %1276 = vmatprep.subr.bf16.mxu0 0
        %1277 = vmatpush1.bf16.msra.mxu0 %v744
        %1278 = vmatprep.subr.bf16.mxu0 0
        %1279 = vmatpush1.bf16.msra.mxu0 %v745
        %1280 = vmatprep.subr.bf16.mxu0 0
        %1281 = vmatpush1.bf16.msra.mxu0 %v746
        %1282 = vmatprep.subr.bf16.mxu0 0
        %1283 = vmatpush1.bf16.msra.mxu0 %v747
        %1284 = vmatprep.subr.bf16.mxu0 0
        %1285 = vmatpush1.bf16.msra.mxu0 %v748
        %1286 = vmatprep.subr.bf16.mxu0 0
        %1287 = vmatpush1.bf16.msra.mxu0 %v749
        %1288 = vmatprep.subr.bf16.mxu0 0
        %1289 = vmatpush1.bf16.msra.mxu0 0
        %1290 = vmatprep.subr.bf16.mxu0 0
        %1291 = vmatpush1.bf16.msra.mxu0 0
        %1292 = vmatprep.subr.bf16.mxu0 0
        %1293 = vmatpush1.bf16.msra.mxu0 0
        %1294 = vmatprep.subr.bf16.mxu0 0
        %1295 = vmatpush1.bf16.msra.mxu0 0
        %1296 = vmatprep.subr.bf16.mxu0 0
        %1297 = vmatpush1.bf16.msra.mxu0 0
        %1298 = vmatprep.subr.bf16.mxu0 0
        %1299 = vmatpush1.bf16.msra.mxu0 0
        %1300 = vmatprep.subr.bf16.mxu0 0
        %1301 = vmatpush1.bf16.msra.mxu0 0
        %1302 = vmatprep.subr.bf16.mxu0 0
        %1303 = vmatpush1.bf16.msra.mxu0 0
        %1304 = vmatprep.mubr.bf16.mxu0 0
        %1305 = vmatmul.mubr.bf16.gmra.mrb[0].mxu0 %v1256
        %v1306 = vpop.f32.mrb[0].mxu0
        %v1307 = vadd.f32 0.0, %v1306
        %v1308 = vpop.f32.mrb[0].mxu0
        %v1309 = vpop.f32.mrb[0].mxu0
        %v1310 = vadd.f32 0.0, %v1309
        %v1311 = vpop.f32.mrb[0].mxu0
        %1312 = vmatprep.mubr.bf16.mxu0 0
        %1313 = vmatmul.mubr.bf16.gmra.mrb[0].mxu0 %v1257
        %v1314 = vpop.f32.mrb[0].mxu0
        %v1315 = vadd.f32 0.0, %v1314
        %v1316 = vpop.f32.mrb[0].mxu0
        %v1317 = vpop.f32.mrb[0].mxu0
        %v1318 = vadd.f32 0.0, %v1317
        %v1319 = vpop.f32.mrb[0].mxu0
        %1320 = vmatprep.mubr.bf16.mxu0 0
        %1321 = vmatmul.mubr.bf16.gmra.mrb[0].mxu0 %v1258
        %v1322 = vpop.f32.mrb[0].mxu0
        %v1323 = vadd.f32 0.0, %v1322
        %v1324 = vpop.f32.mrb[0].mxu0
        %v1325 = vpop.f32.mrb[0].mxu0
        %v1326 = vadd.f32 0.0, %v1325
        %v1327 = vpop.f32.mrb[0].mxu0
        %1328 = vmatprep.mubr.bf16.mxu0 0
        %1329 = vmatmul.mubr.bf16.gmra.mrb[0].mxu0 %v1259
        %v1330 = vpop.f32.mrb[0].mxu0
        %v1331 = vadd.f32 0.0, %v1330
        %v1332 = vpop.f32.mrb[0].mxu0
        %v1333 = vpop.f32.mrb[0].mxu0
        %v1334 = vadd.f32 0.0, %v1333
        %v1335 = vpop.f32.mrb[0].mxu0
        %1336 = vmatprep.mubr.bf16.mxu0 0
        %1337 = vmatmul.mubr.bf16.gmra.mrb[0].mxu0 %v1260
        %v1338 = vpop.f32.mrb[0].mxu0
        %v1339 = vadd.f32 0.0, %v1338
        %v1340 = vpop.f32.mrb[0].mxu0
        %v1341 = vpop.f32.mrb[0].mxu0
        %v1342 = vadd.f32 0.0, %v1341
        %v1343 = vpop.f32.mrb[0].mxu0
        %1344 = vmatprep.mubr.bf16.mxu0 0
        %1345 = vmatmul.mubr.bf16.gmra.mrb[0].mxu0 %v1261
        %v1346 = vpop.f32.mrb[0].mxu0
        %v1347 = vadd.f32 0.0, %v1346
        %v1348 = vpop.f32.mrb[0].mxu0
        %v1349 = vpop.f32.mrb[0].mxu0
        %v1350 = vadd.f32 0.0, %v1349
        %v1351 = vpop.f32.mrb[0].mxu0
        %1352 = vmatprep.mubr.bf16.mxu0 0
        %1353 = vmatmul.mubr.bf16.gmra.mrb[0].mxu0 %v1262
        %v1354 = vpop.f32.mrb[0].mxu0
        %v1355 = vadd.f32 0.0, %v1354
        %v1356 = vpop.f32.mrb[0].mxu0
        %v1357 = vpop.f32.mrb[0].mxu0
        %v1358 = vadd.f32 0.0, %v1357
        %v1359 = vpop.f32.mrb[0].mxu0
        %1360 = vmatprep.mubr.bf16.mxu0 0
        %1361 = vmatmul.mubr.bf16.gmra.mrb[0].mxu0 %v1263
        %v1362 = vpop.f32.mrb[0].mxu0
        %v1363 = vadd.f32 0.0, %v1362
        %v1364 = vpop.f32.mrb[0].mxu0
        %v1365 = vpop.f32.mrb[0].mxu0
        %v1366 = vadd.f32 0.0, %v1365
        %v1367 = vpop.f32.mrb[0].mxu0
        %1368 = vdwg.mxu0
        %v1369 = vsub.f32 %v1162, %v1307
        %v1370 = vsub.f32 %v1165, %v1310
        %v1371 = vsub.f32 %v1170, %v1315
        %v1372 = vsub.f32 %v1173, %v1318
        %v1373 = vsub.f32 %v1178, %v1323
        %v1374 = vsub.f32 %v1181, %v1326
        %v1375 = vsub.f32 %v1186, %v1331
        %v1376 = vsub.f32 %v1189, %v1334
        %v1377 = vsub.f32 %v1194, %v1339
        %v1378 = vsub.f32 %v1197, %v1342
        %v1379 = vsub.f32 %v1202, %v1347
        %v1380 = vsub.f32 %v1205, %v1350
        %v1381 = vsub.f32 %v1210, %v1355
        %v1382 = vsub.f32 %v1213, %v1358
        %v1383 = vsub.f32 %v1218, %v1363
        %v1384 = vsub.f32 %v1221, %v1366
        %v1385 = vadd.f32 %v718, %v1369
        %v1386 = vadd.f32 %v719, %v1370
        %v1387 = vadd.f32 %v720, %v1371
        %v1388 = vadd.f32 %v721, %v1372
        %v1389 = vadd.f32 %v722, %v1373
        %v1390 = vadd.f32 %v723, %v1374
        %v1391 = vadd.f32 %v724, %v1375
        %v1392 = vadd.f32 %v725, %v1376
        %v1393 = vadd.f32 %v726, %v1377
        %v1394 = vadd.f32 %v727, %v1378
        %v1395 = vadd.f32 %v728, %v1379
        %v1396 = vadd.f32 %v729, %v1380
        %v1397 = vadd.f32 %v730, %v1381
        %v1398 = vadd.f32 %v731, %v1382
        %v1399 = vadd.f32 %v732, %v1383
        %v1400 = vadd.f32 %v733, %v1384
        %v1401 = vmul.f32 %v1385, %v1385
        %v1402 = vmul.f32 %v1386, %v1386
        %v1403 = vmul.f32 %v1387, %v1387
        %v1404 = vmul.f32 %v1388, %v1388
        %v1405 = vmul.f32 %v1389, %v1389
        %v1406 = vmul.f32 %v1390, %v1390
        %v1407 = vmul.f32 %v1391, %v1391
        %v1408 = vmul.f32 %v1392, %v1392
        %v1409 = vmul.f32 %v1393, %v1393
        %v1410 = vmul.f32 %v1394, %v1394
        %v1411 = vmul.f32 %v1395, %v1395
        %v1412 = vmul.f32 %v1396, %v1396
        %v1413 = vmul.f32 %v1397, %v1397
        %v1414 = vmul.f32 %v1398, %v1398
        %v1415 = vmul.f32 %v1399, %v1399
        %v1416 = vmul.f32 %v1400, %v1400
        %1417 = vadd.xlane.f32.xlu0 %v1401
        %v1418 = vpop.xlane.xlu0 %1417
        %1419 = vadd.xlane.f32.xlu0 %v1402
        %v1420 = vpop.xlane.xlu0 %1419
        %1421 = vadd.xlane.f32.xlu0 %v1403
        %v1422 = vpop.xlane.xlu0 %1421
        %1423 = vadd.xlane.f32.xlu0 %v1404
        %v1424 = vpop.xlane.xlu0 %1423
        %1425 = vadd.xlane.f32.xlu0 %v1405
        %v1426 = vpop.xlane.xlu0 %1425
        %1427 = vadd.xlane.f32.xlu0 %v1406
        %v1428 = vpop.xlane.xlu0 %1427
        %1429 = vadd.xlane.f32.xlu0 %v1407
        %v1430 = vpop.xlane.xlu0 %1429
        %1431 = vadd.xlane.f32.xlu0 %v1408
        %v1432 = vpop.xlane.xlu0 %1431
        %1433 = vadd.xlane.f32.xlu0 %v1409
        %v1434 = vpop.xlane.xlu0 %1433
        %1435 = vadd.xlane.f32.xlu0 %v1410
        %v1436 = vpop.xlane.xlu0 %1435
        %1437 = vadd.xlane.f32.xlu0 %v1411
        %v1438 = vpop.xlane.xlu0 %1437
        %1439 = vadd.xlane.f32.xlu0 %v1412
        %v1440 = vpop.xlane.xlu0 %1439
        %1441 = vadd.xlane.f32.xlu0 %v1413
        %v1442 = vpop.xlane.xlu0 %1441
        %1443 = vadd.xlane.f32.xlu0 %v1414
        %v1444 = vpop.xlane.xlu0 %1443
        %1445 = vadd.xlane.f32.xlu0 %v1415
        %v1446 = vpop.xlane.xlu0 %1445
        %1447 = vadd.xlane.f32.xlu0 %v1416
        %v1448 = vpop.xlane.xlu0 %1447
        %v1449 = vmax.f32 %v1418, 1e-24
        %v1450 = vmax.f32 %v1420, 1e-24
        %v1451 = vmax.f32 %v1422, 1e-24
        %v1452 = vmax.f32 %v1424, 1e-24
        %v1453 = vmax.f32 %v1426, 1e-24
        %v1454 = vmax.f32 %v1428, 1e-24
        %v1455 = vmax.f32 %v1430, 1e-24
        %v1456 = vmax.f32 %v1432, 1e-24
        %v1457 = vmax.f32 %v1434, 1e-24
        %v1458 = vmax.f32 %v1436, 1e-24
        %v1459 = vmax.f32 %v1438, 1e-24
        %v1460 = vmax.f32 %v1440, 1e-24
        %v1461 = vmax.f32 %v1442, 1e-24
        %v1462 = vmax.f32 %v1444, 1e-24
        %v1463 = vmax.f32 %v1446, 1e-24
        %v1464 = vmax.f32 %v1448, 1e-24
        %v1465 = vrsqrt.pop %v1449
        %v1466 = vrsqrt.pop %v1450
        %v1467 = vrsqrt.pop %v1451
        %v1468 = vrsqrt.pop %v1452
        %v1469 = vrsqrt.pop %v1453
        %v1470 = vrsqrt.pop %v1454
        %v1471 = vrsqrt.pop %v1455
        %v1472 = vrsqrt.pop %v1456
        %v1473 = vrsqrt.pop %v1457
        %v1474 = vrsqrt.pop %v1458
        %v1475 = vrsqrt.pop %v1459
        %v1476 = vrsqrt.pop %v1460
        %v1477 = vrsqrt.pop %v1461
        %v1478 = vrsqrt.pop %v1462
        %v1479 = vrsqrt.pop %v1463
        %v1480 = vrsqrt.pop %v1464
        %v1481 = vmul.f32 %v1385, %v1465
        %v1482 = vmul.f32 %v1386, %v1466
        %v1483 = vmul.f32 %v1387, %v1467
        %v1484 = vmul.f32 %v1388, %v1468
        %v1485 = vmul.f32 %v1389, %v1469
        %v1486 = vmul.f32 %v1390, %v1470
        %v1487 = vmul.f32 %v1391, %v1471
        %v1488 = vmul.f32 %v1392, %v1472
        %v1489 = vmul.f32 %v1393, %v1473
        %v1490 = vmul.f32 %v1394, %v1474
        %v1491 = vmul.f32 %v1395, %v1475
        %v1492 = vmul.f32 %v1396, %v1476
        %v1493 = vmul.f32 %v1397, %v1477
        %v1494 = vmul.f32 %v1398, %v1478
        %v1495 = vmul.f32 %v1399, %v1479
        %v1496 = vmul.f32 %v1400, %v1480
        %1497 = vst [vmem:[#allocation2] sm:$0xff] %v1481
        %1498 = vst [vmem:[#allocation2 + $0x8] sm:$0xff] %v1482
        %1499 = vst [vmem:[#allocation2 + $0x10] sm:$0xff] %v1483
        %1500 = vst [vmem:[#allocation2 + $0x18] sm:$0xff] %v1484
        %1501 = vst [vmem:[#allocation2 + $0x20] sm:$0xff] %v1485
        %1502 = vst [vmem:[#allocation2 + $0x28] sm:$0xff] %v1486
        %1503 = vst [vmem:[#allocation2 + $0x30] sm:$0xff] %v1487
        %1504 = vst [vmem:[#allocation2 + $0x38] sm:$0xff] %v1488
        %1505 = vst [vmem:[#allocation2 + $0x40] sm:$0xff] %v1489
        %1506 = vst [vmem:[#allocation2 + $0x48] sm:$0xff] %v1490
        %1507 = vst [vmem:[#allocation2 + $0x50] sm:$0xff] %v1491
        %1508 = vst [vmem:[#allocation2 + $0x58] sm:$0xff] %v1492
        %1509 = vst [vmem:[#allocation2 + $0x60] sm:$0xff] %v1493
        %1510 = vst [vmem:[#allocation2 + $0x68] sm:$0xff] %v1494
        %1511 = vst [vmem:[#allocation2 + $0x70] sm:$0xff] %v1495
        %1512 = vst [vmem:[#allocation2 + $0x78] sm:$0xff] %v1496
        %p1513 = scmp.eq.s32.totalorder %s22, 1
        // Predicated region
        $region65: #{cmpgnn_forward.1} parent=39 // pred_check
          %p1514 = pneg %p1513
        $region66: #{cmpgnn_forward.1} parent=39 // pred_check_branch
          %1516 = sbr.rel (%p1514) target = $region68
        $region67: #{cmpgnn_forward.1} parent=39 // pred_region
          %v1517 = vpack.c.bf16 %v1482, %v1481
          %v1518 = vpack.c.bf16 %v1484, %v1483
          %v1519 = vpack.c.bf16 %v1486, %v1485
          %v1520 = vpack.c.bf16 %v1488, %v1487
          %v1521 = vpack.c.bf16 %v1490, %v1489
          %v1522 = vpack.c.bf16 %v1492, %v1491
          %v1523 = vpack.c.bf16 %v1494, %v1493
          %v1524 = vpack.c.bf16 %v1496, %v1495
          %v1525 = vld [vmem:[#allocation9] sm:$0xf]
          %v1526 = vld [vmem:[#allocation9 + $0x4] sm:$0xf]
          %v1527 = vld [vmem:[#allocation9 + $0x8] sm:$0xf]
          %v1528 = vld [vmem:[#allocation9 + $0xc] sm:$0xf]
          %v1529 = vld [vmem:[#allocation9 + $0x10] sm:$0xf]
          %v1530 = vld [vmem:[#allocation9 + $0x14] sm:$0xf]
          %v1531 = vld [vmem:[#allocation9 + $0x18] sm:$0xf]
          %v1532 = vld [vmem:[#allocation9 + $0x1c] sm:$0xf]
          %v1533 = vld [vmem:[#allocation9 + $0x20] sm:$0xf]
          %v1534 = vld [vmem:[#allocation9 + $0x24] sm:$0xf]
          %v1535 = vld [vmem:[#allocation9 + $0x28] sm:$0xf]
          %v1536 = vld [vmem:[#allocation9 + $0x2c] sm:$0xf]
          %v1537 = vld [vmem:[#allocation9 + $0x30] sm:$0xf]
          %v1538 = vld [vmem:[#allocation9 + $0x34] sm:$0xf]
          %v1539 = vld [vmem:[#allocation9 + $0x38] sm:$0xf]
          %v1540 = vld [vmem:[#allocation9 + $0x3c] sm:$0xf]
          %v1541 = vld [vmem:[#allocation11] sm:$0x1]
          %v1543 = vlaneseq
          %v1544 = vshrl.u32 %v1543, 7
          %v1545 = vsub.s32 0, %v1544
          %v1546 = vrot.slane %v1541, %v1545
          %v1564 = vunpack.c.l.b16 %v1525
          %v1565 = vunpack.c.l.b16 %v1526
          %v1566 = vunpack.c.l.b16 %v1527
          %v1567 = vunpack.c.l.b16 %v1528
          %v1568 = vunpack.c.l.b16 %v1529
          %v1569 = vunpack.c.l.b16 %v1530
          %v1570 = vunpack.c.l.b16 %v1531
          %v1571 = vunpack.c.l.b16 %v1532
          %v1572 = vunpack.c.l.b16 %v1533
          %v1573 = vunpack.c.l.b16 %v1534
          %v1574 = vunpack.c.l.b16 %v1535
          %v1575 = vunpack.c.l.b16 %v1536
          %v1576 = vunpack.c.l.b16 %v1537
          %v1577 = vunpack.c.l.b16 %v1538
          %v1578 = vunpack.c.l.b16 %v1539
          %v1579 = vunpack.c.l.b16 %v1540
          %v1580 = vpack.c.b16 %v1565, %v1564
          %v1581 = vpack.c.b16 %v1567, %v1566
          %v1582 = vpack.c.b16 %v1569, %v1568
          %v1583 = vpack.c.b16 %v1571, %v1570
          %v1584 = vpack.c.b16 %v1573, %v1572
          %v1585 = vpack.c.b16 %v1575, %v1574
          %v1586 = vpack.c.b16 %v1577, %v1576
          %v1587 = vpack.c.b16 %v1579, %v1578
          %1596 = vmatprep.subr.bf16.mxu0 0
          %1597 = vmatpush1.bf16.msra.mxu0 %v1580
          %1598 = vmatprep.subr.bf16.mxu0 0
          %1599 = vmatpush1.bf16.msra.mxu0 %v1581
          %1600 = vmatprep.subr.bf16.mxu0 0
          %1601 = vmatpush1.bf16.msra.mxu0 %v1582
          %1602 = vmatprep.subr.bf16.mxu0 0
          %1603 = vmatpush1.bf16.msra.mxu0 %v1583
          %1604 = vmatprep.subr.bf16.mxu0 0
          %1605 = vmatpush1.bf16.msra.mxu0 %v1584
          %1606 = vmatprep.subr.bf16.mxu0 0
          %1607 = vmatpush1.bf16.msra.mxu0 %v1585
          %1608 = vmatprep.subr.bf16.mxu0 0
          %1609 = vmatpush1.bf16.msra.mxu0 %v1586
          %1610 = vmatprep.subr.bf16.mxu0 0
          %1611 = vmatpush1.bf16.msra.mxu0 %v1587
          %1612 = vmatprep.subr.bf16.mxu0 0
          %1613 = vmatpush1.bf16.msra.mxu0 0
          %1614 = vmatprep.subr.bf16.mxu0 0
          %1615 = vmatpush1.bf16.msra.mxu0 0
          %1616 = vmatprep.subr.bf16.mxu0 0
          %1617 = vmatpush1.bf16.msra.mxu0 0
          %1618 = vmatprep.subr.bf16.mxu0 0
          %1619 = vmatpush1.bf16.msra.mxu0 0
          %1620 = vmatprep.subr.bf16.mxu0 0
          %1621 = vmatpush1.bf16.msra.mxu0 0
          %1622 = vmatprep.subr.bf16.mxu0 0
          %1623 = vmatpush1.bf16.msra.mxu0 0
          %1624 = vmatprep.subr.bf16.mxu0 0
          %1625 = vmatpush1.bf16.msra.mxu0 0
          %1626 = vmatprep.subr.bf16.mxu0 0
          %1627 = vmatpush1.bf16.msra.mxu0 0
          %1628 = vmatprep.mubr.bf16.mxu0 0
          %1629 = vmatmul.mubr.bf16.gmra.mrb[0].mxu0 %v1517
          %v1630 = vpop.f32.mrb[0].mxu0
          %v1631 = vadd.f32 %v1546, %v1630
          %v1632 = vpop.f32.mrb[0].mxu0
          %v1633 = vpop.f32.mrb[0].mxu0
          %v1634 = vadd.f32 %v1546, %v1633
          %v1635 = vpop.f32.mrb[0].mxu0
          %1636 = vmatprep.mubr.bf16.mxu0 0
          %1637 = vmatmul.mubr.bf16.gmra.mrb[0].mxu0 %v1518
          %v1638 = vpop.f32.mrb[0].mxu0
          %v1639 = vadd.f32 %v1546, %v1638
          %v1640 = vpop.f32.mrb[0].mxu0
          %v1641 = vpop.f32.mrb[0].mxu0
          %v1642 = vadd.f32 %v1546, %v1641
          %v1643 = vpop.f32.mrb[0].mxu0
          %1644 = vmatprep.mubr.bf16.mxu0 0
          %1645 = vmatmul.mubr.bf16.gmra.mrb[0].mxu0 %v1519
          %v1646 = vpop.f32.mrb[0].mxu0
          %v1647 = vadd.f32 %v1546, %v1646
          %v1648 = vpop.f32.mrb[0].mxu0
          %v1649 = vpop.f32.mrb[0].mxu0
          %v1650 = vadd.f32 %v1546, %v1649
          %v1651 = vpop.f32.mrb[0].mxu0
          %1652 = vmatprep.mubr.bf16.mxu0 0
          %1653 = vmatmul.mubr.bf16.gmra.mrb[0].mxu0 %v1520
          %v1654 = vpop.f32.mrb[0].mxu0
          %v1655 = vadd.f32 %v1546, %v1654
          %v1656 = vpop.f32.mrb[0].mxu0
          %v1657 = vpop.f32.mrb[0].mxu0
          %v1658 = vadd.f32 %v1546, %v1657
          %v1659 = vpop.f32.mrb[0].mxu0
          %1660 = vmatprep.mubr.bf16.mxu0 0
          %1661 = vmatmul.mubr.bf16.gmra.mrb[0].mxu0 %v1521
          %v1662 = vpop.f32.mrb[0].mxu0
          %v1663 = vadd.f32 %v1546, %v1662
          %v1664 = vpop.f32.mrb[0].mxu0
          %v1665 = vpop.f32.mrb[0].mxu0
          %v1666 = vadd.f32 %v1546, %v1665
          %v1667 = vpop.f32.mrb[0].mxu0
          %1668 = vmatprep.mubr.bf16.mxu0 0
          %1669 = vmatmul.mubr.bf16.gmra.mrb[0].mxu0 %v1522
          %v1670 = vpop.f32.mrb[0].mxu0
          %v1671 = vadd.f32 %v1546, %v1670
          %v1672 = vpop.f32.mrb[0].mxu0
          %v1673 = vpop.f32.mrb[0].mxu0
          %v1674 = vadd.f32 %v1546, %v1673
          %v1675 = vpop.f32.mrb[0].mxu0
          %1676 = vmatprep.mubr.bf16.mxu0 0
          %1677 = vmatmul.mubr.bf16.gmra.mrb[0].mxu0 %v1523
          %v1678 = vpop.f32.mrb[0].mxu0
          %v1679 = vadd.f32 %v1546, %v1678
          %v1680 = vpop.f32.mrb[0].mxu0
          %v1681 = vpop.f32.mrb[0].mxu0
          %v1682 = vadd.f32 %v1546, %v1681
          %v1683 = vpop.f32.mrb[0].mxu0
          %1684 = vmatprep.mubr.bf16.mxu0 0
          %1685 = vmatmul.mubr.bf16.gmra.mrb[0].mxu0 %v1524
          %v1686 = vpop.f32.mrb[0].mxu0
          %v1687 = vadd.f32 %v1546, %v1686
          %v1688 = vpop.f32.mrb[0].mxu0
          %v1689 = vpop.f32.mrb[0].mxu0
          %v1690 = vadd.f32 %v1546, %v1689
          %v1691 = vpop.f32.mrb[0].mxu0
          %1692 = vdwg.mxu0
          %1693 = vmax.xlane.f32.xlu0 %v1631
          %v1694 = vpop.xlane.xlu0 %1693
          %1695 = vmax.xlane.f32.xlu0 %v1634
          %v1696 = vpop.xlane.xlu0 %1695
          %1697 = vmax.xlane.f32.xlu0 %v1639
          %v1698 = vpop.xlane.xlu0 %1697
          %1699 = vmax.xlane.f32.xlu0 %v1642
          %v1700 = vpop.xlane.xlu0 %1699
          %1701 = vmax.xlane.f32.xlu0 %v1647
          %v1702 = vpop.xlane.xlu0 %1701
          %1703 = vmax.xlane.f32.xlu0 %v1650
          %v1704 = vpop.xlane.xlu0 %1703
          %1705 = vmax.xlane.f32.xlu0 %v1655
          %v1706 = vpop.xlane.xlu0 %1705
          %1707 = vmax.xlane.f32.xlu0 %v1658
          %v1708 = vpop.xlane.xlu0 %1707
          %1709 = vmax.xlane.f32.xlu0 %v1663
          %v1710 = vpop.xlane.xlu0 %1709
          %1711 = vmax.xlane.f32.xlu0 %v1666
          %v1712 = vpop.xlane.xlu0 %1711
          %1713 = vmax.xlane.f32.xlu0 %v1671
          %v1714 = vpop.xlane.xlu0 %1713
          %1715 = vmax.xlane.f32.xlu0 %v1674
          %v1716 = vpop.xlane.xlu0 %1715
          %1717 = vmax.xlane.f32.xlu0 %v1679
          %v1718 = vpop.xlane.xlu0 %1717
          %1719 = vmax.xlane.f32.xlu0 %v1682
          %v1720 = vpop.xlane.xlu0 %1719
          %1721 = vmax.xlane.f32.xlu0 %v1687
          %v1722 = vpop.xlane.xlu0 %1721
          %1723 = vmax.xlane.f32.xlu0 %v1690
          %v1724 = vpop.xlane.xlu0 %1723
          %v1725 = vsub.f32 %v1631, %v1694
          %v1726 = vsub.f32 %v1634, %v1696
          %v1727 = vsub.f32 %v1639, %v1698
          %v1728 = vsub.f32 %v1642, %v1700
          %v1729 = vsub.f32 %v1647, %v1702
          %v1730 = vsub.f32 %v1650, %v1704
          %v1731 = vsub.f32 %v1655, %v1706
          %v1732 = vsub.f32 %v1658, %v1708
          %v1733 = vsub.f32 %v1663, %v1710
          %v1734 = vsub.f32 %v1666, %v1712
          %v1735 = vsub.f32 %v1671, %v1714
          %v1736 = vsub.f32 %v1674, %v1716
          %v1737 = vsub.f32 %v1679, %v1718
          %v1738 = vsub.f32 %v1682, %v1720
          %v1739 = vsub.f32 %v1687, %v1722
          %v1740 = vsub.f32 %v1690, %v1724
          %v1741 = vmul.f32 %v1725, 1.442695
          %v1742 = vpow.pop %v1741
          %v1743 = vmul.f32 %v1726, 1.442695
          %v1744 = vpow.pop %v1743
          %v1745 = vmul.f32 %v1727, 1.442695
          %v1746 = vpow.pop %v1745
          %v1747 = vmul.f32 %v1728, 1.442695
          %v1748 = vpow.pop %v1747
          %v1749 = vmul.f32 %v1729, 1.442695
          %v1750 = vpow.pop %v1749
          %v1751 = vmul.f32 %v1730, 1.442695
          %v1752 = vpow.pop %v1751
          %v1753 = vmul.f32 %v1731, 1.442695
          %v1754 = vpow.pop %v1753
          %v1755 = vmul.f32 %v1732, 1.442695
          %v1756 = vpow.pop %v1755
          %v1757 = vmul.f32 %v1733, 1.442695
          %v1758 = vpow.pop %v1757
          %v1759 = vmul.f32 %v1734, 1.442695
          %v1760 = vpow.pop %v1759
          %v1761 = vmul.f32 %v1735, 1.442695
          %v1762 = vpow.pop %v1761
          %v1763 = vmul.f32 %v1736, 1.442695
          %v1764 = vpow.pop %v1763
          %v1765 = vmul.f32 %v1737, 1.442695
          %v1766 = vpow.pop %v1765
          %v1767 = vmul.f32 %v1738, 1.442695
          %v1768 = vpow.pop %v1767
          %v1769 = vmul.f32 %v1739, 1.442695
          %v1770 = vpow.pop %v1769
          %v1771 = vmul.f32 %v1740, 1.442695
          %v1772 = vpow.pop %v1771
          %1773 = vadd.xlane.f32.xlu0 %v1742
          %v1774 = vpop.xlane.xlu0 %1773
          %1775 = vadd.xlane.f32.xlu0 %v1744
          %v1776 = vpop.xlane.xlu0 %1775
          %1777 = vadd.xlane.f32.xlu0 %v1746
          %v1778 = vpop.xlane.xlu0 %1777
          %1779 = vadd.xlane.f32.xlu0 %v1748
          %v1780 = vpop.xlane.xlu0 %1779
          %1781 = vadd.xlane.f32.xlu0 %v1750
          %v1782 = vpop.xlane.xlu0 %1781
          %1783 = vadd.xlane.f32.xlu0 %v1752
          %v1784 = vpop.xlane.xlu0 %1783
          %1785 = vadd.xlane.f32.xlu0 %v1754
          %v1786 = vpop.xlane.xlu0 %1785
          %1787 = vadd.xlane.f32.xlu0 %v1756
          %v1788 = vpop.xlane.xlu0 %1787
          %1789 = vadd.xlane.f32.xlu0 %v1758
          %v1790 = vpop.xlane.xlu0 %1789
          %1791 = vadd.xlane.f32.xlu0 %v1760
          %v1792 = vpop.xlane.xlu0 %1791
          %1793 = vadd.xlane.f32.xlu0 %v1762
          %v1794 = vpop.xlane.xlu0 %1793
          %1795 = vadd.xlane.f32.xlu0 %v1764
          %v1796 = vpop.xlane.xlu0 %1795
          %1797 = vadd.xlane.f32.xlu0 %v1766
          %v1798 = vpop.xlane.xlu0 %1797
          %1799 = vadd.xlane.f32.xlu0 %v1768
          %v1800 = vpop.xlane.xlu0 %1799
          %1801 = vadd.xlane.f32.xlu0 %v1770
          %v1802 = vpop.xlane.xlu0 %1801
          %1803 = vadd.xlane.f32.xlu0 %v1772
          %v1804 = vpop.xlane.xlu0 %1803
          %v1805 = vlog2.pop %v1774
          %v1806 = vmul.f32 %v1805, 0.6931472
          %v1807 = vlog2.pop %v1776
          %v1808 = vmul.f32 %v1807, 0.6931472
          %v1809 = vlog2.pop %v1778
          %v1810 = vmul.f32 %v1809, 0.6931472
          %v1811 = vlog2.pop %v1780
          %v1812 = vmul.f32 %v1811, 0.6931472
          %v1813 = vlog2.pop %v1782
          %v1814 = vmul.f32 %v1813, 0.6931472
          %v1815 = vlog2.pop %v1784
          %v1816 = vmul.f32 %v1815, 0.6931472
          %v1817 = vlog2.pop %v1786
          %v1818 = vmul.f32 %v1817, 0.6931472
          %v1819 = vlog2.pop %v1788
          %v1820 = vmul.f32 %v1819, 0.6931472
          %v1821 = vlog2.pop %v1790
          %v1822 = vmul.f32 %v1821, 0.6931472
          %v1823 = vlog2.pop %v1792
          %v1824 = vmul.f32 %v1823, 0.6931472
          %v1825 = vlog2.pop %v1794
          %v1826 = vmul.f32 %v1825, 0.6931472
          %v1827 = vlog2.pop %v1796
          %v1828 = vmul.f32 %v1827, 0.6931472
          %v1829 = vlog2.pop %v1798
          %v1830 = vmul.f32 %v1829, 0.6931472
          %v1831 = vlog2.pop %v1800
          %v1832 = vmul.f32 %v1831, 0.6931472
          %v1833 = vlog2.pop %v1802
          %v1834 = vmul.f32 %v1833, 0.6931472
          %v1835 = vlog2.pop %v1804
          %v1836 = vmul.f32 %v1835, 0.6931472
          %v1837 = vsub.f32 %v1725, %v1806
          %v1838 = vsub.f32 %v1726, %v1808
          %v1839 = vsub.f32 %v1727, %v1810
          %v1840 = vsub.f32 %v1728, %v1812
          %v1841 = vsub.f32 %v1729, %v1814
          %v1842 = vsub.f32 %v1730, %v1816
          %v1843 = vsub.f32 %v1731, %v1818
          %v1844 = vsub.f32 %v1732, %v1820
          %v1845 = vsub.f32 %v1733, %v1822
          %v1846 = vsub.f32 %v1734, %v1824
          %v1847 = vsub.f32 %v1735, %v1826
          %v1848 = vsub.f32 %v1736, %v1828
          %v1849 = vsub.f32 %v1737, %v1830
          %v1850 = vsub.f32 %v1738, %v1832
          %v1851 = vsub.f32 %v1739, %v1834
          %v1852 = vsub.f32 %v1740, %v1836
          %1853 = vst [vmem:[#allocation12] sm:$0xff] %v1837
          %1854 = vst [vmem:[#allocation12 + $0x8] sm:$0xff] %v1838
          %1855 = vst [vmem:[#allocation12 + $0x10] sm:$0xff] %v1839
          %1856 = vst [vmem:[#allocation12 + $0x18] sm:$0xff] %v1840
          %1857 = vst [vmem:[#allocation12 + $0x20] sm:$0xff] %v1841
          %1858 = vst [vmem:[#allocation12 + $0x28] sm:$0xff] %v1842
          %1859 = vst [vmem:[#allocation12 + $0x30] sm:$0xff] %v1843
          %1860 = vst [vmem:[#allocation12 + $0x38] sm:$0xff] %v1844
          %1861 = vst [vmem:[#allocation12 + $0x40] sm:$0xff] %v1845
          %1862 = vst [vmem:[#allocation12 + $0x48] sm:$0xff] %v1846
          %1863 = vst [vmem:[#allocation12 + $0x50] sm:$0xff] %v1847
          %1864 = vst [vmem:[#allocation12 + $0x58] sm:$0xff] %v1848
          %1865 = vst [vmem:[#allocation12 + $0x60] sm:$0xff] %v1849
          %1866 = vst [vmem:[#allocation12 + $0x68] sm:$0xff] %v1850
          %1867 = vst [vmem:[#allocation12 + $0x70] sm:$0xff] %v1851
          %1868 = vst [vmem:[#allocation12 + $0x78] sm:$0xff] %v1852
        $region68: #{cmpgnn_forward.1} parent=39 // pred_fallthru
          _
        // Predicated region
        $region69: #{cmpgnn_forward.1} parent=39 // pred_check
          %p1869 = pneg %p145
        $region70: #{cmpgnn_forward.1} parent=39 // pred_check_branch
          %1871 = sbr.rel (%p1869) target = $region72
        $region71: #{cmpgnn_forward.1} parent=39 // pred_region
          %s1873 = ssub.s32 2048, 2048
          %1874 = vsyncadd [#allocation5], %s1873
          %s1875 = sshll.u32 [#allocation12], 4
          %s1876 = int_to_ptr.vmem [resolvable:$true] %s1875
          %1881 = dma.vmem_to_hbm [thread:$0]  %s1876, 2048, %s5, [#allocation5], 128, 128, 8
        $region72: #{cmpgnn_forward.1} parent=39 // pred_fallthru
          _
        // Predicated region
        $region73: #{cmpgnn_forward.1} parent=39 // pred_check
          %p1882 = pneg %p145
        $region74: #{cmpgnn_forward.1} parent=39 // pred_check_branch
          %1884 = sbr.rel (%p1882) target = $region76
        $region75: #{cmpgnn_forward.1} parent=39 // pred_region
          %1885 = dma.done [#allocation5], 2048
        $region76: #{cmpgnn_forward.1} parent=39 // pred_fallthru
          _
      $region40: #{cmpgnn_forward.1} parent=5 // pred_fallthru
        _
      %p1886 = scmp.le.s32.totalorder 2, %s17
      // Predicated region
      $region77: #{cmpgnn_forward.1} parent=5 // pred_check
        %p1887 = pneg %p1886
      $region78: #{cmpgnn_forward.1} parent=5 // pred_check_branch
        %1889 = sbr.rel (%p1887) target = $region80
      $region79: #{cmpgnn_forward.1} parent=5 // pred_region
        %s1890 = ssub.s32 %s17, 2
      $region80: #{cmpgnn_forward.1} parent=5 // pred_fallthru
        _
    $region6: #{cmpgnn_forward.1} parent=1 // loop_footer
      %s21 = sadd.s32 1, %s17
    $region7: #{cmpgnn_forward.1} parent=1 // loop_footer_branch
      %16 = sbr.rel target = $region3
    $region8: #{cmpgnn_forward.1} parent=1 // loop_exit
      _
    %1891 = vsyncpa [#allocation4], 1
    %s1892 = scalar_lea.sflag [#allocation4], 1
    %1893 = vsyncpa %s1892, 1
    %1894 = vsyncpa [#allocation7], 1
    %s1895 = scalar_lea.sflag [#allocation7], 1
    %1896 = vsyncpa %s1895, 1
    %1897 = vsyncpa [#allocation10], 1
    %1898 = vsyncpa [#allocation5], 1
    %s1899 = scalar_lea.sflag [#allocation5], 1
    %1900 = vsyncpa %s1899, 1

// kernel: cmpgnn_forward.1
$region0: #{cmpgnn_forward.1}
  #allocation0 [shape = 'u32[]', space=smem, size = 0x4, offset = 0x4, fixed_abs, tag = 'smem constant byte address 0x4 - core index']
  #allocation1 [shape = 'u32[144,128]{1,0:T(1,128)}', space=vmem, size = 0x12000, scoped, tag = 'internal scratch']
  #allocation2 [shape = 'f32[128,128]{1,0:T(8,128)}', space=vmem, size = 0x10000, scoped, tag = 'scratch operand']
  %s0 = inlined_call_operand.hbm [shape: f32[128,128], index: 0, kind: input, shape index: {}]
  %s1 = inlined_call_operand.hbm [shape: bf16[2,128,384], index: 1, kind: input, shape index: {}]
  %s2 = inlined_call_operand.hbm [shape: bf16[128,128], index: 2, kind: input, shape index: {}]
  %s3 = inlined_call_operand.hbm [shape: bf16[128,128], index: 3, kind: input, shape index: {}]
  %s4 = inlined_call_operand.hbm [shape: f32[1,128], index: 4, kind: input, shape index: {}]
  %s5 = inlined_call_operand.hbm [shape: f32[128,128], index: 5, kind: output, shape index: {}]
  %s6 = sld [smem:[#allocation0]]
  $region81: #{cmpgnn_forward.1} parent=0
    _
  %s8 = ssub.s32 1, %s6
  %s9 = scalar_select 0, %s8, %s6
  $region1: #{cmpgnn_forward.1} parent=0
    #allocation3 [shape = 'u8[65536]{0}', space=vmem, size = 0x10000, scoped, tag = 'input window, operand 0, single buffered']
    #allocation4 [shape = 's32[2]{0}', space=sflag, size = 0x8, scoped, tag = 'scoped memory for cmpgnn_forward.1']
    #allocation5 [shape = 's32[2]{0}', space=sflag, size = 0x8, scoped, tag = 'scoped memory for cmpgnn_forward.1']
    #allocation6 [shape = 'u8[196608]{0}', space=vmem, size = 0x30000, scoped, tag = 'input window, operand 1']
    #allocation7 [shape = 's32[2]{0}', space=sflag, size = 0x8, scoped, tag = 'scoped memory for cmpgnn_forward.1']
    #allocation8 [shape = 'u8[32768]{0}', space=vmem, size = 0x8000, scoped, tag = 'input window, operand 2, single buffered']
    #allocation9 [shape = 'u8[32768]{0}', space=vmem, size = 0x8000, scoped, tag = 'input window, operand 3, single buffered']
    #allocation10 [shape = 's32[1]{0}', space=sflag, size = 0x4, scoped, tag = 'scoped memory for cmpgnn_forward.1']
    #allocation11 [shape = 'u8[512]{0}', space=vmem, size = 0x400, scoped, tag = 'input window, operand 4, single buffered']
    #allocation12 [shape = 'u8[65536]{0}', space=vmem, size = 0x10000, scoped, tag = 'output window, operand 0, single buffered']
    %10 = vsyncpa [#allocation4], 0
    %11 = vsyncpa [#allocation7], 0
    %s12 = scalar_lea.sflag [#allocation7], 1
    %13 = vsyncpa %s12, 0
    %14 = vsyncpa [#allocation10], 0
    %15 = vsyncpa [#allocation5], 0
    loop: start=0, step=1, limit=4
    $region2: #{cmpgnn_forward.1} parent=1 // loop_pre_header
      _
    $region3: #{cmpgnn_forward.1} parent=1 // loop_header
      %s17 = sphi 0, %s21
      %p18 = scmp.ge.s32.totalorder %s17, 4
      %s25 = sphi 0, %s25
      %s27 = sphi 0, %s25
      %s28 = sphi 0, %s27
      %s42 = sphi 0, %s28
      %s48 = sphi 0, %s50
      %s51 = sphi 0, %s48
      %s52 = sphi 0, %s51
      %s68 = sphi 0, %s52
      %s72 = sphi 0, %s72
      %s74 = sphi 0, %s72
      %s75 = sphi 0, %s74
      %s89 = sphi 0, %s75
      %s93 = sphi 0, %s93
      %s95 = sphi 0, %s93
      %s96 = sphi 0, %s95
      %s110 = sphi 0, %s96
      %s114 = sphi 0, %s114
      %s116 = sphi 0, %s114
      %s117 = sphi 0, %s116
      %s131 = sphi 0, %s117
      %s135 = sphi 0, %s135
      %s137 = sphi 0, %s135
      %s138 = sphi 0, %s137
      %s152 = sphi 0, %s138
    $region4: #{cmpgnn_forward.1} parent=1 // loop_header_branch
      %20 = sbr.rel (%p18) target = $region8
    $region5: #{cmpgnn_forward.1} parent=1 // loop_body
      %s22 = ssub.s32 %s17, 1
      %s23 = ssub.s32 %s17, 2
      %s24 = sadd.s32 %s17, 1
      %s26 = sadd.s32 %s25, 1
      %p29 = scmp.eq.s32.totalorder %s17, 1
      %p30 = scmp.ne.s32.totalorder %s25, %s27
      %p31 = scmp.eq.s32.totalorder %s17, 0
      %p32 = por %p30, %p31
      %p33 = scmp.ne.s32.totalorder %s25, %s27
      %p34 = scmp.eq.s32.totalorder %s22, 1
      %p35 = por %p33, %p34
      %p36 = scmp.ne.s32.totalorder %s27, %s28
      %p37 = scmp.eq.s32.totalorder %s22, 0
      %p38 = por %p36, %p37
      %p39 = scmp.ne.s32.totalorder %s27, %s28
      %p40 = scmp.eq.s32.totalorder %s23, 1
      %p41 = por %p39, %p40
      %p43 = scmp.ne.s32.totalorder %s28, %s42
      %p44 = scmp.eq.s32.totalorder %s23, 0
      %p45 = por %p43, %p44
      %s46 = ssub.s32 %s17, %s24
      %p47 = scmp.eq.s32.totalorder %s46, 0
      %s49 = sadd.s32 %s48, 1
      %s50 = scalar_select %p47, %s48, %s49
      %p53 = pneg %p47
      %p54 = scmp.eq.s32.totalorder %s17, 1
      %p55 = por %p53, %p54
      %p56 = scmp.ne.s32.totalorder %s48, %s51
      %p57 = scmp.eq.s32.totalorder %s17, 0
      %p58 = por %p56, %p57
      %p59 = scmp.ne.s32.totalorder %s48, %s51
      %p60 = scmp.eq.s32.totalorder %s22, 1
      %p61 = por %p59, %p60
      %p62 = scmp.ne.s32.totalorder %s51, %s52
      %p63 = scmp.eq.s32.totalorder %s22, 0
      %p64 = por %p62, %p63
      %p65 = scmp.ne.s32.totalorder %s51, %s52
      %p66 = scmp.eq.s32.totalorder %s23, 1
      %p67 = por %p65, %p66
      %p69 = scmp.ne.s32.totalorder %s52, %s68
      %p70 = scmp.eq.s32.totalorder %s23, 0
      %p71 = por %p69, %p70
      %s73 = sadd.s32 %s72, 1
      %p76 = scmp.eq.s32.totalorder %s17, 1
      %p77 = scmp.ne.s32.totalorder %s72, %s74
      %p78 = scmp.eq.s32.totalorder %s17, 0
      %p79 = por %p77, %p78
      %p80 = scmp.ne.s32.totalorder %s72, %s74
      %p81 = scmp.eq.s32.totalorder %s22, 1
      %p82 = por %p80, %p81
      %p83 = scmp.ne.s32.totalorder %s74, %s75
      %p84 = scmp.eq.s32.totalorder %s22, 0
      %p85 = por %p83, %p84
      %p86 = scmp.ne.s32.totalorder %s74, %s75
      %p87 = scmp.eq.s32.totalorder %s23, 1
      %p88 = por %p86, %p87
      %p90 = scmp.ne.s32.totalorder %s75, %s89
      %p91 = scmp.eq.s32.totalorder %s23, 0
      %p92 = por %p90, %p91
      %s94 = sadd.s32 %s93, 1
      %p97 = scmp.eq.s32.totalorder %s17, 1
      %p98 = scmp.ne.s32.totalorder %s93, %s95
      %p99 = scmp.eq.s32.totalorder %s17, 0
      %p100 = por %p98, %p99
      %p101 = scmp.ne.s32.totalorder %s93, %s95
      %p102 = scmp.eq.s32.totalorder %s22, 1
      %p103 = por %p101, %p102
      %p104 = scmp.ne.s32.totalorder %s95, %s96
      %p105 = scmp.eq.s32.totalorder %s22, 0
      %p106 = por %p104, %p105
      %p107 = scmp.ne.s32.totalorder %s95, %s96
      %p108 = scmp.eq.s32.totalorder %s23, 1
      %p109 = por %p107, %p108
      %p111 = scmp.ne.s32.totalorder %s96, %s110
      %p112 = scmp.eq.s32.totalorder %s23, 0
      %p113 = por %p111, %p112
      %s115 = sadd.s32 %s114, 1
      %p118 = scmp.eq.s32.totalorder %s17, 1
      %p119 = scmp.ne.s32.totalorder %s114, %s116
      %p120 = scmp.eq.s32.totalorder %s17, 0
      %p121 = por %p119, %p120
      %p122 = scmp.ne.s32.totalorder %s114, %s116
      %p123 = scmp.eq.s32.totalorder %s22, 1
      %p124 = por %p122, %p123
      %p125 = scmp.ne.s32.totalorder %s116, %s117
      %p126 = scmp.eq.s32.totalorder %s22, 0
      %p127 = por %p125, %p126
      %p128 = scmp.ne.s32.totalorder %s116, %s117
      %p129 = scmp.eq.s32.totalorder %s23, 1
      %p130 = por %p128, %p129
      %p132 = scmp.ne.s32.totalorder %s117, %s131
      %p133 = scmp.eq.s32.totalorder %s23, 0
      %p134 = por %p132, %p133
      %s136 = sadd.s32 %s135, 1
      %p139 = scmp.eq.s32.totalorder %s17, 1
      %p140 = scmp.ne.s32.totalorder %s135, %s137
      %p141 = scmp.eq.s32.totalorder %s17, 0
      %p142 = por %p140, %p141
      %p143 = scmp.ne.s32.totalorder %s135, %s137
      %p144 = scmp.eq.s32.totalorder %s22, 1
      %p145 = por %p143, %p144
      %p146 = scmp.ne.s32.totalorder %s137, %s138
      %p147 = scmp.eq.s32.totalorder %s22, 0
      %p148 = por %p146, %p147
      %p149 = scmp.ne.s32.totalorder %s137, %s138
      %p150 = scmp.eq.s32.totalorder %s23, 1
      %p151 = por %p149, %p150
      %p153 = scmp.ne.s32.totalorder %s138, %s152
      %p154 = scmp.eq.s32.totalorder %s23, 0
      %p155 = por %p153, %p154
      %p156 = scmp.le.s32.totalorder 1, %s17
      %p157 = scmp.lt.s32.totalorder %s17, 3
      %p158 = pnand %p156, %p157
      %p159 = pneg %p158
      // Predicated region
      $region9: #{cmpgnn_forward.1} parent=5 // pred_check
        _
      $region10: #{cmpgnn_forward.1} parent=5 // pred_check_branch
        %161 = sbr.rel (%p158) target = $region12
      $region11: #{cmpgnn_forward.1} parent=5 // pred_region
        %s162 = ssub.s32 %s17, 1
        // Predicated region
        $region13: #{cmpgnn_forward.1} parent=11 // pred_check
          %p163 = pneg %p38
        $region14: #{cmpgnn_forward.1} parent=11 // pred_check_branch
          %165 = sbr.rel (%p163) target = $region16
        $region15: #{cmpgnn_forward.1} parent=11 // pred_region
          %s167 = ssub.s32 2048, 2048
          %168 = vsyncadd [#allocation4], %s167
          %s169 = sshll.u32 [#allocation3], 4
          %s170 = int_to_ptr.vmem [resolvable:$true] %s169
          %175 = dma.hbm_to_vmem [thread:$0]  %s0, 2048, %s170, [#allocation4], 128, 128, 8
        $region16: #{cmpgnn_forward.1} parent=11 // pred_fallthru
          _
        // Predicated region
        $region17: #{cmpgnn_forward.1} parent=11 // pred_check
          %p176 = pneg %p85
        $region18: #{cmpgnn_forward.1} parent=11 // pred_check_branch
          %178 = sbr.rel (%p176) target = $region20
        $region19: #{cmpgnn_forward.1} parent=11 // pred_region
          %s180 = ssub.s32 1024, 1024
          %181 = vsyncadd [#allocation7], %s180
          %s182 = sshll.u32 [#allocation8], 4
          %s183 = int_to_ptr.vmem [resolvable:$true] %s182
          %188 = dma.hbm_to_vmem [thread:$0]  %s2, 1024, %s183, [#allocation7], 64, 64, 4
        $region20: #{cmpgnn_forward.1} parent=11 // pred_fallthru
          _
        // Predicated region
        $region21: #{cmpgnn_forward.1} parent=11 // pred_check
          %p189 = pneg %p106
        $region22: #{cmpgnn_forward.1} parent=11 // pred_check_branch
          %191 = sbr.rel (%p189) target = $region24
        $region23: #{cmpgnn_forward.1} parent=11 // pred_region
          %s193 = ssub.s32 1024, 1024
          %194 = vsyncadd [#allocation10], %s193
          %s195 = sshll.u32 [#allocation9], 4
          %s196 = int_to_ptr.vmem [resolvable:$true] %s195
          %201 = dma.hbm_to_vmem [thread:$0]  %s3, 1024, %s196, [#allocation10], 64, 64, 4
        $region24: #{cmpgnn_forward.1} parent=11 // pred_fallthru
          _
        // Predicated region
        $region25: #{cmpgnn_forward.1} parent=11 // pred_check
          %p202 = pneg %p127
        $region26: #{cmpgnn_forward.1} parent=11 // pred_check_branch
          %204 = sbr.rel (%p202) target = $region28
        $region27: #{cmpgnn_forward.1} parent=11 // pred_region
          %s206 = ssub.s32 16, 16
          %207 = vsyncadd [#allocation10], %s206
          %s209 = sshll.u32 [#allocation11], 4
          %s210 = int_to_ptr.vmem [resolvable:$true] %s209
          %212 = dma.hbm_to_vmem [thread:$0]  %s4, 16, %s210, [#allocation10]
        $region28: #{cmpgnn_forward.1} parent=11 // pred_fallthru
          _
      $region12: #{cmpgnn_forward.1} parent=5 // pred_fallthru
        _
      %p213 = scmp.lt.s32.totalorder %s17, 2
      // Predicated region
      $region29: #{cmpgnn_forward.1} parent=5 // pred_check
        %p214 = pneg %p213
      $region30: #{cmpgnn_forward.1} parent=5 // pred_check_branch
        %216 = sbr.rel (%p214) target = $region32
      $region31: #{cmpgnn_forward.1} parent=5 // pred_region
        // Predicated region
        $region33: #{cmpgnn_forward.1} parent=31 // pred_check
          %p217 = pneg %p58
        $region34: #{cmpgnn_forward.1} parent=31 // pred_check_branch
          %219 = sbr.rel (%p217) target = $region36
        $region35: #{cmpgnn_forward.1} parent=31 // pred_region
          %s220 = sand.u32 %s17, 1
          %s221 = scalar_lea.sflag [#allocation7], %s220
          %s222 = sand.u32 %s48, 1
          %s223 = smul.addr %s222, 192
          %s224 = scalar_lea.vmem [#allocation6], %s223
          %s226 = ssub.s32 3072, 3072
          %227 = vsyncadd %s221, %s226
          %s228 = smul.addr %s17, 48
          %s229 = smul.addr %s228, 64
          %s230 = scalar_lea.hbm %s1, %s229
          %s231 = sshll.u32 %s224, 4
          %s232 = int_to_ptr.vmem [resolvable:$true] %s231
          %237 = dma.hbm_to_vmem [thread:$0]  %s230, 3072, %s232, %s221, 192, 192, 12
        $region36: #{cmpgnn_forward.1} parent=31 // pred_fallthru
          _
      $region32: #{cmpgnn_forward.1} parent=5 // pred_fallthru
        _
      %p238 = scmp.le.s32.totalorder 1, %s17
      %p239 = scmp.lt.s32.totalorder %s17, 3
      %p240 = pnand %p238, %p239
      %p241 = pneg %p240
      // Predicated region
      $region37: #{cmpgnn_forward.1} parent=5 // pred_check
        _
      $region38: #{cmpgnn_forward.1} parent=5 // pred_check_branch
        %243 = sbr.rel (%p240) target = $region40
      $region39: #{cmpgnn_forward.1} parent=5 // pred_region
        %s244 = ssub.s32 %s17, 1
        // Predicated region
        $region41: #{cmpgnn_forward.1} parent=39 // pred_check
          %p245 = pneg %p38
        $region42: #{cmpgnn_forward.1} parent=39 // pred_check_branch
          %247 = sbr.rel (%p245) target = $region44
        $region43: #{cmpgnn_forward.1} parent=39 // pred_region
          %248 = dma.done [#allocation4], 2048
        $region44: #{cmpgnn_forward.1} parent=39 // pred_fallthru
          _
        %s249 = sand.u32 %s22, 1
        %s250 = scalar_lea.sflag [#allocation7], %s249
        %s251 = sand.u32 %s51, 1
        %s252 = smul.addr %s251, 192
        %s253 = scalar_lea.vmem [#allocation6], %s252
        // Predicated region
        $region45: #{cmpgnn_forward.1} parent=39 // pred_check
          %p254 = pneg %p64
        $region46: #{cmpgnn_forward.1} parent=39 // pred_check_branch
          %256 = sbr.rel (%p254) target = $region48
        $region47: #{cmpgnn_forward.1} parent=39 // pred_region
          %257 = dma.done %s250, 3072
        $region48: #{cmpgnn_forward.1} parent=39 // pred_fallthru
          _
        // Predicated region
        $region49: #{cmpgnn_forward.1} parent=39 // pred_check
          %p258 = pneg %p85
        $region50: #{cmpgnn_forward.1} parent=39 // pred_check_branch
          %260 = sbr.rel (%p258) target = $region52
        $region51: #{cmpgnn_forward.1} parent=39 // pred_region
          %261 = dma.done [#allocation7], 1024
        $region52: #{cmpgnn_forward.1} parent=39 // pred_fallthru
          _
        // Predicated region
        $region53: #{cmpgnn_forward.1} parent=39 // pred_check
          %p262 = pneg %p106
        $region54: #{cmpgnn_forward.1} parent=39 // pred_check_branch
          %264 = sbr.rel (%p262) target = $region56
        $region55: #{cmpgnn_forward.1} parent=39 // pred_region
          %265 = dma.done [#allocation10], 1024
        $region56: #{cmpgnn_forward.1} parent=39 // pred_fallthru
          _
        // Predicated region
        $region57: #{cmpgnn_forward.1} parent=39 // pred_check
          %p266 = pneg %p127
        $region58: #{cmpgnn_forward.1} parent=39 // pred_check_branch
          %268 = sbr.rel (%p266) target = $region60
        $region59: #{cmpgnn_forward.1} parent=39 // pred_region
          %269 = dma.done [#allocation10], 16
        $region60: #{cmpgnn_forward.1} parent=39 // pred_fallthru
          _
        %p270 = pneg %p38
        %p271 = pneg %p35
        %s272 = sand.u32 %s22, 1
        %s273 = scalar_lea.sflag [#allocation7], %s272
        %s274 = sand.u32 %s51, 1
        %s275 = smul.addr %s274, 192
        %s276 = scalar_lea.vmem [#allocation6], %s275
        %p277 = pneg %p64
        %p278 = pneg %p61
        %p279 = pneg %p85
        %p280 = pneg %p82
        %p281 = pneg %p106
        %p282 = pneg %p103
        %p283 = pneg %p127
        %p284 = pneg %p124
        %p285 = pneg %p148
        %p286 = pneg %p145
        %p288 = scmp.eq.s32.totalorder %s22, 0
        // Predicated region
        $region61: #{cmpgnn_forward.1} parent=39 // pred_check
          %p289 = pneg %p288
        $region62: #{cmpgnn_forward.1} parent=39 // pred_check_branch
          %291 = sbr.rel (%p289) target = $region64
        $region63: #{cmpgnn_forward.1} parent=39 // pred_region
          %v292 = vld [vmem:[#allocation3] sm:$0xff]
          %v293 = vld [vmem:[#allocation3 + $0x8] sm:$0xff]
          %v294 = vld [vmem:[#allocation3 + $0x10] sm:$0xff]
          %v295 = vld [vmem:[#allocation3 + $0x18] sm:$0xff]
          %v296 = vld [vmem:[#allocation3 + $0x20] sm:$0xff]
          %v297 = vld [vmem:[#allocation3 + $0x28] sm:$0xff]
          %v298 = vld [vmem:[#allocation3 + $0x30] sm:$0xff]
          %v299 = vld [vmem:[#allocation3 + $0x38] sm:$0xff]
          %v300 = vld [vmem:[#allocation3 + $0x40] sm:$0xff]
          %v301 = vld [vmem:[#allocation3 + $0x48] sm:$0xff]
          %v302 = vld [vmem:[#allocation3 + $0x50] sm:$0xff]
          %v303 = vld [vmem:[#allocation3 + $0x58] sm:$0xff]
          %v304 = vld [vmem:[#allocation3 + $0x60] sm:$0xff]
          %v305 = vld [vmem:[#allocation3 + $0x68] sm:$0xff]
          %v306 = vld [vmem:[#allocation3 + $0x70] sm:$0xff]
          %v307 = vld [vmem:[#allocation3 + $0x78] sm:$0xff]
          %308 = vst [vmem:[#allocation2] sm:$0xff] %v292
          %309 = vst [vmem:[#allocation2 + $0x8] sm:$0xff] %v293
          %310 = vst [vmem:[#allocation2 + $0x10] sm:$0xff] %v294
          %311 = vst [vmem:[#allocation2 + $0x18] sm:$0xff] %v295
          %312 = vst [vmem:[#allocation2 + $0x20] sm:$0xff] %v296
          %313 = vst [vmem:[#allocation2 + $0x28] sm:$0xff] %v297
          %314 = vst [vmem:[#allocation2 + $0x30] sm:$0xff] %v298
          %315 = vst [vmem:[#allocation2 + $0x38] sm:$0xff] %v299
          %316 = vst [vmem:[#allocation2 + $0x40] sm:$0xff] %v300
          %317 = vst [vmem:[#allocation2 + $0x48] sm:$0xff] %v301
          %318 = vst [vmem:[#allocation2 + $0x50] sm:$0xff] %v302
          %319 = vst [vmem:[#allocation2 + $0x58] sm:$0xff] %v303
          %320 = vst [vmem:[#allocation2 + $0x60] sm:$0xff] %v304
          %321 = vst [vmem:[#allocation2 + $0x68] sm:$0xff] %v305
          %322 = vst [vmem:[#allocation2 + $0x70] sm:$0xff] %v306
          %323 = vst [vmem:[#allocation2 + $0x78] sm:$0xff] %v307
        $region64: #{cmpgnn_forward.1} parent=39 // pred_fallthru
          _
        %v324 = vld [vmem:[#allocation2] sm:$0xff]
        %v325 = vld [vmem:[#allocation2 + $0x8] sm:$0xff]
        %v326 = vld [vmem:[#allocation2 + $0x10] sm:$0xff]
        %v327 = vld [vmem:[#allocation2 + $0x18] sm:$0xff]
        %v328 = vld [vmem:[#allocation2 + $0x20] sm:$0xff]
        %v329 = vld [vmem:[#allocation2 + $0x28] sm:$0xff]
        %v330 = vld [vmem:[#allocation2 + $0x30] sm:$0xff]
        %v331 = vld [vmem:[#allocation2 + $0x38] sm:$0xff]
        %v332 = vld [vmem:[#allocation2 + $0x40] sm:$0xff]
        %v333 = vld [vmem:[#allocation2 + $0x48] sm:$0xff]
        %v334 = vld [vmem:[#allocation2 + $0x50] sm:$0xff]
        %v335 = vld [vmem:[#allocation2 + $0x58] sm:$0xff]
        %v336 = vld [vmem:[#allocation2 + $0x60] sm:$0xff]
        %v337 = vld [vmem:[#allocation2 + $0x68] sm:$0xff]
        %v338 = vld [vmem:[#allocation2 + $0x70] sm:$0xff]
        %v339 = vld [vmem:[#allocation2 + $0x78] sm:$0xff]
        %v340 = vpack.c.bf16 %v325, %v324
        %v341 = vpack.c.bf16 %v327, %v326
        %v342 = vpack.c.bf16 %v329, %v328
        %v343 = vpack.c.bf16 %v331, %v330
        %v344 = vpack.c.bf16 %v333, %v332
        %v345 = vpack.c.bf16 %v335, %v334
        %v346 = vpack.c.bf16 %v337, %v336
        %v347 = vpack.c.bf16 %v339, %v338
        %v348 = vld [vmem:[%s253] sm:$0xff]
        %v349 = vld [vmem:[%s253 + $0x8] sm:$0xf]
        %v350 = vld [vmem:[%s253 + $0xc] sm:$0xff]
        %v351 = vld [vmem:[%s253 + $0x14] sm:$0xf]
        %v352 = vld [vmem:[%s253 + $0x18] sm:$0xff]
        %v353 = vld [vmem:[%s253 + $0x20] sm:$0xf]
        %v354 = vld [vmem:[%s253 + $0x24] sm:$0xff]
        %v355 = vld [vmem:[%s253 + $0x2c] sm:$0xf]
        %v356 = vld [vmem:[%s253 + $0x30] sm:$0xff]
        %v357 = vld [vmem:[%s253 + $0x38] sm:$0xf]
        %v358 = vld [vmem:[%s253 + $0x3c] sm:$0xff]
        %v359 = vld [vmem:[%s253 + $0x44] sm:$0xf]
        %v360 = vld [vmem:[%s253 + $0x48] sm:$0xff]
        %v361 = vld [vmem:[%s253 + $0x50] sm:$0xf]
        %v362 = vld [vmem:[%s253 + $0x54] sm:$0xff]
        %v363 = vld [vmem:[%s253 + $0x5c] sm:$0xf]
        %v364 = vld [vmem:[%s253 + $0x60] sm:$0xff]
        %v365 = vld [vmem:[%s253 + $0x68] sm:$0xf]
        %v366 = vld [vmem:[%s253 + $0x6c] sm:$0xff]
        %v367 = vld [vmem:[%s253 + $0x74] sm:$0xf]
        %v368 = vld [vmem:[%s253 + $0x78] sm:$0xff]
        %v369 = vld [vmem:[%s253 + $0x80] sm:$0xf]
        %v370 = vld [vmem:[%s253 + $0x84] sm:$0xff]
        %v371 = vld [vmem:[%s253 + $0x8c] sm:$0xf]
        %v372 = vld [vmem:[%s253 + $0x90] sm:$0xff]
        %v373 = vld [vmem:[%s253 + $0x98] sm:$0xf]
        %v374 = vld [vmem:[%s253 + $0x9c] sm:$0xff]
        %v375 = vld [vmem:[%s253 + $0xa4] sm:$0xf]
        %v376 = vld [vmem:[%s253 + $0xa8] sm:$0xff]
        %v377 = vld [vmem:[%s253 + $0xb0] sm:$0xf]
        %v378 = vld [vmem:[%s253 + $0xb4] sm:$0xff]
        %v379 = vld [vmem:[%s253 + $0xbc] sm:$0xf]
        %v412 = vunpack.c.l.b16 %v348
        %v413 = vunpack.c.h.b16 %v348
        %v414 = vunpack.c.l.b16 %v349
        %v415 = vunpack.c.l.b16 %v350
        %v416 = vunpack.c.h.b16 %v350
        %v417 = vunpack.c.l.b16 %v351
        %v418 = vunpack.c.l.b16 %v352
        %v419 = vunpack.c.h.b16 %v352
        %v420 = vunpack.c.l.b16 %v353
        %v421 = vunpack.c.l.b16 %v354
        %v422 = vunpack.c.h.b16 %v354
        %v423 = vunpack.c.l.b16 %v355
        %v424 = vunpack.c.l.b16 %v356
        %v425 = vunpack.c.h.b16 %v356
        %v426 = vunpack.c.l.b16 %v357
        %v427 = vunpack.c.l.b16 %v358
        %v428 = vunpack.c.h.b16 %v358
        %v429 = vunpack.c.l.b16 %v359
        %v430 = vunpack.c.l.b16 %v360
        %v431 = vunpack.c.h.b16 %v360
        %v432 = vunpack.c.l.b16 %v361
        %v433 = vunpack.c.l.b16 %v362
        %v434 = vunpack.c.h.b16 %v362
        %v435 = vunpack.c.l.b16 %v363
        %v436 = vunpack.c.l.b16 %v364
        %v437 = vunpack.c.h.b16 %v364
        %v438 = vunpack.c.l.b16 %v365
        %v439 = vunpack.c.l.b16 %v366
        %v440 = vunpack.c.h.b16 %v366
        %v441 = vunpack.c.l.b16 %v367
        %v442 = vunpack.c.l.b16 %v368
        %v443 = vunpack.c.h.b16 %v368
        %v444 = vunpack.c.l.b16 %v369
        %v445 = vunpack.c.l.b16 %v370
        %v446 = vunpack.c.h.b16 %v370
        %v447 = vunpack.c.l.b16 %v371
        %v448 = vunpack.c.l.b16 %v372
        %v449 = vunpack.c.h.b16 %v372
        %v450 = vunpack.c.l.b16 %v373
        %v451 = vunpack.c.l.b16 %v374
        %v452 = vunpack.c.h.b16 %v374
        %v453 = vunpack.c.l.b16 %v375
        %v454 = vunpack.c.l.b16 %v376
        %v455 = vunpack.c.h.b16 %v376
        %v456 = vunpack.c.l.b16 %v377
        %v457 = vunpack.c.l.b16 %v378
        %v458 = vunpack.c.h.b16 %v378
        %v459 = vunpack.c.l.b16 %v379
        %v460 = vpack.c.b16 %v415, %v412
        %v461 = vpack.c.b16 %v416, %v413
        %v462 = vpack.c.b16 %v417, %v414
        %v463 = vpack.c.b16 %v421, %v418
        %v464 = vpack.c.b16 %v422, %v419
        %v465 = vpack.c.b16 %v423, %v420
        %v466 = vpack.c.b16 %v427, %v424
        %v467 = vpack.c.b16 %v428, %v425
        %v468 = vpack.c.b16 %v429, %v426
        %v469 = vpack.c.b16 %v433, %v430
        %v470 = vpack.c.b16 %v434, %v431
        %v471 = vpack.c.b16 %v435, %v432
        %v472 = vpack.c.b16 %v439, %v436
        %v473 = vpack.c.b16 %v440, %v437
        %v474 = vpack.c.b16 %v441, %v438
        %v475 = vpack.c.b16 %v445, %v442
        %v476 = vpack.c.b16 %v446, %v443
        %v477 = vpack.c.b16 %v447, %v444
        %v478 = vpack.c.b16 %v451, %v448
        %v479 = vpack.c.b16 %v452, %v449
        %v480 = vpack.c.b16 %v453, %v450
        %v481 = vpack.c.b16 %v457, %v454
        %v482 = vpack.c.b16 %v458, %v455
        %v483 = vpack.c.b16 %v459, %v456
        %508 = vmatprep.subr.bf16.mxu0 %v461
        %509 = vmatpush1.bf16.msra.mxu0 %v460
        %510 = vmatprep.subr.bf16.mxu0 %v464
        %511 = vmatpush1.bf16.msra.mxu0 %v463
        %512 = vmatprep.subr.bf16.mxu0 %v467
        %513 = vmatpush1.bf16.msra.mxu0 %v466
        %514 = vmatprep.subr.bf16.mxu0 %v470
        %515 = vmatpush1.bf16.msra.mxu0 %v469
        %516 = vmatprep.subr.bf16.mxu0 %v473
        %517 = vmatpush1.bf16.msra.mxu0 %v472
        %518 = vmatprep.subr.bf16.mxu0 %v476
        %519 = vmatpush1.bf16.msra.mxu0 %v475
        %520 = vmatprep.subr.bf16.mxu0 %v479
        %521 = vmatpush1.bf16.msra.mxu0 %v478
        %522 = vmatprep.subr.bf16.mxu0 %v482
        %523 = vmatpush1.bf16.msra.mxu0 %v481
        %524 = vmatprep.subr.bf16.mxu0 0
        %525 = vmatpush1.bf16.msra.mxu0 0
        %526 = vmatprep.subr.bf16.mxu0 0
        %527 = vmatpush1.bf16.msra.mxu0 0
        %528 = vmatprep.subr.bf16.mxu0 0
        %529 = vmatpush1.bf16.msra.mxu0 0
        %530 = vmatprep.subr.bf16.mxu0 0
        %531 = vmatpush1.bf16.msra.mxu0 0
        %532 = vmatprep.subr.bf16.mxu0 0
        %533 = vmatpush1.bf16.msra.mxu0 0
        %534 = vmatprep.subr.bf16.mxu0 0
        %535 = vmatpush1.bf16.msra.mxu0 0
        %536 = vmatprep.subr.bf16.mxu0 0
        %537 = vmatpush1.bf16.msra.mxu0 0
        %538 = vmatprep.subr.bf16.mxu0 0
        %539 = vmatpush1.bf16.msra.mxu0 0
        %540 = vmatprep.mubr.bf16.mxu0 0
        %541 = vmatmul.mubr.bf16.gmra.mrb[0].mxu0 %v340
        %v542 = vpop.f32.mrb[0].mxu0
        %v543 = vadd.f32 0.0, %v542
        %v544 = vpop.f32.mrb[0].mxu0
        %v545 = vadd.f32 0.0, %v544
        %v546 = vpop.f32.mrb[0].mxu0
        %v547 = vadd.f32 0.0, %v546
        %v548 = vpop.f32.mrb[0].mxu0
        %v549 = vadd.f32 0.0, %v548
        %550 = vmatprep.mubr.bf16.mxu0 0
        %551 = vmatmul.mubr.bf16.gmra.mrb[0].mxu0 %v341
        %v552 = vpop.f32.mrb[0].mxu0
        %v553 = vadd.f32 0.0, %v552
        %v554 = vpop.f32.mrb[0].mxu0
        %v555 = vadd.f32 0.0, %v554
        %v556 = vpop.f32.mrb[0].mxu0
        %v557 = vadd.f32 0.0, %v556
        %v558 = vpop.f32.mrb[0].mxu0
        %v559 = vadd.f32 0.0, %v558
        %560 = vmatprep.mubr.bf16.mxu0 0
        %561 = vmatmul.mubr.bf16.gmra.mrb[0].mxu0 %v342
        %v562 = vpop.f32.mrb[0].mxu0
        %v563 = vadd.f32 0.0, %v562
        %v564 = vpop.f32.mrb[0].mxu0
        %v565 = vadd.f32 0.0, %v564
        %v566 = vpop.f32.mrb[0].mxu0
        %v567 = vadd.f32 0.0, %v566
        %v568 = vpop.f32.mrb[0].mxu0
        %v569 = vadd.f32 0.0, %v568
        %570 = vmatprep.mubr.bf16.mxu0 0
        %571 = vmatmul.mubr.bf16.gmra.mrb[0].mxu0 %v343
        %v572 = vpop.f32.mrb[0].mxu0
        %v573 = vadd.f32 0.0, %v572
        %v574 = vpop.f32.mrb[0].mxu0
        %v575 = vadd.f32 0.0, %v574
        %v576 = vpop.f32.mrb[0].mxu0
        %v577 = vadd.f32 0.0, %v576
        %v578 = vpop.f32.mrb[0].mxu0
        %v579 = vadd.f32 0.0, %v578
        %580 = vmatprep.mubr.bf16.mxu0 0
        %581 = vmatmul.mubr.bf16.gmra.mrb[0].mxu0 %v344
        %v582 = vpop.f32.mrb[0].mxu0
        %v583 = vadd.f32 0.0, %v582
        %v584 = vpop.f32.mrb[0].mxu0
        %v585 = vadd.f32 0.0, %v584
        %v586 = vpop.f32.mrb[0].mxu0
        %v587 = vadd.f32 0.0, %v586
        %v588 = vpop.f32.mrb[0].mxu0
        %v589 = vadd.f32 0.0, %v588
        %590 = vmatprep.mubr.bf16.mxu0 0
        %591 = vmatmul.mubr.bf16.gmra.mrb[0].mxu0 %v345
        %v592 = vpop.f32.mrb[0].mxu0
        %v593 = vadd.f32 0.0, %v592
        %v594 = vpop.f32.mrb[0].mxu0
        %v595 = vadd.f32 0.0, %v594
        %v596 = vpop.f32.mrb[0].mxu0
        %v597 = vadd.f32 0.0, %v596
        %v598 = vpop.f32.mrb[0].mxu0
        %v599 = vadd.f32 0.0, %v598
        %600 = vmatprep.mubr.bf16.mxu0 0
        %601 = vmatmul.mubr.bf16.gmra.mrb[0].mxu0 %v346
        %v602 = vpop.f32.mrb[0].mxu0
        %v603 = vadd.f32 0.0, %v602
        %v604 = vpop.f32.mrb[0].mxu0
        %v605 = vadd.f32 0.0, %v604
        %v606 = vpop.f32.mrb[0].mxu0
        %v607 = vadd.f32 0.0, %v606
        %v608 = vpop.f32.mrb[0].mxu0
        %v609 = vadd.f32 0.0, %v608
        %610 = vmatprep.mubr.bf16.mxu0 0
        %611 = vmatmul.mubr.bf16.gmra.mrb[0].mxu0 %v347
        %v612 = vpop.f32.mrb[0].mxu0
        %v613 = vadd.f32 0.0, %v612
        %v614 = vpop.f32.mrb[0].mxu0
        %v615 = vadd.f32 0.0, %v614
        %v616 = vpop.f32.mrb[0].mxu0
        %v617 = vadd.f32 0.0, %v616
        %v618 = vpop.f32.mrb[0].mxu0
        %v619 = vadd.f32 0.0, %v618
        %620 = vdwg.mxu0
        %621 = vmatprep.subr.bf16.mxu0 0
        %622 = vmatpush1.bf16.msra.mxu0 %v462
        %623 = vmatprep.subr.bf16.mxu0 0
        %624 = vmatpush1.bf16.msra.mxu0 %v465
        %625 = vmatprep.subr.bf16.mxu0 0
        %626 = vmatpush1.bf16.msra.mxu0 %v468
        %627 = vmatprep.subr.bf16.mxu0 0
        %628 = vmatpush1.bf16.msra.mxu0 %v471
        %629 = vmatprep.subr.bf16.mxu0 0
        %630 = vmatpush1.bf16.msra.mxu0 %v474
        %631 = vmatprep.subr.bf16.mxu0 0
        %632 = vmatpush1.bf16.msra.mxu0 %v477
        %633 = vmatprep.subr.bf16.mxu0 0
        %634 = vmatpush1.bf16.msra.mxu0 %v480
        %635 = vmatprep.subr.bf16.mxu0 0
        %636 = vmatpush1.bf16.msra.mxu0 %v483
        %637 = vmatprep.subr.bf16.mxu0 0
        %638 = vmatpush1.bf16.msra.mxu0 0
        %639 = vmatprep.subr.bf16.mxu0 0
        %640 = vmatpush1.bf16.msra.mxu0 0
        %641 = vmatprep.subr.bf16.mxu0 0
        %642 = vmatpush1.bf16.msra.mxu0 0
        %643 = vmatprep.subr.bf16.mxu0 0
        %644 = vmatpush1.bf16.msra.mxu0 0
        %645 = vmatprep.subr.bf16.mxu0 0
        %646 = vmatpush1.bf16.msra.mxu0 0
        %647 = vmatprep.subr.bf16.mxu0 0
        %648 = vmatpush1.bf16.msra.mxu0 0
        %649 = vmatprep.subr.bf16.mxu0 0
        %650 = vmatpush1.bf16.msra.mxu0 0
        %651 = vmatprep.subr.bf16.mxu0 0
        %652 = vmatpush1.bf16.msra.mxu0 0
        %653 = vmatprep.mubr.bf16.mxu0 0
        %654 = vmatmul.mubr.bf16.gmra.mrb[0].mxu0 %v340
        %v655 = vpop.f32.mrb[0].mxu0
        %v656 = vadd.f32 0.0, %v655
        %v657 = vpop.f32.mrb[0].mxu0
        %v658 = vpop.f32.mrb[0].mxu0
        %v659 = vadd.f32 0.0, %v658
        %v660 = vpop.f32.mrb[0].mxu0
        %661 = vmatprep.mubr.bf16.mxu0 0
        %662 = vmatmul.mubr.bf16.gmra.mrb[0].mxu0 %v341
        %v663 = vpop.f32.mrb[0].mxu0
        %v664 = vadd.f32 0.0, %v663
        %v665 = vpop.f32.mrb[0].mxu0
        %v666 = vpop.f32.mrb[0].mxu0
        %v667 = vadd.f32 0.0, %v666
        %v668 = vpop.f32.mrb[0].mxu0
        %669 = vmatprep.mubr.bf16.mxu0 0
        %670 = vmatmul.mubr.bf16.gmra.mrb[0].mxu0 %v342
        %v671 = vpop.f32.mrb[0].mxu0
        %v672 = vadd.f32 0.0, %v671
        %v673 = vpop.f32.mrb[0].mxu0
        %v674 = vpop.f32.mrb[0].mxu0
        %v675 = vadd.f32 0.0, %v674
        %v676 = vpop.f32.mrb[0].mxu0
        %677 = vmatprep.mubr.bf16.mxu0 0
        %678 = vmatmul.mubr.bf16.gmra.mrb[0].mxu0 %v343
        %v679 = vpop.f32.mrb[0].mxu0
        %v680 = vadd.f32 0.0, %v679
        %v681 = vpop.f32.mrb[0].mxu0
        %v682 = vpop.f32.mrb[0].mxu0
        %v683 = vadd.f32 0.0, %v682
        %v684 = vpop.f32.mrb[0].mxu0
        %685 = vmatprep.mubr.bf16.mxu0 0
        %686 = vmatmul.mubr.bf16.gmra.mrb[0].mxu0 %v344
        %v687 = vpop.f32.mrb[0].mxu0
        %v688 = vadd.f32 0.0, %v687
        %v689 = vpop.f32.mrb[0].mxu0
        %v690 = vpop.f32.mrb[0].mxu0
        %v691 = vadd.f32 0.0, %v690
        %v692 = vpop.f32.mrb[0].mxu0
        %693 = vmatprep.mubr.bf16.mxu0 0
        %694 = vmatmul.mubr.bf16.gmra.mrb[0].mxu0 %v345
        %v695 = vpop.f32.mrb[0].mxu0
        %v696 = vadd.f32 0.0, %v695
        %v697 = vpop.f32.mrb[0].mxu0
        %v698 = vpop.f32.mrb[0].mxu0
        %v699 = vadd.f32 0.0, %v698
        %v700 = vpop.f32.mrb[0].mxu0
        %701 = vmatprep.mubr.bf16.mxu0 0
        %702 = vmatmul.mubr.bf16.gmra.mrb[0].mxu0 %v346
        %v703 = vpop.f32.mrb[0].mxu0
        %v704 = vadd.f32 0.0, %v703
        %v705 = vpop.f32.mrb[0].mxu0
        %v706 = vpop.f32.mrb[0].mxu0
        %v707 = vadd.f32 0.0, %v706
        %v708 = vpop.f32.mrb[0].mxu0
        %709 = vmatprep.mubr.bf16.mxu0 0
        %710 = vmatmul.mubr.bf16.gmra.mrb[0].mxu0 %v347
        %v711 = vpop.f32.mrb[0].mxu0
        %v712 = vadd.f32 0.0, %v711
        %v713 = vpop.f32.mrb[0].mxu0
        %v714 = vpop.f32.mrb[0].mxu0
        %v715 = vadd.f32 0.0, %v714
        %v716 = vpop.f32.mrb[0].mxu0
        %717 = vdwg.mxu0
        %v718 = vmax.f32 %v656, 0.0
        %v719 = vmax.f32 %v659, 0.0
        %v720 = vmax.f32 %v664, 0.0
        %v721 = vmax.f32 %v667, 0.0
        %v722 = vmax.f32 %v672, 0.0
        %v723 = vmax.f32 %v675, 0.0
        %v724 = vmax.f32 %v680, 0.0
        %v725 = vmax.f32 %v683, 0.0
        %v726 = vmax.f32 %v688, 0.0
        %v727 = vmax.f32 %v691, 0.0
        %v728 = vmax.f32 %v696, 0.0
        %v729 = vmax.f32 %v699, 0.0
        %v730 = vmax.f32 %v704, 0.0
        %v731 = vmax.f32 %v707, 0.0
        %v732 = vmax.f32 %v712, 0.0
        %v733 = vmax.f32 %v715, 0.0
        %v734 = vpack.c.bf16 %v547, %v543
        %v735 = vpack.c.bf16 %v557, %v553
        %v736 = vpack.c.bf16 %v567, %v563
        %v737 = vpack.c.bf16 %v577, %v573
        %v738 = vpack.c.bf16 %v587, %v583
        %v739 = vpack.c.bf16 %v597, %v593
        %v740 = vpack.c.bf16 %v607, %v603
        %v741 = vpack.c.bf16 %v617, %v613
        %v742 = vpack.c.bf16 %v549, %v545
        %v743 = vpack.c.bf16 %v559, %v555
        %v744 = vpack.c.bf16 %v569, %v565
        %v745 = vpack.c.bf16 %v579, %v575
        %v746 = vpack.c.bf16 %v589, %v585
        %v747 = vpack.c.bf16 %v599, %v595
        %v748 = vpack.c.bf16 %v609, %v605
        %v749 = vpack.c.bf16 %v619, %v615
        %750 = vmatprep.subr.bf16.mxu0 0
        %751 = vmatpush1.bf16.xpose.msra.mxu0 %v734
        %752 = vmatprep.subr.bf16.mxu0 0
        %753 = vmatpush1.bf16.xpose.msra.mxu0 %v735
        %754 = vmatprep.subr.bf16.mxu0 0
        %755 = vmatpush1.bf16.xpose.msra.mxu0 %v736
        %756 = vmatprep.subr.bf16.mxu0 0
        %757 = vmatpush1.bf16.xpose.msra.mxu0 %v737
        %758 = vmatprep.subr.bf16.mxu0 0
        %759 = vmatpush1.bf16.xpose.msra.mxu0 %v738
        %760 = vmatprep.subr.bf16.mxu0 0
        %761 = vmatpush1.bf16.xpose.msra.mxu0 %v739
        %762 = vmatprep.subr.bf16.mxu0 0
        %763 = vmatpush1.bf16.xpose.msra.mxu0 %v740
        %764 = vmatprep.subr.bf16.mxu0 0
        %765 = vmatpush1.bf16.xpose.msra.mxu0 %v741
        %766 = vmatprep.subr.bf16.mxu0 0
        %767 = vmatpush1.bf16.xpose.msra.mxu0 0
        %768 = vmatprep.subr.bf16.mxu0 0
        %769 = vmatpush1.bf16.xpose.msra.mxu0 0
        %770 = vmatprep.subr.bf16.mxu0 0
        %771 = vmatpush1.bf16.xpose.msra.mxu0 0
        %772 = vmatprep.subr.bf16.mxu0 0
        %773 = vmatpush1.bf16.xpose.msra.mxu0 0
        %774 = vmatprep.subr.bf16.mxu0 0
        %775 = vmatpush1.bf16.xpose.msra.mxu0 0
        %776 = vmatprep.subr.bf16.mxu0 0
        %777 = vmatpush1.bf16.xpose.msra.mxu0 0
        %778 = vmatprep.subr.bf16.mxu0 0
        %779 = vmatpush1.bf16.xpose.msra.mxu0 0
        %780 = vmatprep.subr.bf16.mxu0 0
        %781 = vmatpush1.bf16.xpose.msra.mxu0 0
        %782 = vmatprep.mubr.bf16.mxu0 0
        %783 = vmatmul.mubr.bf16.gmra.mrb[0].mxu0 %v742
        %v784 = vpop.f32.mrb[0].mxu0
        %v785 = vadd.f32 0.0, %v784
        %v786 = vpop.f32.mrb[0].mxu0
        %v787 = vpop.f32.mrb[0].mxu0
        %v788 = vadd.f32 0.0, %v787
        %v789 = vpop.f32.mrb[0].mxu0
        %790 = vmatprep.mubr.bf16.mxu0 0
        %791 = vmatmul.mubr.bf16.gmra.mrb[0].mxu0 %v743
        %v792 = vpop.f32.mrb[0].mxu0
        %v793 = vadd.f32 0.0, %v792
        %v794 = vpop.f32.mrb[0].mxu0
        %v795 = vpop.f32.mrb[0].mxu0
        %v796 = vadd.f32 0.0, %v795
        %v797 = vpop.f32.mrb[0].mxu0
        %798 = vmatprep.mubr.bf16.mxu0 0
        %799 = vmatmul.mubr.bf16.gmra.mrb[0].mxu0 %v744
        %v800 = vpop.f32.mrb[0].mxu0
        %v801 = vadd.f32 0.0, %v800
        %v802 = vpop.f32.mrb[0].mxu0
        %v803 = vpop.f32.mrb[0].mxu0
        %v804 = vadd.f32 0.0, %v803
        %v805 = vpop.f32.mrb[0].mxu0
        %806 = vmatprep.mubr.bf16.mxu0 0
        %807 = vmatmul.mubr.bf16.gmra.mrb[0].mxu0 %v745
        %v808 = vpop.f32.mrb[0].mxu0
        %v809 = vadd.f32 0.0, %v808
        %v810 = vpop.f32.mrb[0].mxu0
        %v811 = vpop.f32.mrb[0].mxu0
        %v812 = vadd.f32 0.0, %v811
        %v813 = vpop.f32.mrb[0].mxu0
        %814 = vmatprep.mubr.bf16.mxu0 0
        %815 = vmatmul.mubr.bf16.gmra.mrb[0].mxu0 %v746
        %v816 = vpop.f32.mrb[0].mxu0
        %v817 = vadd.f32 0.0, %v816
        %v818 = vpop.f32.mrb[0].mxu0
        %v819 = vpop.f32.mrb[0].mxu0
        %v820 = vadd.f32 0.0, %v819
        %v821 = vpop.f32.mrb[0].mxu0
        %822 = vmatprep.mubr.bf16.mxu0 0
        %823 = vmatmul.mubr.bf16.gmra.mrb[0].mxu0 %v747
        %v824 = vpop.f32.mrb[0].mxu0
        %v825 = vadd.f32 0.0, %v824
        %v826 = vpop.f32.mrb[0].mxu0
        %v827 = vpop.f32.mrb[0].mxu0
        %v828 = vadd.f32 0.0, %v827
        %v829 = vpop.f32.mrb[0].mxu0
        %830 = vmatprep.mubr.bf16.mxu0 0
        %831 = vmatmul.mubr.bf16.gmra.mrb[0].mxu0 %v748
        %v832 = vpop.f32.mrb[0].mxu0
        %v833 = vadd.f32 0.0, %v832
        %v834 = vpop.f32.mrb[0].mxu0
        %v835 = vpop.f32.mrb[0].mxu0
        %v836 = vadd.f32 0.0, %v835
        %v837 = vpop.f32.mrb[0].mxu0
        %838 = vmatprep.mubr.bf16.mxu0 0
        %839 = vmatmul.mubr.bf16.gmra.mrb[0].mxu0 %v749
        %v840 = vpop.f32.mrb[0].mxu0
        %v841 = vadd.f32 0.0, %v840
        %v842 = vpop.f32.mrb[0].mxu0
        %v843 = vpop.f32.mrb[0].mxu0
        %v844 = vadd.f32 0.0, %v843
        %v845 = vpop.f32.mrb[0].mxu0
        %846 = vdwg.mxu0
        %v847 = vsub.f32 0.0, %v785
        %v848 = vsub.f32 0.0, %v788
        %v849 = vsub.f32 0.0, %v793
        %v850 = vsub.f32 0.0, %v796
        %v851 = vsub.f32 0.0, %v801
        %v852 = vsub.f32 0.0, %v804
        %v853 = vsub.f32 0.0, %v809
        %v854 = vsub.f32 0.0, %v812
        %v855 = vsub.f32 0.0, %v817
        %v856 = vsub.f32 0.0, %v820
        %v857 = vsub.f32 0.0, %v825
        %v858 = vsub.f32 0.0, %v828
        %v859 = vsub.f32 0.0, %v833
        %v860 = vsub.f32 0.0, %v836
        %v861 = vsub.f32 0.0, %v841
        %v862 = vsub.f32 0.0, %v844
        %v863 = vxor.u32 %v847, 2147483648
        %v864 = vxor.u32 %v848, 2147483648
        %v865 = vxor.u32 %v849, 2147483648
        %v866 = vxor.u32 %v850, 2147483648
        %v867 = vxor.u32 %v851, 2147483648
        %v868 = vxor.u32 %v852, 2147483648
        %v869 = vxor.u32 %v853, 2147483648
        %v870 = vxor.u32 %v854, 2147483648
        %v871 = vxor.u32 %v855, 2147483648
        %v872 = vxor.u32 %v856, 2147483648
        %v873 = vxor.u32 %v857, 2147483648
        %v874 = vxor.u32 %v858, 2147483648
        %v875 = vxor.u32 %v859, 2147483648
        %v876 = vxor.u32 %v860, 2147483648
        %v877 = vxor.u32 %v861, 2147483648
        %v878 = vxor.u32 %v862, 2147483648
        %v879 = vmul.f32 %v863, 1.442695
        %v880 = vpow.pop %v879
        %v881 = vmul.f32 %v864, 1.442695
        %v882 = vpow.pop %v881
        %v883 = vmul.f32 %v865, 1.442695
        %v884 = vpow.pop %v883
        %v885 = vmul.f32 %v866, 1.442695
        %v886 = vpow.pop %v885
        %v887 = vmul.f32 %v867, 1.442695
        %v888 = vpow.pop %v887
        %v889 = vmul.f32 %v868, 1.442695
        %v890 = vpow.pop %v889
        %v891 = vmul.f32 %v869, 1.442695
        %v892 = vpow.pop %v891
        %v893 = vmul.f32 %v870, 1.442695
        %v894 = vpow.pop %v893
        %v895 = vmul.f32 %v871, 1.442695
        %v896 = vpow.pop %v895
        %v897 = vmul.f32 %v872, 1.442695
        %v898 = vpow.pop %v897
        %v899 = vmul.f32 %v873, 1.442695
        %v900 = vpow.pop %v899
        %v901 = vmul.f32 %v874, 1.442695
        %v902 = vpow.pop %v901
        %v903 = vmul.f32 %v875, 1.442695
        %v904 = vpow.pop %v903
        %v905 = vmul.f32 %v876, 1.442695
        %v906 = vpow.pop %v905
        %v907 = vmul.f32 %v877, 1.442695
        %v908 = vpow.pop %v907
        %v909 = vmul.f32 %v878, 1.442695
        %v910 = vpow.pop %v909
        %v911 = vadd.f32 %v880, 1.0
        %v912 = vadd.f32 %v882, 1.0
        %v913 = vadd.f32 %v884, 1.0
        %v914 = vadd.f32 %v886, 1.0
        %v915 = vadd.f32 %v888, 1.0
        %v916 = vadd.f32 %v890, 1.0
        %v917 = vadd.f32 %v892, 1.0
        %v918 = vadd.f32 %v894, 1.0
        %v919 = vadd.f32 %v896, 1.0
        %v920 = vadd.f32 %v898, 1.0
        %v921 = vadd.f32 %v900, 1.0
        %v922 = vadd.f32 %v902, 1.0
        %v923 = vadd.f32 %v904, 1.0
        %v924 = vadd.f32 %v906, 1.0
        %v925 = vadd.f32 %v908, 1.0
        %v926 = vadd.f32 %v910, 1.0
        %v927 = vrcp.pop %v911
        %v928 = vmul.f32 1.0, %v927
        %v929 = vrcp.pop %v912
        %v930 = vmul.f32 1.0, %v929
        %v931 = vrcp.pop %v913
        %v932 = vmul.f32 1.0, %v931
        %v933 = vrcp.pop %v914
        %v934 = vmul.f32 1.0, %v933
        %v935 = vrcp.pop %v915
        %v936 = vmul.f32 1.0, %v935
        %v937 = vrcp.pop %v916
        %v938 = vmul.f32 1.0, %v937
        %v939 = vrcp.pop %v917
        %v940 = vmul.f32 1.0, %v939
        %v941 = vrcp.pop %v918
        %v942 = vmul.f32 1.0, %v941
        %v943 = vrcp.pop %v919
        %v944 = vmul.f32 1.0, %v943
        %v945 = vrcp.pop %v920
        %v946 = vmul.f32 1.0, %v945
        %v947 = vrcp.pop %v921
        %v948 = vmul.f32 1.0, %v947
        %v949 = vrcp.pop %v922
        %v950 = vmul.f32 1.0, %v949
        %v951 = vrcp.pop %v923
        %v952 = vmul.f32 1.0, %v951
        %v953 = vrcp.pop %v924
        %v954 = vmul.f32 1.0, %v953
        %v955 = vrcp.pop %v925
        %v956 = vmul.f32 1.0, %v955
        %v957 = vrcp.pop %v926
        %v958 = vmul.f32 1.0, %v957
        %v959 = vld [vmem:[#allocation8] sm:$0xf]
        %v960 = vld [vmem:[#allocation8 + $0x4] sm:$0xf]
        %v961 = vld [vmem:[#allocation8 + $0x8] sm:$0xf]
        %v962 = vld [vmem:[#allocation8 + $0xc] sm:$0xf]
        %v963 = vld [vmem:[#allocation8 + $0x10] sm:$0xf]
        %v964 = vld [vmem:[#allocation8 + $0x14] sm:$0xf]
        %v965 = vld [vmem:[#allocation8 + $0x18] sm:$0xf]
        %v966 = vld [vmem:[#allocation8 + $0x1c] sm:$0xf]
        %v967 = vld [vmem:[#allocation8 + $0x20] sm:$0xf]
        %v968 = vld [vmem:[#allocation8 + $0x24] sm:$0xf]
        %v969 = vld [vmem:[#allocation8 + $0x28] sm:$0xf]
        %v970 = vld [vmem:[#allocation8 + $0x2c] sm:$0xf]
        %v971 = vld [vmem:[#allocation8 + $0x30] sm:$0xf]
        %v972 = vld [vmem:[#allocation8 + $0x34] sm:$0xf]
        %v973 = vld [vmem:[#allocation8 + $0x38] sm:$0xf]
        %v974 = vld [vmem:[#allocation8 + $0x3c] sm:$0xf]
        %v975 = vpack.c.bf16 %v930, %v928
        %v976 = vpack.c.bf16 %v934, %v932
        %v977 = vpack.c.bf16 %v938, %v936
        %v978 = vpack.c.bf16 %v942, %v940
        %v979 = vpack.c.bf16 %v946, %v944
        %v980 = vpack.c.bf16 %v950, %v948
        %v981 = vpack.c.bf16 %v954, %v952
        %v982 = vpack.c.bf16 %v958, %v956
        %v991 = vunpack.c.l.b16 %v975
        %v992 = vunpack.c.h.b16 %v975
        %v993 = vunpack.c.l.b16 %v976
        %v994 = vunpack.c.h.b16 %v976
        %v995 = vunpack.c.l.b16 %v977
        %v996 = vunpack.c.h.b16 %v977
        %v997 = vunpack.c.l.b16 %v978
        %v998 = vunpack.c.h.b16 %v978
        %v999 = vunpack.c.l.b16 %v979
        %v1000 = vunpack.c.h.b16 %v979
        %v1001 = vunpack.c.l.b16 %v980
        %v1002 = vunpack.c.h.b16 %v980
        %v1003 = vunpack.c.l.b16 %v981
        %v1004 = vunpack.c.h.b16 %v981
        %v1005 = vunpack.c.l.b16 %v982
        %v1006 = vunpack.c.h.b16 %v982
        %v1007 = vpack.c.b16 %v991, %v991
        %v1008 = vpack.c.b16 %v992, %v992
        %v1009 = vpack.c.b16 %v993, %v993
        %v1010 = vpack.c.b16 %v994, %v994
        %v1011 = vpack.c.b16 %v995, %v995
        %v1012 = vpack.c.b16 %v996, %v996
        %v1013 = vpack.c.b16 %v997, %v997
        %v1014 = vpack.c.b16 %v998, %v998
        %v1015 = vpack.c.b16 %v999, %v999
        %v1016 = vpack.c.b16 %v1000, %v1000
        %v1017 = vpack.c.b16 %v1001, %v1001
        %v1018 = vpack.c.b16 %v1002, %v1002
        %v1019 = vpack.c.b16 %v1003, %v1003
        %v1020 = vpack.c.b16 %v1004, %v1004
        %v1021 = vpack.c.b16 %v1005, %v1005
        %v1022 = vpack.c.b16 %v1006, %v1006
        %v1039 = vmul.bf16 %v959, %v1007
        %v1040 = vmul.bf16 %v960, %v1008
        %v1041 = vmul.bf16 %v961, %v1009
        %v1042 = vmul.bf16 %v962, %v1010
        %v1043 = vmul.bf16 %v963, %v1011
        %v1044 = vmul.bf16 %v964, %v1012
        %v1045 = vmul.bf16 %v965, %v1013
        %v1046 = vmul.bf16 %v966, %v1014
        %v1047 = vmul.bf16 %v967, %v1015
        %v1048 = vmul.bf16 %v968, %v1016
        %v1049 = vmul.bf16 %v969, %v1017
        %v1050 = vmul.bf16 %v970, %v1018
        %v1051 = vmul.bf16 %v971, %v1019
        %v1052 = vmul.bf16 %v972, %v1020
        %v1053 = vmul.bf16 %v973, %v1021
        %v1054 = vmul.bf16 %v974, %v1022
        %v1055 = vadd.f32 %v543, %v545
        %v1056 = vadd.f32 %v547, %v549
        %v1057 = vadd.f32 %v553, %v555
        %v1058 = vadd.f32 %v557, %v559
        %v1059 = vadd.f32 %v563, %v565
        %v1060 = vadd.f32 %v567, %v569
        %v1061 = vadd.f32 %v573, %v575
        %v1062 = vadd.f32 %v577, %v579
        %v1063 = vadd.f32 %v583, %v585
        %v1064 = vadd.f32 %v587, %v589
        %v1065 = vadd.f32 %v593, %v595
        %v1066 = vadd.f32 %v597, %v599
        %v1067 = vadd.f32 %v603, %v605
        %v1068 = vadd.f32 %v607, %v609
        %v1069 = vadd.f32 %v613, %v615
        %v1070 = vadd.f32 %v617, %v619
        %v1071 = vpack.c.bf16 %v1056, %v1055
        %v1072 = vpack.c.bf16 %v1058, %v1057
        %v1073 = vpack.c.bf16 %v1060, %v1059
        %v1074 = vpack.c.bf16 %v1062, %v1061
        %v1075 = vpack.c.bf16 %v1064, %v1063
        %v1076 = vpack.c.bf16 %v1066, %v1065
        %v1077 = vpack.c.bf16 %v1068, %v1067
        %v1078 = vpack.c.bf16 %v1070, %v1069
        %v1095 = vunpack.c.l.b16 %v1039
        %v1096 = vunpack.c.l.b16 %v1040
        %v1097 = vunpack.c.l.b16 %v1041
        %v1098 = vunpack.c.l.b16 %v1042
        %v1099 = vunpack.c.l.b16 %v1043
        %v1100 = vunpack.c.l.b16 %v1044
        %v1101 = vunpack.c.l.b16 %v1045
        %v1102 = vunpack.c.l.b16 %v1046
        %v1103 = vunpack.c.l.b16 %v1047
        %v1104 = vunpack.c.l.b16 %v1048
        %v1105 = vunpack.c.l.b16 %v1049
        %v1106 = vunpack.c.l.b16 %v1050
        %v1107 = vunpack.c.l.b16 %v1051
        %v1108 = vunpack.c.l.b16 %v1052
        %v1109 = vunpack.c.l.b16 %v1053
        %v1110 = vunpack.c.l.b16 %v1054
        %v1111 = vpack.c.b16 %v1096, %v1095
        %v1112 = vpack.c.b16 %v1098, %v1097
        %v1113 = vpack.c.b16 %v1100, %v1099
        %v1114 = vpack.c.b16 %v1102, %v1101
        %v1115 = vpack.c.b16 %v1104, %v1103
        %v1116 = vpack.c.b16 %v1106, %v1105
        %v1117 = vpack.c.b16 %v1108, %v1107
        %v1118 = vpack.c.b16 %v1110, %v1109
        %1127 = vmatprep.subr.bf16.mxu0 0
        %1128 = vmatpush1.bf16.msra.mxu0 %v1071
        %1129 = vmatprep.subr.bf16.mxu0 0
        %1130 = vmatpush1.bf16.msra.mxu0 %v1072
        %1131 = vmatprep.subr.bf16.mxu0 0
        %1132 = vmatpush1.bf16.msra.mxu0 %v1073
        %1133 = vmatprep.subr.bf16.mxu0 0
        %1134 = vmatpush1.bf16.msra.mxu0 %v1074
        %1135 = vmatprep.subr.bf16.mxu0 0
        %1136 = vmatpush1.bf16.msra.mxu0 %v1075
        %1137 = vmatprep.subr.bf16.mxu0 0
        %1138 = vmatpush1.bf16.msra.mxu0 %v1076
        %1139 = vmatprep.subr.bf16.mxu0 0
        %1140 = vmatpush1.bf16.msra.mxu0 %v1077
        %1141 = vmatprep.subr.bf16.mxu0 0
        %1142 = vmatpush1.bf16.msra.mxu0 %v1078
        %1143 = vmatprep.subr.bf16.mxu0 0
        %1144 = vmatpush1.bf16.msra.mxu0 0
        %1145 = vmatprep.subr.bf16.mxu0 0
        %1146 = vmatpush1.bf16.msra.mxu0 0
        %1147 = vmatprep.subr.bf16.mxu0 0
        %1148 = vmatpush1.bf16.msra.mxu0 0
        %1149 = vmatprep.subr.bf16.mxu0 0
        %1150 = vmatpush1.bf16.msra.mxu0 0
        %1151 = vmatprep.subr.bf16.mxu0 0
        %1152 = vmatpush1.bf16.msra.mxu0 0
        %1153 = vmatprep.subr.bf16.mxu0 0
        %1154 = vmatpush1.bf16.msra.mxu0 0
        %1155 = vmatprep.subr.bf16.mxu0 0
        %1156 = vmatpush1.bf16.msra.mxu0 0
        %1157 = vmatprep.subr.bf16.mxu0 0
        %1158 = vmatpush1.bf16.msra.mxu0 0
        %1159 = vmatprep.mubr.bf16.mxu0 0
        %1160 = vmatmul.mubr.bf16.gmra.mrb[0].mxu0 %v1111
        %v1161 = vpop.f32.mrb[0].mxu0
        %v1162 = vadd.f32 0.0, %v1161
        %v1163 = vpop.f32.mrb[0].mxu0
        %v1164 = vpop.f32.mrb[0].mxu0
        %v1165 = vadd.f32 0.0, %v1164
        %v1166 = vpop.f32.mrb[0].mxu0
        %1167 = vmatprep.mubr.bf16.mxu0 0
        %1168 = vmatmul.mubr.bf16.gmra.mrb[0].mxu0 %v1112
        %v1169 = vpop.f32.mrb[0].mxu0
        %v1170 = vadd.f32 0.0, %v1169
        %v1171 = vpop.f32.mrb[0].mxu0
        %v1172 = vpop.f32.mrb[0].mxu0
        %v1173 = vadd.f32 0.0, %v1172
        %v1174 = vpop.f32.mrb[0].mxu0
        %1175 = vmatprep.mubr.bf16.mxu0 0
        %1176 = vmatmul.mubr.bf16.gmra.mrb[0].mxu0 %v1113
        %v1177 = vpop.f32.mrb[0].mxu0
        %v1178 = vadd.f32 0.0, %v1177
        %v1179 = vpop.f32.mrb[0].mxu0
        %v1180 = vpop.f32.mrb[0].mxu0
        %v1181 = vadd.f32 0.0, %v1180
        %v1182 = vpop.f32.mrb[0].mxu0
        %1183 = vmatprep.mubr.bf16.mxu0 0
        %1184 = vmatmul.mubr.bf16.gmra.mrb[0].mxu0 %v1114
        %v1185 = vpop.f32.mrb[0].mxu0
        %v1186 = vadd.f32 0.0, %v1185
        %v1187 = vpop.f32.mrb[0].mxu0
        %v1188 = vpop.f32.mrb[0].mxu0
        %v1189 = vadd.f32 0.0, %v1188
        %v1190 = vpop.f32.mrb[0].mxu0
        %1191 = vmatprep.mubr.bf16.mxu0 0
        %1192 = vmatmul.mubr.bf16.gmra.mrb[0].mxu0 %v1115
        %v1193 = vpop.f32.mrb[0].mxu0
        %v1194 = vadd.f32 0.0, %v1193
        %v1195 = vpop.f32.mrb[0].mxu0
        %v1196 = vpop.f32.mrb[0].mxu0
        %v1197 = vadd.f32 0.0, %v1196
        %v1198 = vpop.f32.mrb[0].mxu0
        %1199 = vmatprep.mubr.bf16.mxu0 0
        %1200 = vmatmul.mubr.bf16.gmra.mrb[0].mxu0 %v1116
        %v1201 = vpop.f32.mrb[0].mxu0
        %v1202 = vadd.f32 0.0, %v1201
        %v1203 = vpop.f32.mrb[0].mxu0
        %v1204 = vpop.f32.mrb[0].mxu0
        %v1205 = vadd.f32 0.0, %v1204
        %v1206 = vpop.f32.mrb[0].mxu0
        %1207 = vmatprep.mubr.bf16.mxu0 0
        %1208 = vmatmul.mubr.bf16.gmra.mrb[0].mxu0 %v1117
        %v1209 = vpop.f32.mrb[0].mxu0
        %v1210 = vadd.f32 0.0, %v1209
        %v1211 = vpop.f32.mrb[0].mxu0
        %v1212 = vpop.f32.mrb[0].mxu0
        %v1213 = vadd.f32 0.0, %v1212
        %v1214 = vpop.f32.mrb[0].mxu0
        %1215 = vmatprep.mubr.bf16.mxu0 0
        %1216 = vmatmul.mubr.bf16.gmra.mrb[0].mxu0 %v1118
        %v1217 = vpop.f32.mrb[0].mxu0
        %v1218 = vadd.f32 0.0, %v1217
        %v1219 = vpop.f32.mrb[0].mxu0
        %v1220 = vpop.f32.mrb[0].mxu0
        %v1221 = vadd.f32 0.0, %v1220
        %v1222 = vpop.f32.mrb[0].mxu0
        %1223 = vdwg.mxu0
        %v1240 = vunpack.c.l.b16 %v959
        %v1241 = vunpack.c.l.b16 %v960
        %v1242 = vunpack.c.l.b16 %v961
        %v1243 = vunpack.c.l.b16 %v962
        %v1244 = vunpack.c.l.b16 %v963
        %v1245 = vunpack.c.l.b16 %v964
        %v1246 = vunpack.c.l.b16 %v965
        %v1247 = vunpack.c.l.b16 %v966
        %v1248 = vunpack.c.l.b16 %v967
        %v1249 = vunpack.c.l.b16 %v968
        %v1250 = vunpack.c.l.b16 %v969
        %v1251 = vunpack.c.l.b16 %v970
        %v1252 = vunpack.c.l.b16 %v971
        %v1253 = vunpack.c.l.b16 %v972
        %v1254 = vunpack.c.l.b16 %v973
        %v1255 = vunpack.c.l.b16 %v974
        %v1256 = vpack.c.b16 %v1241, %v1240
        %v1257 = vpack.c.b16 %v1243, %v1242
        %v1258 = vpack.c.b16 %v1245, %v1244
        %v1259 = vpack.c.b16 %v1247, %v1246
        %v1260 = vpack.c.b16 %v1249, %v1248
        %v1261 = vpack.c.b16 %v1251, %v1250
        %v1262 = vpack.c.b16 %v1253, %v1252
        %v1263 = vpack.c.b16 %v1255, %v1254
        %1272 = vmatprep.subr.bf16.mxu0 0
        %1273 = vmatpush1.bf16.msra.mxu0 %v742
        %1274 = vmatprep.subr.bf16.mxu0 0
        %1275 = vmatpush1.bf16.msra.mxu0 %v743
        %1276 = vmatprep.subr.bf16.mxu0 0
        %1277 = vmatpush1.bf16.msra.mxu0 %v744
        %1278 = vmatprep.subr.bf16.mxu0 0
        %1279 = vmatpush1.bf16.msra.mxu0 %v745
        %1280 = vmatprep.subr.bf16.mxu0 0
        %1281 = vmatpush1.bf16.msra.mxu0 %v746
        %1282 = vmatprep.subr.bf16.mxu0 0
        %1283 = vmatpush1.bf16.msra.mxu0 %v747
        %1284 = vmatprep.subr.bf16.mxu0 0
        %1285 = vmatpush1.bf16.msra.mxu0 %v748
        %1286 = vmatprep.subr.bf16.mxu0 0
        %1287 = vmatpush1.bf16.msra.mxu0 %v749
        %1288 = vmatprep.subr.bf16.mxu0 0
        %1289 = vmatpush1.bf16.msra.mxu0 0
        %1290 = vmatprep.subr.bf16.mxu0 0
        %1291 = vmatpush1.bf16.msra.mxu0 0
        %1292 = vmatprep.subr.bf16.mxu0 0
        %1293 = vmatpush1.bf16.msra.mxu0 0
        %1294 = vmatprep.subr.bf16.mxu0 0
        %1295 = vmatpush1.bf16.msra.mxu0 0
        %1296 = vmatprep.subr.bf16.mxu0 0
        %1297 = vmatpush1.bf16.msra.mxu0 0
        %1298 = vmatprep.subr.bf16.mxu0 0
        %1299 = vmatpush1.bf16.msra.mxu0 0
        %1300 = vmatprep.subr.bf16.mxu0 0
        %1301 = vmatpush1.bf16.msra.mxu0 0
        %1302 = vmatprep.subr.bf16.mxu0 0
        %1303 = vmatpush1.bf16.msra.mxu0 0
        %1304 = vmatprep.mubr.bf16.mxu0 0
        %1305 = vmatmul.mubr.bf16.gmra.mrb[0].mxu0 %v1256
        %v1306 = vpop.f32.mrb[0].mxu0
        %v1307 = vadd.f32 0.0, %v1306
        %v1308 = vpop.f32.mrb[0].mxu0
        %v1309 = vpop.f32.mrb[0].mxu0
        %v1310 = vadd.f32 0.0, %v1309
        %v1311 = vpop.f32.mrb[0].mxu0
        %1312 = vmatprep.mubr.bf16.mxu0 0
        %1313 = vmatmul.mubr.bf16.gmra.mrb[0].mxu0 %v1257
        %v1314 = vpop.f32.mrb[0].mxu0
        %v1315 = vadd.f32 0.0, %v1314
        %v1316 = vpop.f32.mrb[0].mxu0
        %v1317 = vpop.f32.mrb[0].mxu0
        %v1318 = vadd.f32 0.0, %v1317
        %v1319 = vpop.f32.mrb[0].mxu0
        %1320 = vmatprep.mubr.bf16.mxu0 0
        %1321 = vmatmul.mubr.bf16.gmra.mrb[0].mxu0 %v1258
        %v1322 = vpop.f32.mrb[0].mxu0
        %v1323 = vadd.f32 0.0, %v1322
        %v1324 = vpop.f32.mrb[0].mxu0
        %v1325 = vpop.f32.mrb[0].mxu0
        %v1326 = vadd.f32 0.0, %v1325
        %v1327 = vpop.f32.mrb[0].mxu0
        %1328 = vmatprep.mubr.bf16.mxu0 0
        %1329 = vmatmul.mubr.bf16.gmra.mrb[0].mxu0 %v1259
        %v1330 = vpop.f32.mrb[0].mxu0
        %v1331 = vadd.f32 0.0, %v1330
        %v1332 = vpop.f32.mrb[0].mxu0
        %v1333 = vpop.f32.mrb[0].mxu0
        %v1334 = vadd.f32 0.0, %v1333
        %v1335 = vpop.f32.mrb[0].mxu0
        %1336 = vmatprep.mubr.bf16.mxu0 0
        %1337 = vmatmul.mubr.bf16.gmra.mrb[0].mxu0 %v1260
        %v1338 = vpop.f32.mrb[0].mxu0
        %v1339 = vadd.f32 0.0, %v1338
        %v1340 = vpop.f32.mrb[0].mxu0
        %v1341 = vpop.f32.mrb[0].mxu0
        %v1342 = vadd.f32 0.0, %v1341
        %v1343 = vpop.f32.mrb[0].mxu0
        %1344 = vmatprep.mubr.bf16.mxu0 0
        %1345 = vmatmul.mubr.bf16.gmra.mrb[0].mxu0 %v1261
        %v1346 = vpop.f32.mrb[0].mxu0
        %v1347 = vadd.f32 0.0, %v1346
        %v1348 = vpop.f32.mrb[0].mxu0
        %v1349 = vpop.f32.mrb[0].mxu0
        %v1350 = vadd.f32 0.0, %v1349
        %v1351 = vpop.f32.mrb[0].mxu0
        %1352 = vmatprep.mubr.bf16.mxu0 0
        %1353 = vmatmul.mubr.bf16.gmra.mrb[0].mxu0 %v1262
        %v1354 = vpop.f32.mrb[0].mxu0
        %v1355 = vadd.f32 0.0, %v1354
        %v1356 = vpop.f32.mrb[0].mxu0
        %v1357 = vpop.f32.mrb[0].mxu0
        %v1358 = vadd.f32 0.0, %v1357
        %v1359 = vpop.f32.mrb[0].mxu0
        %1360 = vmatprep.mubr.bf16.mxu0 0
        %1361 = vmatmul.mubr.bf16.gmra.mrb[0].mxu0 %v1263
        %v1362 = vpop.f32.mrb[0].mxu0
        %v1363 = vadd.f32 0.0, %v1362
        %v1364 = vpop.f32.mrb[0].mxu0
        %v1365 = vpop.f32.mrb[0].mxu0
        %v1366 = vadd.f32 0.0, %v1365
        %v1367 = vpop.f32.mrb[0].mxu0
        %1368 = vdwg.mxu0
        %v1369 = vsub.f32 %v1162, %v1307
        %v1370 = vsub.f32 %v1165, %v1310
        %v1371 = vsub.f32 %v1170, %v1315
        %v1372 = vsub.f32 %v1173, %v1318
        %v1373 = vsub.f32 %v1178, %v1323
        %v1374 = vsub.f32 %v1181, %v1326
        %v1375 = vsub.f32 %v1186, %v1331
        %v1376 = vsub.f32 %v1189, %v1334
        %v1377 = vsub.f32 %v1194, %v1339
        %v1378 = vsub.f32 %v1197, %v1342
        %v1379 = vsub.f32 %v1202, %v1347
        %v1380 = vsub.f32 %v1205, %v1350
        %v1381 = vsub.f32 %v1210, %v1355
        %v1382 = vsub.f32 %v1213, %v1358
        %v1383 = vsub.f32 %v1218, %v1363
        %v1384 = vsub.f32 %v1221, %v1366
        %v1385 = vadd.f32 %v718, %v1369
        %v1386 = vadd.f32 %v719, %v1370
        %v1387 = vadd.f32 %v720, %v1371
        %v1388 = vadd.f32 %v721, %v1372
        %v1389 = vadd.f32 %v722, %v1373
        %v1390 = vadd.f32 %v723, %v1374
        %v1391 = vadd.f32 %v724, %v1375
        %v1392 = vadd.f32 %v725, %v1376
        %v1393 = vadd.f32 %v726, %v1377
        %v1394 = vadd.f32 %v727, %v1378
        %v1395 = vadd.f32 %v728, %v1379
        %v1396 = vadd.f32 %v729, %v1380
        %v1397 = vadd.f32 %v730, %v1381
        %v1398 = vadd.f32 %v731, %v1382
        %v1399 = vadd.f32 %v732, %v1383
        %v1400 = vadd.f32 %v733, %v1384
        %v1401 = vmul.f32 %v1385, %v1385
        %v1402 = vmul.f32 %v1386, %v1386
        %v1403 = vmul.f32 %v1387, %v1387
        %v1404 = vmul.f32 %v1388, %v1388
        %v1405 = vmul.f32 %v1389, %v1389
        %v1406 = vmul.f32 %v1390, %v1390
        %v1407 = vmul.f32 %v1391, %v1391
        %v1408 = vmul.f32 %v1392, %v1392
        %v1409 = vmul.f32 %v1393, %v1393
        %v1410 = vmul.f32 %v1394, %v1394
        %v1411 = vmul.f32 %v1395, %v1395
        %v1412 = vmul.f32 %v1396, %v1396
        %v1413 = vmul.f32 %v1397, %v1397
        %v1414 = vmul.f32 %v1398, %v1398
        %v1415 = vmul.f32 %v1399, %v1399
        %v1416 = vmul.f32 %v1400, %v1400
        %1417 = vadd.xlane.f32.xlu0 %v1401
        %v1418 = vpop.xlane.xlu0 %1417
        %1419 = vadd.xlane.f32.xlu0 %v1402
        %v1420 = vpop.xlane.xlu0 %1419
        %1421 = vadd.xlane.f32.xlu0 %v1403
        %v1422 = vpop.xlane.xlu0 %1421
        %1423 = vadd.xlane.f32.xlu0 %v1404
        %v1424 = vpop.xlane.xlu0 %1423
        %1425 = vadd.xlane.f32.xlu0 %v1405
        %v1426 = vpop.xlane.xlu0 %1425
        %1427 = vadd.xlane.f32.xlu0 %v1406
        %v1428 = vpop.xlane.xlu0 %1427
        %1429 = vadd.xlane.f32.xlu0 %v1407
        %v1430 = vpop.xlane.xlu0 %1429
        %1431 = vadd.xlane.f32.xlu0 %v1408
        %v1432 = vpop.xlane.xlu0 %1431
        %1433 = vadd.xlane.f32.xlu0 %v1409
        %v1434 = vpop.xlane.xlu0 %1433
        %1435 = vadd.xlane.f32.xlu0 %v1410
        %v1436 = vpop.xlane.xlu0 %1435
        %1437 = vadd.xlane.f32.xlu0 %v1411
        %v1438 = vpop.xlane.xlu0 %1437
        %1439 = vadd.xlane.f32.xlu0 %v1412
        %v1440 = vpop.xlane.xlu0 %1439
        %1441 = vadd.xlane.f32.xlu0 %v1413
        %v1442 = vpop.xlane.xlu0 %1441
        %1443 = vadd.xlane.f32.xlu0 %v1414
        %v1444 = vpop.xlane.xlu0 %1443
        %1445 = vadd.xlane.f32.xlu0 %v1415
        %v1446 = vpop.xlane.xlu0 %1445
        %1447 = vadd.xlane.f32.xlu0 %v1416
        %v1448 = vpop.xlane.xlu0 %1447
        %v1449 = vmax.f32 %v1418, 1e-24
        %v1450 = vmax.f32 %v1420, 1e-24
        %v1451 = vmax.f32 %v1422, 1e-24
        %v1452 = vmax.f32 %v1424, 1e-24
        %v1453 = vmax.f32 %v1426, 1e-24
        %v1454 = vmax.f32 %v1428, 1e-24
        %v1455 = vmax.f32 %v1430, 1e-24
        %v1456 = vmax.f32 %v1432, 1e-24
        %v1457 = vmax.f32 %v1434, 1e-24
        %v1458 = vmax.f32 %v1436, 1e-24
        %v1459 = vmax.f32 %v1438, 1e-24
        %v1460 = vmax.f32 %v1440, 1e-24
        %v1461 = vmax.f32 %v1442, 1e-24
        %v1462 = vmax.f32 %v1444, 1e-24
        %v1463 = vmax.f32 %v1446, 1e-24
        %v1464 = vmax.f32 %v1448, 1e-24
        %v1465 = vrsqrt.pop %v1449
        %v1466 = vrsqrt.pop %v1450
        %v1467 = vrsqrt.pop %v1451
        %v1468 = vrsqrt.pop %v1452
        %v1469 = vrsqrt.pop %v1453
        %v1470 = vrsqrt.pop %v1454
        %v1471 = vrsqrt.pop %v1455
        %v1472 = vrsqrt.pop %v1456
        %v1473 = vrsqrt.pop %v1457
        %v1474 = vrsqrt.pop %v1458
        %v1475 = vrsqrt.pop %v1459
        %v1476 = vrsqrt.pop %v1460
        %v1477 = vrsqrt.pop %v1461
        %v1478 = vrsqrt.pop %v1462
        %v1479 = vrsqrt.pop %v1463
        %v1480 = vrsqrt.pop %v1464
        %v1481 = vmul.f32 %v1385, %v1465
        %v1482 = vmul.f32 %v1386, %v1466
        %v1483 = vmul.f32 %v1387, %v1467
        %v1484 = vmul.f32 %v1388, %v1468
        %v1485 = vmul.f32 %v1389, %v1469
        %v1486 = vmul.f32 %v1390, %v1470
        %v1487 = vmul.f32 %v1391, %v1471
        %v1488 = vmul.f32 %v1392, %v1472
        %v1489 = vmul.f32 %v1393, %v1473
        %v1490 = vmul.f32 %v1394, %v1474
        %v1491 = vmul.f32 %v1395, %v1475
        %v1492 = vmul.f32 %v1396, %v1476
        %v1493 = vmul.f32 %v1397, %v1477
        %v1494 = vmul.f32 %v1398, %v1478
        %v1495 = vmul.f32 %v1399, %v1479
        %v1496 = vmul.f32 %v1400, %v1480
        %1497 = vst [vmem:[#allocation2] sm:$0xff] %v1481
        %1498 = vst [vmem:[#allocation2 + $0x8] sm:$0xff] %v1482
        %1499 = vst [vmem:[#allocation2 + $0x10] sm:$0xff] %v1483
        %1500 = vst [vmem:[#allocation2 + $0x18] sm:$0xff] %v1484
        %1501 = vst [vmem:[#allocation2 + $0x20] sm:$0xff] %v1485
        %1502 = vst [vmem:[#allocation2 + $0x28] sm:$0xff] %v1486
        %1503 = vst [vmem:[#allocation2 + $0x30] sm:$0xff] %v1487
        %1504 = vst [vmem:[#allocation2 + $0x38] sm:$0xff] %v1488
        %1505 = vst [vmem:[#allocation2 + $0x40] sm:$0xff] %v1489
        %1506 = vst [vmem:[#allocation2 + $0x48] sm:$0xff] %v1490
        %1507 = vst [vmem:[#allocation2 + $0x50] sm:$0xff] %v1491
        %1508 = vst [vmem:[#allocation2 + $0x58] sm:$0xff] %v1492
        %1509 = vst [vmem:[#allocation2 + $0x60] sm:$0xff] %v1493
        %1510 = vst [vmem:[#allocation2 + $0x68] sm:$0xff] %v1494
        %1511 = vst [vmem:[#allocation2 + $0x70] sm:$0xff] %v1495
        %1512 = vst [vmem:[#allocation2 + $0x78] sm:$0xff] %v1496
        %p1513 = scmp.eq.s32.totalorder %s22, 1
        // Predicated region
        $region65: #{cmpgnn_forward.1} parent=39 // pred_check
          %p1514 = pneg %p1513
        $region66: #{cmpgnn_forward.1} parent=39 // pred_check_branch
          %1516 = sbr.rel (%p1514) target = $region68
        $region67: #{cmpgnn_forward.1} parent=39 // pred_region
          %v1517 = vpack.c.bf16 %v1482, %v1481
          %v1518 = vpack.c.bf16 %v1484, %v1483
          %v1519 = vpack.c.bf16 %v1486, %v1485
          %v1520 = vpack.c.bf16 %v1488, %v1487
          %v1521 = vpack.c.bf16 %v1490, %v1489
          %v1522 = vpack.c.bf16 %v1492, %v1491
          %v1523 = vpack.c.bf16 %v1494, %v1493
          %v1524 = vpack.c.bf16 %v1496, %v1495
          %v1525 = vld [vmem:[#allocation9] sm:$0xf]
          %v1526 = vld [vmem:[#allocation9 + $0x4] sm:$0xf]
          %v1527 = vld [vmem:[#allocation9 + $0x8] sm:$0xf]
          %v1528 = vld [vmem:[#allocation9 + $0xc] sm:$0xf]
          %v1529 = vld [vmem:[#allocation9 + $0x10] sm:$0xf]
          %v1530 = vld [vmem:[#allocation9 + $0x14] sm:$0xf]
          %v1531 = vld [vmem:[#allocation9 + $0x18] sm:$0xf]
          %v1532 = vld [vmem:[#allocation9 + $0x1c] sm:$0xf]
          %v1533 = vld [vmem:[#allocation9 + $0x20] sm:$0xf]
          %v1534 = vld [vmem:[#allocation9 + $0x24] sm:$0xf]
          %v1535 = vld [vmem:[#allocation9 + $0x28] sm:$0xf]
          %v1536 = vld [vmem:[#allocation9 + $0x2c] sm:$0xf]
          %v1537 = vld [vmem:[#allocation9 + $0x30] sm:$0xf]
          %v1538 = vld [vmem:[#allocation9 + $0x34] sm:$0xf]
          %v1539 = vld [vmem:[#allocation9 + $0x38] sm:$0xf]
          %v1540 = vld [vmem:[#allocation9 + $0x3c] sm:$0xf]
          %v1541 = vld [vmem:[#allocation11] sm:$0x1]
          %v1543 = vlaneseq
          %v1544 = vshrl.u32 %v1543, 7
          %v1545 = vsub.s32 0, %v1544
          %v1546 = vrot.slane %v1541, %v1545
          %v1564 = vunpack.c.l.b16 %v1525
          %v1565 = vunpack.c.l.b16 %v1526
          %v1566 = vunpack.c.l.b16 %v1527
          %v1567 = vunpack.c.l.b16 %v1528
          %v1568 = vunpack.c.l.b16 %v1529
          %v1569 = vunpack.c.l.b16 %v1530
          %v1570 = vunpack.c.l.b16 %v1531
          %v1571 = vunpack.c.l.b16 %v1532
          %v1572 = vunpack.c.l.b16 %v1533
          %v1573 = vunpack.c.l.b16 %v1534
          %v1574 = vunpack.c.l.b16 %v1535
          %v1575 = vunpack.c.l.b16 %v1536
          %v1576 = vunpack.c.l.b16 %v1537
          %v1577 = vunpack.c.l.b16 %v1538
          %v1578 = vunpack.c.l.b16 %v1539
          %v1579 = vunpack.c.l.b16 %v1540
          %v1580 = vpack.c.b16 %v1565, %v1564
          %v1581 = vpack.c.b16 %v1567, %v1566
          %v1582 = vpack.c.b16 %v1569, %v1568
          %v1583 = vpack.c.b16 %v1571, %v1570
          %v1584 = vpack.c.b16 %v1573, %v1572
          %v1585 = vpack.c.b16 %v1575, %v1574
          %v1586 = vpack.c.b16 %v1577, %v1576
          %v1587 = vpack.c.b16 %v1579, %v1578
          %1596 = vmatprep.subr.bf16.mxu0 0
          %1597 = vmatpush1.bf16.msra.mxu0 %v1580
          %1598 = vmatprep.subr.bf16.mxu0 0
          %1599 = vmatpush1.bf16.msra.mxu0 %v1581
          %1600 = vmatprep.subr.bf16.mxu0 0
          %1601 = vmatpush1.bf16.msra.mxu0 %v1582
          %1602 = vmatprep.subr.bf16.mxu0 0
          %1603 = vmatpush1.bf16.msra.mxu0 %v1583
          %1604 = vmatprep.subr.bf16.mxu0 0
          %1605 = vmatpush1.bf16.msra.mxu0 %v1584
          %1606 = vmatprep.subr.bf16.mxu0 0
          %1607 = vmatpush1.bf16.msra.mxu0 %v1585
          %1608 = vmatprep.subr.bf16.mxu0 0
          %1609 = vmatpush1.bf16.msra.mxu0 %v1586
          %1610 = vmatprep.subr.bf16.mxu0 0
          %1611 = vmatpush1.bf16.msra.mxu0 %v1587
          %1612 = vmatprep.subr.bf16.mxu0 0
          %1613 = vmatpush1.bf16.msra.mxu0 0
          %1614 = vmatprep.subr.bf16.mxu0 0
          %1615 = vmatpush1.bf16.msra.mxu0 0
          %1616 = vmatprep.subr.bf16.mxu0 0
          %1617 = vmatpush1.bf16.msra.mxu0 0
          %1618 = vmatprep.subr.bf16.mxu0 0
          %1619 = vmatpush1.bf16.msra.mxu0 0
          %1620 = vmatprep.subr.bf16.mxu0 0
          %1621 = vmatpush1.bf16.msra.mxu0 0
          %1622 = vmatprep.subr.bf16.mxu0 0
          %1623 = vmatpush1.bf16.msra.mxu0 0
          %1624 = vmatprep.subr.bf16.mxu0 0
          %1625 = vmatpush1.bf16.msra.mxu0 0
          %1626 = vmatprep.subr.bf16.mxu0 0
          %1627 = vmatpush1.bf16.msra.mxu0 0
          %1628 = vmatprep.mubr.bf16.mxu0 0
          %1629 = vmatmul.mubr.bf16.gmra.mrb[0].mxu0 %v1517
          %v1630 = vpop.f32.mrb[0].mxu0
          %v1631 = vadd.f32 %v1546, %v1630
          %v1632 = vpop.f32.mrb[0].mxu0
          %v1633 = vpop.f32.mrb[0].mxu0
          %v1634 = vadd.f32 %v1546, %v1633
          %v1635 = vpop.f32.mrb[0].mxu0
          %1636 = vmatprep.mubr.bf16.mxu0 0
          %1637 = vmatmul.mubr.bf16.gmra.mrb[0].mxu0 %v1518
          %v1638 = vpop.f32.mrb[0].mxu0
          %v1639 = vadd.f32 %v1546, %v1638
          %v1640 = vpop.f32.mrb[0].mxu0
          %v1641 = vpop.f32.mrb[0].mxu0
          %v1642 = vadd.f32 %v1546, %v1641
          %v1643 = vpop.f32.mrb[0].mxu0
          %1644 = vmatprep.mubr.bf16.mxu0 0
          %1645 = vmatmul.mubr.bf16.gmra.mrb[0].mxu0 %v1519
          %v1646 = vpop.f32.mrb[0].mxu0
          %v1647 = vadd.f32 %v1546, %v1646
          %v1648 = vpop.f32.mrb[0].mxu0
          %v1649 = vpop.f32.mrb[0].mxu0
          %v1650 = vadd.f32 %v1546, %v1649
          %v1651 = vpop.f32.mrb[0].mxu0
          %1652 = vmatprep.mubr.bf16.mxu0 0
          %1653 = vmatmul.mubr.bf16.gmra.mrb[0].mxu0 %v1520
          %v1654 = vpop.f32.mrb[0].mxu0
          %v1655 = vadd.f32 %v1546, %v1654
          %v1656 = vpop.f32.mrb[0].mxu0
          %v1657 = vpop.f32.mrb[0].mxu0
          %v1658 = vadd.f32 %v1546, %v1657
          %v1659 = vpop.f32.mrb[0].mxu0
          %1660 = vmatprep.mubr.bf16.mxu0 0
          %1661 = vmatmul.mubr.bf16.gmra.mrb[0].mxu0 %v1521
          %v1662 = vpop.f32.mrb[0].mxu0
          %v1663 = vadd.f32 %v1546, %v1662
          %v1664 = vpop.f32.mrb[0].mxu0
          %v1665 = vpop.f32.mrb[0].mxu0
          %v1666 = vadd.f32 %v1546, %v1665
          %v1667 = vpop.f32.mrb[0].mxu0
          %1668 = vmatprep.mubr.bf16.mxu0 0
          %1669 = vmatmul.mubr.bf16.gmra.mrb[0].mxu0 %v1522
          %v1670 = vpop.f32.mrb[0].mxu0
          %v1671 = vadd.f32 %v1546, %v1670
          %v1672 = vpop.f32.mrb[0].mxu0
          %v1673 = vpop.f32.mrb[0].mxu0
          %v1674 = vadd.f32 %v1546, %v1673
          %v1675 = vpop.f32.mrb[0].mxu0
          %1676 = vmatprep.mubr.bf16.mxu0 0
          %1677 = vmatmul.mubr.bf16.gmra.mrb[0].mxu0 %v1523
          %v1678 = vpop.f32.mrb[0].mxu0
          %v1679 = vadd.f32 %v1546, %v1678
          %v1680 = vpop.f32.mrb[0].mxu0
          %v1681 = vpop.f32.mrb[0].mxu0
          %v1682 = vadd.f32 %v1546, %v1681
          %v1683 = vpop.f32.mrb[0].mxu0
          %1684 = vmatprep.mubr.bf16.mxu0 0
          %1685 = vmatmul.mubr.bf16.gmra.mrb[0].mxu0 %v1524
          %v1686 = vpop.f32.mrb[0].mxu0
          %v1687 = vadd.f32 %v1546, %v1686
          %v1688 = vpop.f32.mrb[0].mxu0
          %v1689 = vpop.f32.mrb[0].mxu0
          %v1690 = vadd.f32 %v1546, %v1689
          %v1691 = vpop.f32.mrb[0].mxu0
          %1692 = vdwg.mxu0
          %1693 = vmax.xlane.f32.xlu0 %v1631
          %v1694 = vpop.xlane.xlu0 %1693
          %1695 = vmax.xlane.f32.xlu0 %v1634
          %v1696 = vpop.xlane.xlu0 %1695
          %1697 = vmax.xlane.f32.xlu0 %v1639
          %v1698 = vpop.xlane.xlu0 %1697
          %1699 = vmax.xlane.f32.xlu0 %v1642
          %v1700 = vpop.xlane.xlu0 %1699
          %1701 = vmax.xlane.f32.xlu0 %v1647
          %v1702 = vpop.xlane.xlu0 %1701
          %1703 = vmax.xlane.f32.xlu0 %v1650
          %v1704 = vpop.xlane.xlu0 %1703
          %1705 = vmax.xlane.f32.xlu0 %v1655
          %v1706 = vpop.xlane.xlu0 %1705
          %1707 = vmax.xlane.f32.xlu0 %v1658
          %v1708 = vpop.xlane.xlu0 %1707
          %1709 = vmax.xlane.f32.xlu0 %v1663
          %v1710 = vpop.xlane.xlu0 %1709
          %1711 = vmax.xlane.f32.xlu0 %v1666
          %v1712 = vpop.xlane.xlu0 %1711
          %1713 = vmax.xlane.f32.xlu0 %v1671
          %v1714 = vpop.xlane.xlu0 %1713
          %1715 = vmax.xlane.f32.xlu0 %v1674
          %v1716 = vpop.xlane.xlu0 %1715
          %1717 = vmax.xlane.f32.xlu0 %v1679
          %v1718 = vpop.xlane.xlu0 %1717
          %1719 = vmax.xlane.f32.xlu0 %v1682
          %v1720 = vpop.xlane.xlu0 %1719
          %1721 = vmax.xlane.f32.xlu0 %v1687
          %v1722 = vpop.xlane.xlu0 %1721
          %1723 = vmax.xlane.f32.xlu0 %v1690
          %v1724 = vpop.xlane.xlu0 %1723
          %v1725 = vsub.f32 %v1631, %v1694
          %v1726 = vsub.f32 %v1634, %v1696
          %v1727 = vsub.f32 %v1639, %v1698
          %v1728 = vsub.f32 %v1642, %v1700
          %v1729 = vsub.f32 %v1647, %v1702
          %v1730 = vsub.f32 %v1650, %v1704
          %v1731 = vsub.f32 %v1655, %v1706
          %v1732 = vsub.f32 %v1658, %v1708
          %v1733 = vsub.f32 %v1663, %v1710
          %v1734 = vsub.f32 %v1666, %v1712
          %v1735 = vsub.f32 %v1671, %v1714
          %v1736 = vsub.f32 %v1674, %v1716
          %v1737 = vsub.f32 %v1679, %v1718
          %v1738 = vsub.f32 %v1682, %v1720
          %v1739 = vsub.f32 %v1687, %v1722
          %v1740 = vsub.f32 %v1690, %v1724
          %v1741 = vmul.f32 %v1725, 1.442695
          %v1742 = vpow.pop %v1741
          %v1743 = vmul.f32 %v1726, 1.442695
          %v1744 = vpow.pop %v1743
          %v1745 = vmul.f32 %v1727, 1.442695
          %v1746 = vpow.pop %v1745
          %v1747 = vmul.f32 %v1728, 1.442695
          %v1748 = vpow.pop %v1747
          %v1749 = vmul.f32 %v1729, 1.442695
          %v1750 = vpow.pop %v1749
          %v1751 = vmul.f32 %v1730, 1.442695
          %v1752 = vpow.pop %v1751
          %v1753 = vmul.f32 %v1731, 1.442695
          %v1754 = vpow.pop %v1753
          %v1755 = vmul.f32 %v1732, 1.442695
          %v1756 = vpow.pop %v1755
          %v1757 = vmul.f32 %v1733, 1.442695
          %v1758 = vpow.pop %v1757
          %v1759 = vmul.f32 %v1734, 1.442695
          %v1760 = vpow.pop %v1759
          %v1761 = vmul.f32 %v1735, 1.442695
          %v1762 = vpow.pop %v1761
          %v1763 = vmul.f32 %v1736, 1.442695
          %v1764 = vpow.pop %v1763
          %v1765 = vmul.f32 %v1737, 1.442695
          %v1766 = vpow.pop %v1765
          %v1767 = vmul.f32 %v1738, 1.442695
          %v1768 = vpow.pop %v1767
          %v1769 = vmul.f32 %v1739, 1.442695
          %v1770 = vpow.pop %v1769
          %v1771 = vmul.f32 %v1740, 1.442695
          %v1772 = vpow.pop %v1771
          %1773 = vadd.xlane.f32.xlu0 %v1742
          %v1774 = vpop.xlane.xlu0 %1773
          %1775 = vadd.xlane.f32.xlu0 %v1744
          %v1776 = vpop.xlane.xlu0 %1775
          %1777 = vadd.xlane.f32.xlu0 %v1746
          %v1778 = vpop.xlane.xlu0 %1777
          %1779 = vadd.xlane.f32.xlu0 %v1748
          %v1780 = vpop.xlane.xlu0 %1779
          %1781 = vadd.xlane.f32.xlu0 %v1750
          %v1782 = vpop.xlane.xlu0 %1781
          %1783 = vadd.xlane.f32.xlu0 %v1752
          %v1784 = vpop.xlane.xlu0 %1783
          %1785 = vadd.xlane.f32.xlu0 %v1754
          %v1786 = vpop.xlane.xlu0 %1785
          %1787 = vadd.xlane.f32.xlu0 %v1756
          %v1788 = vpop.xlane.xlu0 %1787
          %1789 = vadd.xlane.f32.xlu0 %v1758
          %v1790 = vpop.xlane.xlu0 %1789
          %1791 = vadd.xlane.f32.xlu0 %v1760
          %v1792 = vpop.xlane.xlu0 %1791
          %1793 = vadd.xlane.f32.xlu0 %v1762
          %v1794 = vpop.xlane.xlu0 %1793
          %1795 = vadd.xlane.f32.xlu0 %v1764
          %v1796 = vpop.xlane.xlu0 %1795
          %1797 = vadd.xlane.f32.xlu0 %v1766
          %v1798 = vpop.xlane.xlu0 %1797
          %1799 = vadd.xlane.f32.xlu0 %v1768
          %v1800 = vpop.xlane.xlu0 %1799
          %1801 = vadd.xlane.f32.xlu0 %v1770
          %v1802 = vpop.xlane.xlu0 %1801
          %1803 = vadd.xlane.f32.xlu0 %v1772
          %v1804 = vpop.xlane.xlu0 %1803
          %v1805 = vlog2.pop %v1774
          %v1806 = vmul.f32 %v1805, 0.6931472
          %v1807 = vlog2.pop %v1776
          %v1808 = vmul.f32 %v1807, 0.6931472
          %v1809 = vlog2.pop %v1778
          %v1810 = vmul.f32 %v1809, 0.6931472
          %v1811 = vlog2.pop %v1780
          %v1812 = vmul.f32 %v1811, 0.6931472
          %v1813 = vlog2.pop %v1782
          %v1814 = vmul.f32 %v1813, 0.6931472
          %v1815 = vlog2.pop %v1784
          %v1816 = vmul.f32 %v1815, 0.6931472
          %v1817 = vlog2.pop %v1786
          %v1818 = vmul.f32 %v1817, 0.6931472
          %v1819 = vlog2.pop %v1788
          %v1820 = vmul.f32 %v1819, 0.6931472
          %v1821 = vlog2.pop %v1790
          %v1822 = vmul.f32 %v1821, 0.6931472
          %v1823 = vlog2.pop %v1792
          %v1824 = vmul.f32 %v1823, 0.6931472
          %v1825 = vlog2.pop %v1794
          %v1826 = vmul.f32 %v1825, 0.6931472
          %v1827 = vlog2.pop %v1796
          %v1828 = vmul.f32 %v1827, 0.6931472
          %v1829 = vlog2.pop %v1798
          %v1830 = vmul.f32 %v1829, 0.6931472
          %v1831 = vlog2.pop %v1800
          %v1832 = vmul.f32 %v1831, 0.6931472
          %v1833 = vlog2.pop %v1802
          %v1834 = vmul.f32 %v1833, 0.6931472
          %v1835 = vlog2.pop %v1804
          %v1836 = vmul.f32 %v1835, 0.6931472
          %v1837 = vsub.f32 %v1725, %v1806
          %v1838 = vsub.f32 %v1726, %v1808
          %v1839 = vsub.f32 %v1727, %v1810
          %v1840 = vsub.f32 %v1728, %v1812
          %v1841 = vsub.f32 %v1729, %v1814
          %v1842 = vsub.f32 %v1730, %v1816
          %v1843 = vsub.f32 %v1731, %v1818
          %v1844 = vsub.f32 %v1732, %v1820
          %v1845 = vsub.f32 %v1733, %v1822
          %v1846 = vsub.f32 %v1734, %v1824
          %v1847 = vsub.f32 %v1735, %v1826
          %v1848 = vsub.f32 %v1736, %v1828
          %v1849 = vsub.f32 %v1737, %v1830
          %v1850 = vsub.f32 %v1738, %v1832
          %v1851 = vsub.f32 %v1739, %v1834
          %v1852 = vsub.f32 %v1740, %v1836
          %1853 = vst [vmem:[#allocation12] sm:$0xff] %v1837
          %1854 = vst [vmem:[#allocation12 + $0x8] sm:$0xff] %v1838
          %1855 = vst [vmem:[#allocation12 + $0x10] sm:$0xff] %v1839
          %1856 = vst [vmem:[#allocation12 + $0x18] sm:$0xff] %v1840
          %1857 = vst [vmem:[#allocation12 + $0x20] sm:$0xff] %v1841
          %1858 = vst [vmem:[#allocation12 + $0x28] sm:$0xff] %v1842
          %1859 = vst [vmem:[#allocation12 + $0x30] sm:$0xff] %v1843
          %1860 = vst [vmem:[#allocation12 + $0x38] sm:$0xff] %v1844
          %1861 = vst [vmem:[#allocation12 + $0x40] sm:$0xff] %v1845
          %1862 = vst [vmem:[#allocation12 + $0x48] sm:$0xff] %v1846
          %1863 = vst [vmem:[#allocation12 + $0x50] sm:$0xff] %v1847
          %1864 = vst [vmem:[#allocation12 + $0x58] sm:$0xff] %v1848
          %1865 = vst [vmem:[#allocation12 + $0x60] sm:$0xff] %v1849
          %1866 = vst [vmem:[#allocation12 + $0x68] sm:$0xff] %v1850
          %1867 = vst [vmem:[#allocation12 + $0x70] sm:$0xff] %v1851
          %1868 = vst [vmem:[#allocation12 + $0x78] sm:$0xff] %v1852
        $region68: #{cmpgnn_forward.1} parent=39 // pred_fallthru
          _
        // Predicated region
        $region69: #{cmpgnn_forward.1} parent=39 // pred_check
          %p1869 = pneg %p145
        $region70: #{cmpgnn_forward.1} parent=39 // pred_check_branch
          %1871 = sbr.rel (%p1869) target = $region72
        $region71: #{cmpgnn_forward.1} parent=39 // pred_region
          %s1873 = ssub.s32 2048, 2048
          %1874 = vsyncadd [#allocation5], %s1873
          %s1875 = sshll.u32 [#allocation12], 4
          %s1876 = int_to_ptr.vmem [resolvable:$true] %s1875
          %1881 = dma.vmem_to_hbm [thread:$0]  %s1876, 2048, %s5, [#allocation5], 128, 128, 8
        $region72: #{cmpgnn_forward.1} parent=39 // pred_fallthru
          _
        // Predicated region
        $region73: #{cmpgnn_forward.1} parent=39 // pred_check
          %p1882 = pneg %p145
        $region74: #{cmpgnn_forward.1} parent=39 // pred_check_branch
          %1884 = sbr.rel (%p1882) target = $region76
        $region75: #{cmpgnn_forward.1} parent=39 // pred_region
          %1885 = dma.done [#allocation5], 2048
        $region76: #{cmpgnn_forward.1} parent=39 // pred_fallthru
          _
      $region40: #{cmpgnn_forward.1} parent=5 // pred_fallthru
        _
      %p1886 = scmp.le.s32.totalorder 2, %s17
      // Predicated region
      $region77: #{cmpgnn_forward.1} parent=5 // pred_check
        %p1887 = pneg %p1886
      $region78: #{cmpgnn_forward.1} parent=5 // pred_check_branch
        %1889 = sbr.rel (%p1887) target = $region80
      $region79: #{cmpgnn_forward.1} parent=5 // pred_region
        %s1890 = ssub.s32 %s17, 2
      $region80: #{cmpgnn_forward.1} parent=5 // pred_fallthru
        _
    $region6: #{cmpgnn_forward.1} parent=1 // loop_footer
      %s21 = sadd.s32 1, %s17
    $region7: #{cmpgnn_forward.1} parent=1 // loop_footer_branch
      %16 = sbr.rel target = $region3
    $region8: #{cmpgnn_forward.1} parent=1 // loop_exit
      _
    %1891 = vsyncpa [#allocation4], 1
    %s1892 = scalar_lea.sflag [#allocation4], 1
    %1893 = vsyncpa %s1892, 1
    %1894 = vsyncpa [#allocation7], 1
    %s1895 = scalar_lea.sflag [#allocation7], 1
    %1896 = vsyncpa %s1895, 1
    %1897 = vsyncpa [#allocation10], 1
    %1898 = vsyncpa [#allocation5], 1
    %s1899 = scalar_lea.sflag [#allocation5], 1
    %1900 = vsyncpa %s1899, 1

</llo_original>
